<compile_context>
chip_gen: v7x
topology: tpu7x:2x2x1
jax: 0.10.0
libtpu: 0.0.40
codegen_flags: <defaults>
</compile_context>

<pallas_src>
import functools

import jax
import jax.numpy as jnp
from jax.experimental import pallas as pl
from jax.experimental.pallas import tpu as pltpu


# --------------------------------------------------------------------------
# Kernel 1: fused 3x3 conv (stride 1, pad 1) + folded-BN affine (+bias) + ReLU
#           (+ optional fused 2x2 max-pool).  One output row-tile per grid step.
# --------------------------------------------------------------------------
def _conv_kernel(x_ref, w_ref, scale_ref, shift_ref, o_ref, patch_ref,
                 *, TH, W, Cin, pool):
    # x_ref:     (Hp, Wp, Cin) f32   padded full image of one batch element
    #                                (block index constant in h -> one DMA per image)
    # w_ref:     (9*Cin, Cout) bf16  im2col weight, row index = (dy*3+dx)*Cin + cin
    # scale_ref: (1, Cout) f32       folded BN scale (1.0 if the layer has no BN)
    # shift_ref: (1, Cout) f32       folded BN shift + conv bias
    # o_ref:     (TH, W, Cout) or (TH//2, W//2, Cout) f32 output row-tile
    # patch_ref: (TH, W, 9*Cin) f32  VMEM staging buffer for the im2col patches
    h = pl.program_id(1)
    Cout = o_ref.shape[-1]

    row0 = h * TH
    if TH % 8 == 0:
        row0 = pl.multiple_of(row0, 8)
    win = x_ref[pl.ds(row0, TH + 2)]                       # (TH+2, Wp, Cin)

    # im2col: stage the 9 shifted taps into the channel slices of the scratch buffer,
    # then do a single MXU matmul with K = 9*Cin (instead of 9 dots with K = Cin).
    for dy in range(3):
        for dx in range(3):
            t = dy * 3 + dx
            patch_ref[:, :, t * Cin:(t + 1) * Cin] = win[dy:dy + TH, dx:dx + W, :]

    patches = patch_ref[...].reshape(TH * W, 9 * Cin).astype(jnp.bfloat16)
    acc = jnp.dot(patches, w_ref[...], preferred_element_type=jnp.float32)

    y = acc * scale_ref[...] + shift_ref[...]              # folded BN affine + conv bias
    y = jnp.maximum(y, 0.0)                                # ReLU
    y = y.reshape(TH, W, Cout)

    if pool:                                               # fused 2x2 max-pool, stride 2
        y = y.reshape(TH, W // 2, 2, Cout).max(axis=2)     # pool along W
        y = y.reshape(TH // 2, 2, W // 2, Cout).max(axis=1)  # pool along H

    o_ref[...] = y


def conv3x3_bn_relu(x_nhwc, w_hwio, scale, shift, *, pool=False):
    """3x3 conv (stride 1, pad 1) + per-channel affine + ReLU (+ optional 2x2 max-pool)."""
    N, H, W, Cin = x_nhwc.shape
    Cout = w_hwio.shape[-1]

    # TODO(synk): the 1-pixel halo is still materialized with jnp.pad in HBM; for very
    # large images this could become an in-kernel halo DMA instead.
    xp = jnp.pad(x_nhwc, ((0, 0), (1, 1), (1, 1), (0, 0)))
    Hp, Wp = H + 2, W + 2

    w2d = w_hwio.reshape(9 * Cin, Cout).astype(jnp.bfloat16)   # im2col weight
    sc = scale.reshape(1, Cout).astype(jnp.float32)
    sh = shift.reshape(1, Cout).astype(jnp.float32)

    if pool:
        assert H % 2 == 0 and W % 2 == 0, "2x2 max-pool needs even spatial dims"
        TH = 16 if H % 16 == 0 else H          # conv rows per tile (pre-pool)
        TH_out, H_out, W_out = TH // 2, H // 2, W // 2
    else:
        TH = 8 if H % 8 == 0 else H
        TH_out, H_out, W_out = TH, H, W
    n_h = H // TH

    kernel = functools.partial(_conv_kernel, TH=TH, W=W, Cin=Cin, pool=pool)

    return pl.pallas_call(
        kernel,
        out_shape=jax.ShapeDtypeStruct((N, H_out, W_out, Cout), jnp.float32),
        grid=(N, n_h),
        in_specs=[
            # full padded image per batch element; block index is constant in h, so the
            # image is copied to VMEM once per n and re-used by every row tile.
            pl.BlockSpec((None, Hp, Wp, Cin), lambda n, h: (n, 0, 0, 0)),
            pl.BlockSpec((9 * Cin, Cout), lambda n, h: (0, 0)),
            pl.BlockSpec((1, Cout), lambda n, h: (0, 0)),
            pl.BlockSpec((1, Cout), lambda n, h: (0, 0)),
        ],
        out_specs=pl.BlockSpec((None, TH_out, W_out, Cout),
                               lambda n, h: (n, h, 0, 0)),
        scratch_shapes=[pltpu.VMEM((TH, W, 9 * Cin), jnp.float32)],
        compiler_params=pltpu.CompilerParams(
            dimension_semantics=("parallel", "arbitrary"),   # batch sharded across TCs
            vmem_limit_bytes=64 * 1024 * 1024,
        ),
    )(xp, w2d, sc, sh)


# --------------------------------------------------------------------------
# Kernel 2: fully-connected layer, tiled over the reduction axis F.
#           Output is a 128-lane padded slab (lane-dense stores), sliced outside.
# --------------------------------------------------------------------------
def _fc_kernel(x_ref, w_ref, b_ref, o_ref, acc_ref):
    k = pl.program_id(0)

    @pl.when(k == 0)
    def _init():
        acc_ref[...] = jnp.zeros_like(acc_ref)

    acc_ref[...] += jnp.dot(x_ref[...].astype(jnp.bfloat16), w_ref[...],
                            preferred_element_type=jnp.float32)

    @pl.when(k == pl.num_programs(0) - 1)
    def _finalize():
        o_ref[...] = acc_ref[...] + b_ref[...]


def fc(x_flat, w_pad, b_pad, num_classes):
    """y = x @ W + b.  W is pre-permuted to NHWC row order and padded to 128 lanes."""
    N, F = x_flat.shape
    Fo_pad = w_pad.shape[-1]
    TF = F
    for cand in (2048, 1024, 512, 256, 128):
        if F % cand == 0 and cand < F:
            TF = cand
            break

    out = pl.pallas_call(
        _fc_kernel,
        out_shape=jax.ShapeDtypeStruct((N, Fo_pad), jnp.float32),
        grid=(F // TF,),
        in_specs=[
            pl.BlockSpec((N, TF), lambda k: (0, k)),
            pl.BlockSpec((TF, Fo_pad), lambda k: (k, 0)),
            pl.BlockSpec((1, Fo_pad), lambda k: (0, 0)),
        ],
        out_specs=pl.BlockSpec((N, Fo_pad), lambda k: (0, 0)),
        scratch_shapes=[pltpu.VMEM((N, Fo_pad), jnp.float32)],
        compiler_params=pltpu.CompilerParams(
            dimension_semantics=("arbitrary",),
            vmem_limit_bytes=64 * 1024 * 1024,
        ),
    )(x_flat, w_pad, b_pad)
    return out[:, :num_classes]


# --------------------------------------------------------------------------
# Host-side parameter folding.
# --------------------------------------------------------------------------
def fold_bn(gamma, beta, running_mean, running_var, conv_bias, eps=1e-5):
    """Fold BN running stats AND the conv bias into a per-channel scale/shift."""
    scale = gamma / jnp.sqrt(running_var + eps)
    shift = beta + (conv_bias - running_mean) * scale
    return scale, shift


def fold_fc_weight_chw_to_hwc(w_fc_chw, C, H, W):
    """Permute fc weight rows from PyTorch's (C,H,W) flatten order to NHWC flatten order
    (so the pre-fc transpose disappears) and pad out_features up to a 128-lane multiple."""
    Fo = w_fc_chw.shape[-1]
    Fo_pad = ((Fo + 127) // 128) * 128
    w_hwc = w_fc_chw.reshape(C, H, W, Fo).transpose(1, 2, 0, 3).reshape(H * W * C, Fo)
    if Fo_pad != Fo:
        w_hwc = jnp.pad(w_hwc, ((0, 0), (0, Fo_pad - Fo)))
    return w_hwc.astype(jnp.bfloat16)


# --------------------------------------------------------------------------
# Full ConvNet forward.
# --------------------------------------------------------------------------
def convnet_forward(x_nchw, params):
    # glue: NCHW -> NHWC once
    x = jnp.transpose(x_nchw, (0, 2, 3, 1)).astype(jnp.float32)

    # conv1 + bn1 + relu1 + maxpool2 (all fused in one kernel)
    x = conv3x3_bn_relu(x, params["w1"], params["scale1"], params["shift1"], pool=True)
    # conv2 + relu2 (scale=1, shift=bias)
    x = conv3x3_bn_relu(x, params["w2"], params["scale2"], params["shift2"])
    # conv3 + bn3 + relu3
    x = conv3x3_bn_relu(x, params["w3"], params["scale3"], params["shift3"])

    # flatten in NHWC order; the fc weight rows were pre-permuted from PyTorch's (C,H,W)
    # order, so this reshape is a free metadata op (no transpose / relayout in HBM).
    N = x.shape[0]
    flat = x.reshape(N, -1)
    return fc(flat, params["w_fc"], params["b_fc"], params["num_classes"])


if __name__ == "__main__":
    key = jax.random.PRNGKey(0)
    ks = jax.random.split(key, 20)

    # Small shapes consistent with the module: batch=2, 3 channels, 16x16 spatial.
    N, Cin, Hin, Win = 2, 3, 16, 16
    num_classes = 10
    x = jax.random.normal(ks[0], (N, Cin, Hin, Win), jnp.float32)

    # conv1: 3 -> 12, conv2: 12 -> 20, conv3: 20 -> 32 (all 3x3, stride 1, pad 1), HWIO.
    w1 = 0.1 * jax.random.normal(ks[1], (3, 3, 3, 12), jnp.float32)
    b1 = 0.1 * jax.random.normal(ks[2], (12,), jnp.float32)
    g1 = 1.0 + 0.1 * jax.random.normal(ks[3], (12,), jnp.float32)
    be1 = 0.1 * jax.random.normal(ks[4], (12,), jnp.float32)
    rm1 = 0.1 * jax.random.normal(ks[5], (12,), jnp.float32)
    rv1 = jnp.abs(jax.random.normal(ks[6], (12,), jnp.float32)) + 0.5
    scale1, shift1 = fold_bn(g1, be1, rm1, rv1, b1)

    w2 = 0.1 * jax.random.normal(ks[7], (3, 3, 12, 20), jnp.float32)
    b2 = 0.1 * jax.random.normal(ks[8], (20,), jnp.float32)
    scale2 = jnp.ones((20,), jnp.float32)          # conv2 has no BN: scale=1, shift=bias
    shift2 = b2

    w3 = 0.1 * jax.random.normal(ks[9], (3, 3, 20, 32), jnp.float32)
    b3 = 0.1 * jax.random.normal(ks[10], (32,), jnp.float32)
    g3 = 1.0 + 0.1 * jax.random.normal(ks[11], (32,), jnp.float32)
    be3 = 0.1 * jax.random.normal(ks[12], (32,), jnp.float32)
    rm3 = 0.1 * jax.random.normal(ks[13], (32,), jnp.float32)
    rv3 = jnp.abs(jax.random.normal(ks[14], (32,), jnp.float32)) + 0.5
    scale3, shift3 = fold_bn(g3, be3, rm3, rv3, b3)

    # fc: in_features = 32 * (H/2) * (W/2)  (original: 32*128*128 for a 256x256 input)
    H3, W3, C3 = Hin // 2, Win // 2, 32
    F = C3 * H3 * W3
    # generated in PyTorch (C,H,W) flatten-row order, then folded to NHWC order + padded.
    w_fc_chw = 0.02 * jax.random.normal(ks[15], (F, num_classes), jnp.float32)
    b_fc = 0.02 * jax.random.normal(ks[16], (num_classes,), jnp.float32)

    w_fc = fold_fc_weight_chw_to_hwc(w_fc_chw, C3, H3, W3)
    Fo_pad = w_fc.shape[-1]
    b_fc_pad = jnp.pad(b_fc, (0, Fo_pad - num_classes)).reshape(1, Fo_pad).astype(jnp.float32)

    params = dict(w1=w1, scale1=scale1, shift1=shift1,
                  w2=w2, scale2=scale2, shift2=shift2,
                  w3=w3, scale3=scale3, shift3=shift3,
                  w_fc=w_fc, b_fc=b_fc_pad, num_classes=num_classes)

    out = convnet_forward(x, params)
    out = jax.block_until_ready(out)
    assert out.shape == (N, num_classes), out.shape
    assert bool(jnp.all(jnp.isfinite(out)))
    print("KERNEL_OK")
</pallas_src>

<mosaic_0001>
module attributes {stable_mosaic.version = 11 : i64} {
  func.func @_conv_kernel(%arg0: i32, %arg1: i32, %arg2: memref<1x18x18x3xf32, #tpu.memory_space<vmem>>, %arg3: memref<27x12xbf16, #tpu.memory_space<vmem>>, %arg4: memref<1x12xf32, #tpu.memory_space<vmem>>, %arg5: memref<1x12xf32, #tpu.memory_space<vmem>>, %arg6: memref<1x8x8x12xf32, #tpu.memory_space<vmem>>, %arg7: memref<16x16x27xf32, #tpu.memory_space<vmem>>) attributes {dimension_semantics = [#tpu.dimension_semantics<parallel>, #tpu.dimension_semantics<arbitrary>], iteration_bounds = array<i64: 2, 1>, scalar_prefetch = 0 : i64, scratch_operands = 1 : i64, tpu.core_type = #tpu.core_type<tc>, window_params = [{transform_indices = @transform_0, window_bounds = array<i64: 1, 18, 18, 3>}, {pipeline_mode = #tpu.pipeline_mode<synchronous>, transform_indices = @transform_1, window_bounds = array<i64: 27, 12>}, {pipeline_mode = #tpu.pipeline_mode<synchronous>, transform_indices = @transform_2, window_bounds = array<i64: 1, 12>}, {pipeline_mode = #tpu.pipeline_mode<synchronous>, transform_indices = @transform_3, window_bounds = array<i64: 1, 12>}, {transform_indices = @transform_4, window_bounds = array<i64: 1, 8, 8, 12>}]} {
    %c16_i32 = arith.constant 16 : i32
    %0 = arith.muli %arg1, %c16_i32 : i32
    %1 = tpu.assume_multiple %0, 8 : i32
    %c0 = arith.constant 0 : index
    %2 = arith.index_cast %1 : i32 to index
    %c0_0 = arith.constant 0 : index
    %c0_1 = arith.constant 0 : index
    %3 = vector.load %arg2[%c0, %2, %c0_0, %c0_1] : memref<1x18x18x3xf32, #tpu.memory_space<vmem>>, vector<1x18x18x3xf32>
    %4 = vector.shape_cast %3 : vector<1x18x18x3xf32> to vector<18x18x3xf32>
    %5 = vector.extract_strided_slice %4 {offsets = [0, 0, 0], sizes = [16, 16, 3], strides = [1, 1, 1]} : vector<18x18x3xf32> to vector<16x16x3xf32>
    %c0_2 = arith.constant 0 : index
    %c0_3 = arith.constant 0 : index
    %c0_4 = arith.constant 0 : index
    %6 = vector.load %arg7[%c0_2, %c0_3, %c0_4] : memref<16x16x27xf32, #tpu.memory_space<vmem>>, vector<16x16x3xf32>
    tpu.vector_store %arg7[%c0_2, %c0_3, %c0_4], %5 {strides = array<i32>} : memref<16x16x27xf32, #tpu.memory_space<vmem>>, vector<16x16x3xf32>,
    %7 = vector.extract_strided_slice %4 {offsets = [0, 1, 0], sizes = [16, 16, 3], strides = [1, 1, 1]} : vector<18x18x3xf32> to vector<16x16x3xf32>
    %c0_5 = arith.constant 0 : index
    %c0_6 = arith.constant 0 : index
    %c3 = arith.constant 3 : index
    %8 = vector.load %arg7[%c0_5, %c0_6, %c3] : memref<16x16x27xf32, #tpu.memory_space<vmem>>, vector<16x16x3xf32>
    tpu.vector_store %arg7[%c0_5, %c0_6, %c3], %7 {strides = array<i32>} : memref<16x16x27xf32, #tpu.memory_space<vmem>>, vector<16x16x3xf32>,
    %9 = vector.extract_strided_slice %4 {offsets = [0, 2, 0], sizes = [16, 16, 3], strides = [1, 1, 1]} : vector<18x18x3xf32> to vector<16x16x3xf32>
    %c0_7 = arith.constant 0 : index
    %c0_8 = arith.constant 0 : index
    %c6 = arith.constant 6 : index
    %10 = vector.load %arg7[%c0_7, %c0_8, %c6] : memref<16x16x27xf32, #tpu.memory_space<vmem>>, vector<16x16x3xf32>
    tpu.vector_store %arg7[%c0_7, %c0_8, %c6], %9 {strides = array<i32>} : memref<16x16x27xf32, #tpu.memory_space<vmem>>, vector<16x16x3xf32>,
    %11 = vector.extract_strided_slice %4 {offsets = [1, 0, 0], sizes = [16, 16, 3], strides = [1, 1, 1]} : vector<18x18x3xf32> to vector<16x16x3xf32>
    %c0_9 = arith.constant 0 : index
    %c0_10 = arith.constant 0 : index
    %c9 = arith.constant 9 : index
    %12 = vector.load %arg7[%c0_9, %c0_10, %c9] : memref<16x16x27xf32, #tpu.memory_space<vmem>>, vector<16x16x3xf32>
    tpu.vector_store %arg7[%c0_9, %c0_10, %c9], %11 {strides = array<i32>} : memref<16x16x27xf32, #tpu.memory_space<vmem>>, vector<16x16x3xf32>,
    %13 = vector.extract_strided_slice %4 {offsets = [1, 1, 0], sizes = [16, 16, 3], strides = [1, 1, 1]} : vector<18x18x3xf32> to vector<16x16x3xf32>
    %c0_11 = arith.constant 0 : index
    %c0_12 = arith.constant 0 : index
    %c12 = arith.constant 12 : index
    %14 = vector.load %arg7[%c0_11, %c0_12, %c12] : memref<16x16x27xf32, #tpu.memory_space<vmem>>, vector<16x16x3xf32>
    tpu.vector_store %arg7[%c0_11, %c0_12, %c12], %13 {strides = array<i32>} : memref<16x16x27xf32, #tpu.memory_space<vmem>>, vector<16x16x3xf32>,
    %15 = vector.extract_strided_slice %4 {offsets = [1, 2, 0], sizes = [16, 16, 3], strides = [1, 1, 1]} : vector<18x18x3xf32> to vector<16x16x3xf32>
    %c0_13 = arith.constant 0 : index
    %c0_14 = arith.constant 0 : index
    %c15 = arith.constant 15 : index
    %16 = vector.load %arg7[%c0_13, %c0_14, %c15] : memref<16x16x27xf32, #tpu.memory_space<vmem>>, vector<16x16x3xf32>
    tpu.vector_store %arg7[%c0_13, %c0_14, %c15], %15 {strides = array<i32>} : memref<16x16x27xf32, #tpu.memory_space<vmem>>, vector<16x16x3xf32>,
    %17 = vector.extract_strided_slice %4 {offsets = [2, 0, 0], sizes = [16, 16, 3], strides = [1, 1, 1]} : vector<18x18x3xf32> to vector<16x16x3xf32>
    %c0_15 = arith.constant 0 : index
    %c0_16 = arith.constant 0 : index
    %c18 = arith.constant 18 : index
    %18 = vector.load %arg7[%c0_15, %c0_16, %c18] : memref<16x16x27xf32, #tpu.memory_space<vmem>>, vector<16x16x3xf32>
    tpu.vector_store %arg7[%c0_15, %c0_16, %c18], %17 {strides = array<i32>} : memref<16x16x27xf32, #tpu.memory_space<vmem>>, vector<16x16x3xf32>,
    %19 = vector.extract_strided_slice %4 {offsets = [2, 1, 0], sizes = [16, 16, 3], strides = [1, 1, 1]} : vector<18x18x3xf32> to vector<16x16x3xf32>
    %c0_17 = arith.constant 0 : index
    %c0_18 = arith.constant 0 : index
    %c21 = arith.constant 21 : index
    %20 = vector.load %arg7[%c0_17, %c0_18, %c21] : memref<16x16x27xf32, #tpu.memory_space<vmem>>, vector<16x16x3xf32>
    tpu.vector_store %arg7[%c0_17, %c0_18, %c21], %19 {strides = array<i32>} : memref<16x16x27xf32, #tpu.memory_space<vmem>>, vector<16x16x3xf32>,
    %21 = vector.extract_strided_slice %4 {offsets = [2, 2, 0], sizes = [16, 16, 3], strides = [1, 1, 1]} : vector<18x18x3xf32> to vector<16x16x3xf32>
    %c0_19 = arith.constant 0 : index
    %c0_20 = arith.constant 0 : index
    %c24 = arith.constant 24 : index
    %22 = vector.load %arg7[%c0_19, %c0_20, %c24] : memref<16x16x27xf32, #tpu.memory_space<vmem>>, vector<16x16x3xf32>
    tpu.vector_store %arg7[%c0_19, %c0_20, %c24], %21 {strides = array<i32>} : memref<16x16x27xf32, #tpu.memory_space<vmem>>, vector<16x16x3xf32>,
    %c0_21 = arith.constant 0 : index
    %c0_22 = arith.constant 0 : index
    %c0_23 = arith.constant 0 : index
    %23 = vector.load %arg7[%c0_21, %c0_22, %c0_23] : memref<16x16x27xf32, #tpu.memory_space<vmem>>, vector<16x16x27xf32>
    %24 = vector.shape_cast %23 : vector<16x16x27xf32> to vector<256x27xf32>
    %25 = arith.truncf %24 : vector<256x27xf32> to vector<256x27xbf16>
    %c0_24 = arith.constant 0 : index
    %c0_25 = arith.constant 0 : index
    %26 = vector.load %arg3[%c0_24, %c0_25] : memref<27x12xbf16, #tpu.memory_space<vmem>>, vector<27x12xbf16>
    %cst = arith.constant dense<0.000000e+00> : vector<256x12xf32>
    %27 = tpu.matmul %25, %26, %cst {dimension_numbers = #tpu.dot_dimension_numbers<[1], [0], [0], [1], [0, 0, 1, 1], [], []>} : vector<256x27xbf16>, vector<27x12xbf16>, vector<256x12xf32> -> vector<256x12xf32>
    %c0_26 = arith.constant 0 : index
    %c0_27 = arith.constant 0 : index
    %28 = vector.load %arg4[%c0_26, %c0_27] : memref<1x12xf32, #tpu.memory_space<vmem>>, vector<1x12xf32>
    %29 = vector.broadcast %28 : vector<1x12xf32> to vector<256x12xf32>
    %30 = arith.mulf %27, %29 : vector<256x12xf32>
    %c0_28 = arith.constant 0 : index
    %c0_29 = arith.constant 0 : index
    %31 = vector.load %arg5[%c0_28, %c0_29] : memref<1x12xf32, #tpu.memory_space<vmem>>, vector<1x12xf32>
    %32 = vector.broadcast %31 : vector<1x12xf32> to vector<256x12xf32>
    %33 = arith.addf %30, %32 : vector<256x12xf32>
    %cst_30 = arith.constant 0.000000e+00 : f32
    %34 = vector.broadcast %cst_30 : f32 to vector<256x12xf32>
    %35 = arith.maximumf %33, %34 : vector<256x12xf32>
    %36 = vector.shape_cast %35 : vector<256x12xf32> to vector<16x16x12xf32>
    %37 = vector.shape_cast %36 : vector<16x16x12xf32> to vector<16x8x2x12xf32>
    %cst_31 = arith.constant dense<0xFF800000> : vector<16x8x12xf32>
    %38 = vector.multi_reduction <maximumf>, %37, %cst_31 [2] : vector<16x8x2x12xf32> to vector<16x8x12xf32>
    %39 = vector.shape_cast %38 : vector<16x8x12xf32> to vector<8x2x8x12xf32>
    %cst_32 = arith.constant dense<0xFF800000> : vector<8x8x12xf32>
    %40 = vector.multi_reduction <maximumf>, %39, %cst_32 [1] : vector<8x2x8x12xf32> to vector<8x8x12xf32>
    %c0_33 = arith.constant 0 : index
    %c0_34 = arith.constant 0 : index
    %c0_35 = arith.constant 0 : index
    %c0_36 = arith.constant 0 : index
    %41 = vector.load %arg6[%c0_33, %c0_34, %c0_35, %c0_36] : memref<1x8x8x12xf32, #tpu.memory_space<vmem>>, vector<1x8x8x12xf32>
    %42 = vector.shape_cast %41 : vector<1x8x8x12xf32> to vector<8x8x12xf32>
    %43 = vector.shape_cast %40 : vector<8x8x12xf32> to vector<1x8x8x12xf32>
    tpu.vector_store %arg6[%c0_33, %c0_34, %c0_35, %c0_36], %43 {strides = array<i32>} : memref<1x8x8x12xf32, #tpu.memory_space<vmem>>, vector<1x8x8x12xf32>,
    return
  }
  func.func @transform_0(%arg0: i32, %arg1: i32) -> (i32, i32, i32, i32) {
    %c0_i32 = arith.constant 0 : i32
    %c0_i32_0 = arith.constant 0 : i32
    %c0_i32_1 = arith.constant 0 : i32
    %c0_i32_2 = arith.constant 0 : i32
    return %arg0, %c0_i32, %c0_i32_0, %c0_i32_1 : i32, i32, i32, i32
  }
  func.func @transform_1(%arg0: i32, %arg1: i32) -> (i32, i32) {
    %c0_i32 = arith.constant 0 : i32
    %c0_i32_0 = arith.constant 0 : i32
    %c0_i32_1 = arith.constant 0 : i32
    return %c0_i32, %c0_i32_0 : i32, i32
  }
  func.func @transform_2(%arg0: i32, %arg1: i32) -> (i32, i32) {
    %c0_i32 = arith.constant 0 : i32
    %c0_i32_0 = arith.constant 0 : i32
    %c0_i32_1 = arith.constant 0 : i32
    return %c0_i32, %c0_i32_0 : i32, i32
  }
  func.func @transform_3(%arg0: i32, %arg1: i32) -> (i32, i32) {
    %c0_i32 = arith.constant 0 : i32
    %c0_i32_0 = arith.constant 0 : i32
    %c0_i32_1 = arith.constant 0 : i32
    return %c0_i32, %c0_i32_0 : i32, i32
  }
  func.func @transform_4(%arg0: i32, %arg1: i32) -> (i32, i32, i32, i32) {
    %c0_i32 = arith.constant 0 : i32
    %c0_i32_0 = arith.constant 0 : i32
    %c0_i32_1 = arith.constant 0 : i32
    return %arg0, %arg1, %c0_i32, %c0_i32_0 : i32, i32, i32, i32
  }
}

</mosaic_0001>

<llo_original>
// kernel: tpu_custom_call.1
$region0: #{tpu_custom_call.1}
  #allocation0 [shape = 'u32[]', space=smem, size = 0x4, offset = 0x4, fixed_abs, tag = 'smem constant byte address 0x4 - core index']
  #allocation1 [shape = 'u32[144,128]{1,0:T(1,128)}', space=vmem, size = 0x12000, scoped, tag = 'internal scratch']
  #allocation2 [shape = 'f32[16,16,27]{2,1,0:T(8,128)}', space=vmem, size = 0x20000, scoped, tag = 'scratch operand']
  %s0 = inlined_call_operand.hbm [shape: f32[2,18,18,3], index: 0, kind: input, shape index: {}]
  %s1 = inlined_call_operand.hbm [shape: bf16[27,12], index: 1, kind: input, shape index: {}]
  %s2 = inlined_call_operand.hbm [shape: f32[1,12], index: 2, kind: input, shape index: {}]
  %s3 = inlined_call_operand.hbm [shape: f32[1,12], index: 3, kind: input, shape index: {}]
  %s4 = inlined_call_operand.hbm [shape: f32[2,8,8,12], index: 4, kind: output, shape index: {}]
  %s5 = sld [smem:[#allocation0]]
  $region65: #{tpu_custom_call.1} parent=0
    _
  %s7 = ssub.s32 1, %s5
  %s8 = scalar_select 0, %s7, %s5
  $region1: #{tpu_custom_call.1} parent=0
    #allocation3 [shape = 'u8[442368]{0}', space=vmem, size = 0x6c000, scoped, tag = 'input window, operand 0']
    #allocation4 [shape = 's32[2]{0}', space=sflag, size = 0x8, scoped, tag = 'scoped memory for tpu_custom_call.1']
    #allocation5 [shape = 's32[2]{0}', space=sflag, size = 0x8, scoped, tag = 'scoped memory for tpu_custom_call.1']
    #allocation6 [shape = 'u8[8192]{0}', space=vmem, size = 0x2000, scoped, tag = 'input window, operand 1, single buffered']
    #allocation7 [shape = 's32[1]{0}', space=sflag, size = 0x4, scoped, tag = 'scoped memory for tpu_custom_call.1']
    #allocation8 [shape = 'u8[512]{0}', space=vmem, size = 0x400, scoped, tag = 'input window, operand 2, single buffered']
    #allocation9 [shape = 'u8[512]{0}', space=vmem, size = 0x400, scoped, tag = 'input window, operand 3, single buffered']
    #allocation10 [shape = 's32[1]{0}', space=sflag, size = 0x4, scoped, tag = 'scoped memory for tpu_custom_call.1']
    #allocation11 [shape = 'u8[65536]{0}', space=vmem, size = 0x10000, scoped, tag = 'output window, operand 0']
    %9 = vsyncpa [#allocation4], 0
    %s10 = scalar_lea.sflag [#allocation4], 1
    %11 = vsyncpa %s10, 0
    %12 = vsyncpa [#allocation7], 0
    %13 = vsyncpa [#allocation10], 0
    %14 = vsyncpa [#allocation5], 0
    %s15 = scalar_lea.sflag [#allocation5], 1
    %16 = vsyncpa %s15, 0
    loop: start=0, step=1, limit=4
    $region2: #{tpu_custom_call.1} parent=1 // loop_pre_header
      _
    $region3: #{tpu_custom_call.1} parent=1 // loop_header
      %s18 = sphi 0, %s22
      %p19 = scmp.ge.s32.totalorder %s18, 4
      %s25 = sphi 0, %s37
      %s26 = sphi 0, %s33
      %s27 = sphi 0, %s25
      %s28 = sphi 0, %s26
      %s29 = sphi 0, %s27
      %s30 = sphi 0, %s28
      %s40 = sphi 0, %s42
      %s43 = sphi 0, %s40
      %s44 = sphi 0, %s43
      %s60 = sphi 0, %s44
      %s64 = sphi 0, %s64
      %s66 = sphi 0, %s64
      %s67 = sphi 0, %s66
      %s81 = sphi 0, %s67
      %s85 = sphi 0, %s85
      %s87 = sphi 0, %s85
      %s88 = sphi 0, %s87
      %s102 = sphi 0, %s88
      %s106 = sphi 0, %s106
      %s108 = sphi 0, %s106
      %s109 = sphi 0, %s108
      %s123 = sphi 0, %s109
      %s131 = sphi 0, %s133
      %s134 = sphi 0, %s131
      %s135 = sphi 0, %s134
      %s151 = sphi 0, %s135
    $region4: #{tpu_custom_call.1} parent=1 // loop_header_branch
      %21 = sbr.rel (%p19) target = $region8
    $region5: #{tpu_custom_call.1} parent=1 // loop_body
      %s23 = ssub.s32 %s18, 1
      %s24 = ssub.s32 %s18, 2
      %s31 = sadd.s32 1, %s26
      %p32 = scmp.ge.s32.totalorder %s31, 1
      %s33 = scalar_select %p32, 0, %s31
      %s34 = sadd.s32 1, %s25
      %s35 = scalar_select %p32, %s34, %s25
      %p36 = scmp.ge.s32.totalorder %s35, 2
      %s37 = scalar_select %p36, 0, %s35
      %s38 = ssub.s32 %s25, %s37
      %p39 = scmp.eq.s32.totalorder %s38, 0
      %s41 = sadd.s32 %s40, 1
      %s42 = scalar_select %p39, %s40, %s41
      %p45 = pneg %p39
      %p46 = scmp.eq.s32.totalorder %s18, 1
      %p47 = por %p45, %p46
      %p48 = scmp.ne.s32.totalorder %s40, %s43
      %p49 = scmp.eq.s32.totalorder %s18, 0
      %p50 = por %p48, %p49
      %p51 = scmp.ne.s32.totalorder %s40, %s43
      %p52 = scmp.eq.s32.totalorder %s23, 1
      %p53 = por %p51, %p52
      %p54 = scmp.ne.s32.totalorder %s43, %s44
      %p55 = scmp.eq.s32.totalorder %s23, 0
      %p56 = por %p54, %p55
      %p57 = scmp.ne.s32.totalorder %s43, %s44
      %p58 = scmp.eq.s32.totalorder %s24, 1
      %p59 = por %p57, %p58
      %p61 = scmp.ne.s32.totalorder %s44, %s60
      %p62 = scmp.eq.s32.totalorder %s24, 0
      %p63 = por %p61, %p62
      %s65 = sadd.s32 %s64, 1
      %p68 = scmp.eq.s32.totalorder %s18, 1
      %p69 = scmp.ne.s32.totalorder %s64, %s66
      %p70 = scmp.eq.s32.totalorder %s18, 0
      %p71 = por %p69, %p70
      %p72 = scmp.ne.s32.totalorder %s64, %s66
      %p73 = scmp.eq.s32.totalorder %s23, 1
      %p74 = por %p72, %p73
      %p75 = scmp.ne.s32.totalorder %s66, %s67
      %p76 = scmp.eq.s32.totalorder %s23, 0
      %p77 = por %p75, %p76
      %p78 = scmp.ne.s32.totalorder %s66, %s67
      %p79 = scmp.eq.s32.totalorder %s24, 1
      %p80 = por %p78, %p79
      %p82 = scmp.ne.s32.totalorder %s67, %s81
      %p83 = scmp.eq.s32.totalorder %s24, 0
      %p84 = por %p82, %p83
      %s86 = sadd.s32 %s85, 1
      %p89 = scmp.eq.s32.totalorder %s18, 1
      %p90 = scmp.ne.s32.totalorder %s85, %s87
      %p91 = scmp.eq.s32.totalorder %s18, 0
      %p92 = por %p90, %p91
      %p93 = scmp.ne.s32.totalorder %s85, %s87
      %p94 = scmp.eq.s32.totalorder %s23, 1
      %p95 = por %p93, %p94
      %p96 = scmp.ne.s32.totalorder %s87, %s88
      %p97 = scmp.eq.s32.totalorder %s23, 0
      %p98 = por %p96, %p97
      %p99 = scmp.ne.s32.totalorder %s87, %s88
      %p100 = scmp.eq.s32.totalorder %s24, 1
      %p101 = por %p99, %p100
      %p103 = scmp.ne.s32.totalorder %s88, %s102
      %p104 = scmp.eq.s32.totalorder %s24, 0
      %p105 = por %p103, %p104
      %s107 = sadd.s32 %s106, 1
      %p110 = scmp.eq.s32.totalorder %s18, 1
      %p111 = scmp.ne.s32.totalorder %s106, %s108
      %p112 = scmp.eq.s32.totalorder %s18, 0
      %p113 = por %p111, %p112
      %p114 = scmp.ne.s32.totalorder %s106, %s108
      %p115 = scmp.eq.s32.totalorder %s23, 1
      %p116 = por %p114, %p115
      %p117 = scmp.ne.s32.totalorder %s108, %s109
      %p118 = scmp.eq.s32.totalorder %s23, 0
      %p119 = por %p117, %p118
      %p120 = scmp.ne.s32.totalorder %s108, %s109
      %p121 = scmp.eq.s32.totalorder %s24, 1
      %p122 = por %p120, %p121
      %p124 = scmp.ne.s32.totalorder %s109, %s123
      %p125 = scmp.eq.s32.totalorder %s24, 0
      %p126 = por %p124, %p125
      %s127 = ssub.s32 %s25, %s37
      %s128 = ssub.s32 %s26, %s33
      %s129 = sor.u32 %s127, %s128
      %p130 = scmp.eq.s32.totalorder %s129, 0
      %s132 = sadd.s32 %s131, 1
      %s133 = scalar_select %p130, %s131, %s132
      %p136 = pneg %p130
      %p137 = scmp.eq.s32.totalorder %s18, 1
      %p138 = por %p136, %p137
      %p139 = scmp.ne.s32.totalorder %s131, %s134
      %p140 = scmp.eq.s32.totalorder %s18, 0
      %p141 = por %p139, %p140
      %p142 = scmp.ne.s32.totalorder %s131, %s134
      %p143 = scmp.eq.s32.totalorder %s23, 1
      %p144 = por %p142, %p143
      %p145 = scmp.ne.s32.totalorder %s134, %s135
      %p146 = scmp.eq.s32.totalorder %s23, 0
      %p147 = por %p145, %p146
      %p148 = scmp.ne.s32.totalorder %s134, %s135
      %p149 = scmp.eq.s32.totalorder %s24, 1
      %p150 = por %p148, %p149
      %p152 = scmp.ne.s32.totalorder %s135, %s151
      %p153 = scmp.eq.s32.totalorder %s24, 0
      %p154 = por %p152, %p153
      %p155 = scmp.le.s32.totalorder 1, %s18
      %p156 = scmp.lt.s32.totalorder %s18, 3
      %p157 = pnand %p155, %p156
      %p158 = pneg %p157
      // Predicated region
      $region9: #{tpu_custom_call.1} parent=5 // pred_check
        _
      $region10: #{tpu_custom_call.1} parent=5 // pred_check_branch
        %160 = sbr.rel (%p157) target = $region12
      $region11: #{tpu_custom_call.1} parent=5 // pred_region
        %s161 = ssub.s32 %s18, 1
        // Predicated region
        $region13: #{tpu_custom_call.1} parent=11 // pred_check
          %p162 = pneg %p77
        $region14: #{tpu_custom_call.1} parent=11 // pred_check_branch
          %164 = sbr.rel (%p162) target = $region16
        $region15: #{tpu_custom_call.1} parent=11 // pred_region
          %s166 = ssub.s32 256, 256
          %167 = vsyncadd [#allocation7], %s166
          %s168 = sshll.u32 [#allocation6], 4
          %s169 = int_to_ptr.vmem [resolvable:$true] %s168
          %174 = dma.hbm_to_vmem [thread:$0]  %s1, 256, %s169, [#allocation7], 64, 64, 4
        $region16: #{tpu_custom_call.1} parent=11 // pred_fallthru
          _
        // Predicated region
        $region17: #{tpu_custom_call.1} parent=11 // pred_check
          %p175 = pneg %p98
        $region18: #{tpu_custom_call.1} parent=11 // pred_check_branch
          %177 = sbr.rel (%p175) target = $region20
        $region19: #{tpu_custom_call.1} parent=11 // pred_region
          %s179 = ssub.s32 16, 16
          %180 = vsyncadd [#allocation7], %s179
          %s182 = sshll.u32 [#allocation8], 4
          %s183 = int_to_ptr.vmem [resolvable:$true] %s182
          %185 = dma.hbm_to_vmem [thread:$0]  %s2, 16, %s183, [#allocation7]
        $region20: #{tpu_custom_call.1} parent=11 // pred_fallthru
          _
        // Predicated region
        $region21: #{tpu_custom_call.1} parent=11 // pred_check
          %p186 = pneg %p119
        $region22: #{tpu_custom_call.1} parent=11 // pred_check_branch
          %188 = sbr.rel (%p186) target = $region24
        $region23: #{tpu_custom_call.1} parent=11 // pred_region
          %s190 = ssub.s32 16, 16
          %191 = vsyncadd [#allocation10], %s190
          %s193 = sshll.u32 [#allocation9], 4
          %s194 = int_to_ptr.vmem [resolvable:$true] %s193
          %196 = dma.hbm_to_vmem [thread:$0]  %s3, 16, %s194, [#allocation10]
        $region24: #{tpu_custom_call.1} parent=11 // pred_fallthru
          _
      $region12: #{tpu_custom_call.1} parent=5 // pred_fallthru
        _
      %p197 = scmp.lt.s32.totalorder %s18, 2
      // Predicated region
      $region25: #{tpu_custom_call.1} parent=5 // pred_check
        %p198 = pneg %p197
      $region26: #{tpu_custom_call.1} parent=5 // pred_check_branch
        %200 = sbr.rel (%p198) target = $region28
      $region27: #{tpu_custom_call.1} parent=5 // pred_region
        // Predicated region
        $region29: #{tpu_custom_call.1} parent=27 // pred_check
          %p201 = pneg %p50
        $region30: #{tpu_custom_call.1} parent=27 // pred_check_branch
          %203 = sbr.rel (%p201) target = $region32
        $region31: #{tpu_custom_call.1} parent=27 // pred_region
          %s204 = sand.u32 %s40, 1
          %s205 = scalar_lea.sflag [#allocation4], %s204
          %s206 = sand.u32 %s40, 1
          %s207 = smul.addr %s206, 432
          %s208 = scalar_lea.vmem [#allocation3], %s207
          %s210 = ssub.s32 6912, 6912
          %211 = vsyncadd %s205, %s210
          %s212 = smul.addr %s25, 54
          %s213 = smul.addr %s212, 128
          %s214 = scalar_lea.hbm %s0, %s213
          %s215 = sshll.u32 %s208, 4
          %s216 = int_to_ptr.vmem [resolvable:$true] %s215
          %221 = dma.hbm_to_vmem [thread:$0]  %s214, 6912, %s216, %s205, 128, 128, 8
        $region32: #{tpu_custom_call.1} parent=27 // pred_fallthru
          _
      $region28: #{tpu_custom_call.1} parent=5 // pred_fallthru
        _
      %p222 = scmp.le.s32.totalorder 1, %s18
      %p223 = scmp.lt.s32.totalorder %s18, 3
      %p224 = pnand %p222, %p223
      %p225 = pneg %p224
      // Predicated region
      $region33: #{tpu_custom_call.1} parent=5 // pred_check
        _
      $region34: #{tpu_custom_call.1} parent=5 // pred_check_branch
        %227 = sbr.rel (%p224) target = $region36
      $region35: #{tpu_custom_call.1} parent=5 // pred_region
        %s228 = ssub.s32 %s18, 1
        %s229 = sand.u32 %s43, 1
        %s230 = scalar_lea.sflag [#allocation4], %s229
        %s231 = sand.u32 %s43, 1
        %s232 = smul.addr %s231, 432
        %s233 = scalar_lea.vmem [#allocation3], %s232
        // Predicated region
        $region37: #{tpu_custom_call.1} parent=35 // pred_check
          %p234 = pneg %p56
        $region38: #{tpu_custom_call.1} parent=35 // pred_check_branch
          %236 = sbr.rel (%p234) target = $region40
        $region39: #{tpu_custom_call.1} parent=35 // pred_region
          %237 = dma.done %s230, 6912
        $region40: #{tpu_custom_call.1} parent=35 // pred_fallthru
          _
        // Predicated region
        $region41: #{tpu_custom_call.1} parent=35 // pred_check
          %p238 = pneg %p77
        $region42: #{tpu_custom_call.1} parent=35 // pred_check_branch
          %240 = sbr.rel (%p238) target = $region44
        $region43: #{tpu_custom_call.1} parent=35 // pred_region
          %241 = dma.done [#allocation7], 256
        $region44: #{tpu_custom_call.1} parent=35 // pred_fallthru
          _
        // Predicated region
        $region45: #{tpu_custom_call.1} parent=35 // pred_check
          %p242 = pneg %p98
        $region46: #{tpu_custom_call.1} parent=35 // pred_check_branch
          %244 = sbr.rel (%p242) target = $region48
        $region47: #{tpu_custom_call.1} parent=35 // pred_region
          %245 = dma.done [#allocation7], 16
        $region48: #{tpu_custom_call.1} parent=35 // pred_fallthru
          _
        // Predicated region
        $region49: #{tpu_custom_call.1} parent=35 // pred_check
          %p246 = pneg %p119
        $region50: #{tpu_custom_call.1} parent=35 // pred_check_branch
          %248 = sbr.rel (%p246) target = $region52
        $region51: #{tpu_custom_call.1} parent=35 // pred_region
          %249 = dma.done [#allocation10], 16
        $region52: #{tpu_custom_call.1} parent=35 // pred_fallthru
          _
        %s250 = sand.u32 %s43, 1
        %s251 = scalar_lea.sflag [#allocation4], %s250
        %s252 = sand.u32 %s43, 1
        %s253 = smul.addr %s252, 432
        %s254 = scalar_lea.vmem [#allocation3], %s253
        %p255 = pneg %p56
        %p256 = pneg %p53
        %p257 = pneg %p77
        %p258 = pneg %p74
        %p259 = pneg %p98
        %p260 = pneg %p95
        %p261 = pneg %p119
        %p262 = pneg %p116
        %p263 = pneg %p147
        %p264 = pneg %p144
        %s265 = sand.u32 %s134, 1
        %s266 = scalar_lea.sflag [#allocation5], %s265
        %s267 = sand.u32 %s134, 1
        %s268 = smul.addr %s267, 64
        %s269 = scalar_lea.vmem [#allocation11], %s268
        %s270 = smul.u32 8, %s28
        %s272 = smul.u32 %s28, 16
        %s273 = smul.u32 %s272, 24
        %s274 = scalar_lea.vmem %s233, %s273 [#allocation3]
        %v275 = vld [vmem:[%s274] sm:$0xff]
        %v276 = vld [vmem:[%s274 + $0x8] sm:$0xff]
        %v277 = vld [vmem:[%s274 + $0x10] sm:$0x3]
        %v278 = vld [vmem:[%s274 + $0x18] sm:$0xff]
        %v279 = vld [vmem:[%s274 + $0x20] sm:$0xff]
        %v280 = vld [vmem:[%s274 + $0x28] sm:$0x3]
        %v281 = vld [vmem:[%s274 + $0x30] sm:$0xff]
        %v282 = vld [vmem:[%s274 + $0x38] sm:$0xff]
        %v283 = vld [vmem:[%s274 + $0x40] sm:$0x3]
        %v284 = vld [vmem:[%s274 + $0x48] sm:$0xff]
        %v285 = vld [vmem:[%s274 + $0x50] sm:$0xff]
        %v286 = vld [vmem:[%s274 + $0x58] sm:$0x3]
        %v287 = vld [vmem:[%s274 + $0x60] sm:$0xff]
        %v288 = vld [vmem:[%s274 + $0x68] sm:$0xff]
        %v289 = vld [vmem:[%s274 + $0x70] sm:$0x3]
        %v290 = vld [vmem:[%s274 + $0x78] sm:$0xff]
        %v291 = vld [vmem:[%s274 + $0x80] sm:$0xff]
        %v292 = vld [vmem:[%s274 + $0x88] sm:$0x3]
        %v293 = vld [vmem:[%s274 + $0x90] sm:$0xff]
        %v294 = vld [vmem:[%s274 + $0x98] sm:$0xff]
        %v295 = vld [vmem:[%s274 + $0xa0] sm:$0x3]
        %v296 = vld [vmem:[%s274 + $0xa8] sm:$0xff]
        %v297 = vld [vmem:[%s274 + $0xb0] sm:$0xff]
        %v298 = vld [vmem:[%s274 + $0xb8] sm:$0x3]
        %v299 = vld [vmem:[%s274 + $0xc0] sm:$0xff]
        %v300 = vld [vmem:[%s274 + $0xc8] sm:$0xff]
        %v301 = vld [vmem:[%s274 + $0xd0] sm:$0x3]
        %v302 = vld [vmem:[%s274 + $0xd8] sm:$0xff]
        %v303 = vld [vmem:[%s274 + $0xe0] sm:$0xff]
        %v304 = vld [vmem:[%s274 + $0xe8] sm:$0x3]
        %v305 = vld [vmem:[%s274 + $0xf0] sm:$0xff]
        %v306 = vld [vmem:[%s274 + $0xf8] sm:$0xff]
        %v307 = vld [vmem:[%s274 + $0x100] sm:$0x3]
        %v308 = vld [vmem:[%s274 + $0x108] sm:$0xff]
        %v309 = vld [vmem:[%s274 + $0x110] sm:$0xff]
        %v310 = vld [vmem:[%s274 + $0x118] sm:$0x3]
        %v311 = vld [vmem:[%s274 + $0x120] sm:$0xff]
        %v312 = vld [vmem:[%s274 + $0x128] sm:$0xff]
        %v313 = vld [vmem:[%s274 + $0x130] sm:$0x3]
        %v314 = vld [vmem:[%s274 + $0x138] sm:$0xff]
        %v315 = vld [vmem:[%s274 + $0x140] sm:$0xff]
        %v316 = vld [vmem:[%s274 + $0x148] sm:$0x3]
        %v317 = vld [vmem:[%s274 + $0x150] sm:$0xff]
        %v318 = vld [vmem:[%s274 + $0x158] sm:$0xff]
        %v319 = vld [vmem:[%s274 + $0x160] sm:$0x3]
        %v320 = vld [vmem:[%s274 + $0x168] sm:$0xff]
        %v321 = vld [vmem:[%s274 + $0x170] sm:$0xff]
        %v322 = vld [vmem:[%s274 + $0x178] sm:$0x3]
        %v323 = vld [vmem:[%s274 + $0x180] sm:$0xff]
        %v324 = vld [vmem:[%s274 + $0x188] sm:$0xff]
        %v325 = vld [vmem:[%s274 + $0x190] sm:$0x3]
        %v326 = vld [vmem:[%s274 + $0x198] sm:$0xff]
        %v327 = vld [vmem:[%s274 + $0x1a0] sm:$0xff]
        %v328 = vld [vmem:[%s274 + $0x1a8] sm:$0x3]
        %vm329 = vcmask 23552
        %330 = vst.msk [vmem:[#allocation2] sm:$0xff] %vm329, %v275
        %331 = vst.msk [vmem:[#allocation2 + $0x8] sm:$0xff] %vm329, %v276
        %332 = vst.msk [vmem:[#allocation2 + $0x10] sm:$0xff] %vm329, %v278
        %333 = vst.msk [vmem:[#allocation2 + $0x18] sm:$0xff] %vm329, %v279
        %334 = vst.msk [vmem:[#allocation2 + $0x20] sm:$0xff] %vm329, %v281
        %335 = vst.msk [vmem:[#allocation2 + $0x28] sm:$0xff] %vm329, %v282
        %336 = vst.msk [vmem:[#allocation2 + $0x30] sm:$0xff] %vm329, %v284
        %337 = vst.msk [vmem:[#allocation2 + $0x38] sm:$0xff] %vm329, %v285
        %338 = vst.msk [vmem:[#allocation2 + $0x40] sm:$0xff] %vm329, %v287
        %339 = vst.msk [vmem:[#allocation2 + $0x48] sm:$0xff] %vm329, %v288
        %340 = vst.msk [vmem:[#allocation2 + $0x50] sm:$0xff] %vm329, %v290
        %341 = vst.msk [vmem:[#allocation2 + $0x58] sm:$0xff] %vm329, %v291
        %342 = vst.msk [vmem:[#allocation2 + $0x60] sm:$0xff] %vm329, %v293
        %343 = vst.msk [vmem:[#allocation2 + $0x68] sm:$0xff] %vm329, %v294
        %344 = vst.msk [vmem:[#allocation2 + $0x70] sm:$0xff] %vm329, %v296
        %345 = vst.msk [vmem:[#allocation2 + $0x78] sm:$0xff] %vm329, %v297
        %346 = vst.msk [vmem:[#allocation2 + $0x80] sm:$0xff] %vm329, %v299
        %347 = vst.msk [vmem:[#allocation2 + $0x88] sm:$0xff] %vm329, %v300
        %348 = vst.msk [vmem:[#allocation2 + $0x90] sm:$0xff] %vm329, %v302
        %349 = vst.msk [vmem:[#allocation2 + $0x98] sm:$0xff] %vm329, %v303
        %350 = vst.msk [vmem:[#allocation2 + $0xa0] sm:$0xff] %vm329, %v305
        %351 = vst.msk [vmem:[#allocation2 + $0xa8] sm:$0xff] %vm329, %v306
        %352 = vst.msk [vmem:[#allocation2 + $0xb0] sm:$0xff] %vm329, %v308
        %353 = vst.msk [vmem:[#allocation2 + $0xb8] sm:$0xff] %vm329, %v309
        %354 = vst.msk [vmem:[#allocation2 + $0xc0] sm:$0xff] %vm329, %v311
        %355 = vst.msk [vmem:[#allocation2 + $0xc8] sm:$0xff] %vm329, %v312
        %356 = vst.msk [vmem:[#allocation2 + $0xd0] sm:$0xff] %vm329, %v314
        %357 = vst.msk [vmem:[#allocation2 + $0xd8] sm:$0xff] %vm329, %v315
        %358 = vst.msk [vmem:[#allocation2 + $0xe0] sm:$0xff] %vm329, %v317
        %359 = vst.msk [vmem:[#allocation2 + $0xe8] sm:$0xff] %vm329, %v318
        %360 = vst.msk [vmem:[#allocation2 + $0xf0] sm:$0xff] %vm329, %v320
        %361 = vst.msk [vmem:[#allocation2 + $0xf8] sm:$0xff] %vm329, %v321
        %410 = vrot.lane.b32.xlu0 %v275, 3
        %v411 = vpop.permute.xlu0 %410
        %412 = vrot.lane.b32.xlu0 %v276, 3
        %v413 = vpop.permute.xlu0 %412
        %414 = vrot.lane.b32.xlu0 %v277, 3
        %v415 = vpop.permute.xlu0 %414
        %416 = vrot.lane.b32.xlu0 %v278, 3
        %v417 = vpop.permute.xlu0 %416
        %418 = vrot.lane.b32.xlu0 %v279, 3
        %v419 = vpop.permute.xlu0 %418
        %420 = vrot.lane.b32.xlu0 %v280, 3
        %v421 = vpop.permute.xlu0 %420
        %422 = vrot.lane.b32.xlu0 %v281, 3
        %v423 = vpop.permute.xlu0 %422
        %424 = vrot.lane.b32.xlu0 %v282, 3
        %v425 = vpop.permute.xlu0 %424
        %426 = vrot.lane.b32.xlu0 %v283, 3
        %v427 = vpop.permute.xlu0 %426
        %428 = vrot.lane.b32.xlu0 %v284, 3
        %v429 = vpop.permute.xlu0 %428
        %430 = vrot.lane.b32.xlu0 %v285, 3
        %v431 = vpop.permute.xlu0 %430
        %432 = vrot.lane.b32.xlu0 %v286, 3
        %v433 = vpop.permute.xlu0 %432
        %434 = vrot.lane.b32.xlu0 %v287, 3
        %v435 = vpop.permute.xlu0 %434
        %436 = vrot.lane.b32.xlu0 %v288, 3
        %v437 = vpop.permute.xlu0 %436
        %438 = vrot.lane.b32.xlu0 %v289, 3
        %v439 = vpop.permute.xlu0 %438
        %440 = vrot.lane.b32.xlu0 %v290, 3
        %v441 = vpop.permute.xlu0 %440
        %442 = vrot.lane.b32.xlu0 %v291, 3
        %v443 = vpop.permute.xlu0 %442
        %444 = vrot.lane.b32.xlu0 %v292, 3
        %v445 = vpop.permute.xlu0 %444
        %446 = vrot.lane.b32.xlu0 %v293, 3
        %v447 = vpop.permute.xlu0 %446
        %448 = vrot.lane.b32.xlu0 %v294, 3
        %v449 = vpop.permute.xlu0 %448
        %450 = vrot.lane.b32.xlu0 %v295, 3
        %v451 = vpop.permute.xlu0 %450
        %452 = vrot.lane.b32.xlu0 %v296, 3
        %v453 = vpop.permute.xlu0 %452
        %454 = vrot.lane.b32.xlu0 %v297, 3
        %v455 = vpop.permute.xlu0 %454
        %456 = vrot.lane.b32.xlu0 %v298, 3
        %v457 = vpop.permute.xlu0 %456
        %458 = vrot.lane.b32.xlu0 %v299, 3
        %v459 = vpop.permute.xlu0 %458
        %460 = vrot.lane.b32.xlu0 %v300, 3
        %v461 = vpop.permute.xlu0 %460
        %462 = vrot.lane.b32.xlu0 %v301, 3
        %v463 = vpop.permute.xlu0 %462
        %464 = vrot.lane.b32.xlu0 %v302, 3
        %v465 = vpop.permute.xlu0 %464
        %466 = vrot.lane.b32.xlu0 %v303, 3
        %v467 = vpop.permute.xlu0 %466
        %468 = vrot.lane.b32.xlu0 %v304, 3
        %v469 = vpop.permute.xlu0 %468
        %470 = vrot.lane.b32.xlu0 %v305, 3
        %v471 = vpop.permute.xlu0 %470
        %472 = vrot.lane.b32.xlu0 %v306, 3
        %v473 = vpop.permute.xlu0 %472
        %474 = vrot.lane.b32.xlu0 %v307, 3
        %v475 = vpop.permute.xlu0 %474
        %476 = vrot.lane.b32.xlu0 %v308, 3
        %v477 = vpop.permute.xlu0 %476
        %478 = vrot.lane.b32.xlu0 %v309, 3
        %v479 = vpop.permute.xlu0 %478
        %480 = vrot.lane.b32.xlu0 %v310, 3
        %v481 = vpop.permute.xlu0 %480
        %482 = vrot.lane.b32.xlu0 %v311, 3
        %v483 = vpop.permute.xlu0 %482
        %484 = vrot.lane.b32.xlu0 %v312, 3
        %v485 = vpop.permute.xlu0 %484
        %486 = vrot.lane.b32.xlu0 %v313, 3
        %v487 = vpop.permute.xlu0 %486
        %488 = vrot.lane.b32.xlu0 %v314, 3
        %v489 = vpop.permute.xlu0 %488
        %490 = vrot.lane.b32.xlu0 %v315, 3
        %v491 = vpop.permute.xlu0 %490
        %492 = vrot.lane.b32.xlu0 %v316, 3
        %v493 = vpop.permute.xlu0 %492
        %494 = vrot.lane.b32.xlu0 %v317, 3
        %v495 = vpop.permute.xlu0 %494
        %496 = vrot.lane.b32.xlu0 %v318, 3
        %v497 = vpop.permute.xlu0 %496
        %498 = vrot.lane.b32.xlu0 %v319, 3
        %v499 = vpop.permute.xlu0 %498
        %500 = vrot.lane.b32.xlu0 %v320, 3
        %v501 = vpop.permute.xlu0 %500
        %502 = vrot.lane.b32.xlu0 %v321, 3
        %v503 = vpop.permute.xlu0 %502
        %504 = vrot.lane.b32.xlu0 %v322, 3
        %v505 = vpop.permute.xlu0 %504
        %vm554 = vcmask 48153
        %555 = vst.msk [vmem:[#allocation2 - $0x1] sm:$0xfe] %vm554, %v411
        %vm556 = vcmask 48152
        %557 = vst.msk [vmem:[#allocation2 + $0x7] sm:$0xff] %vm556, %v413
        %vm558 = vcmask 40984
        %559 = vst.msk [vmem:[#allocation2 + $0xf] sm:$0x1] %vm558, %v415
        %560 = vst.msk [vmem:[#allocation2 + $0xf] sm:$0xfe] %vm554, %v417
        %561 = vst.msk [vmem:[#allocation2 + $0x17] sm:$0xff] %vm556, %v419
        %562 = vst.msk [vmem:[#allocation2 + $0x1f] sm:$0x1] %vm558, %v421
        %563 = vst.msk [vmem:[#allocation2 + $0x1f] sm:$0xfe] %vm554, %v423
        %564 = vst.msk [vmem:[#allocation2 + $0x27] sm:$0xff] %vm556, %v425
        %565 = vst.msk [vmem:[#allocation2 + $0x2f] sm:$0x1] %vm558, %v427
        %566 = vst.msk [vmem:[#allocation2 + $0x2f] sm:$0xfe] %vm554, %v429
        %567 = vst.msk [vmem:[#allocation2 + $0x37] sm:$0xff] %vm556, %v431
        %568 = vst.msk [vmem:[#allocation2 + $0x3f] sm:$0x1] %vm558, %v433
        %569 = vst.msk [vmem:[#allocation2 + $0x3f] sm:$0xfe] %vm554, %v435
        %570 = vst.msk [vmem:[#allocation2 + $0x47] sm:$0xff] %vm556, %v437
        %571 = vst.msk [vmem:[#allocation2 + $0x4f] sm:$0x1] %vm558, %v439
        %572 = vst.msk [vmem:[#allocation2 + $0x4f] sm:$0xfe] %vm554, %v441
        %573 = vst.msk [vmem:[#allocation2 + $0x57] sm:$0xff] %vm556, %v443
        %574 = vst.msk [vmem:[#allocation2 + $0x5f] sm:$0x1] %vm558, %v445
        %575 = vst.msk [vmem:[#allocation2 + $0x5f] sm:$0xfe] %vm554, %v447
        %576 = vst.msk [vmem:[#allocation2 + $0x67] sm:$0xff] %vm556, %v449
        %577 = vst.msk [vmem:[#allocation2 + $0x6f] sm:$0x1] %vm558, %v451
        %578 = vst.msk [vmem:[#allocation2 + $0x6f] sm:$0xfe] %vm554, %v453
        %579 = vst.msk [vmem:[#allocation2 + $0x77] sm:$0xff] %vm556, %v455
        %580 = vst.msk [vmem:[#allocation2 + $0x7f] sm:$0x1] %vm558, %v457
        %581 = vst.msk [vmem:[#allocation2 + $0x7f] sm:$0xfe] %vm554, %v459
        %582 = vst.msk [vmem:[#allocation2 + $0x87] sm:$0xff] %vm556, %v461
        %583 = vst.msk [vmem:[#allocation2 + $0x8f] sm:$0x1] %vm558, %v463
        %584 = vst.msk [vmem:[#allocation2 + $0x8f] sm:$0xfe] %vm554, %v465
        %585 = vst.msk [vmem:[#allocation2 + $0x97] sm:$0xff] %vm556, %v467
        %586 = vst.msk [vmem:[#allocation2 + $0x9f] sm:$0x1] %vm558, %v469
        %587 = vst.msk [vmem:[#allocation2 + $0x9f] sm:$0xfe] %vm554, %v471
        %588 = vst.msk [vmem:[#allocation2 + $0xa7] sm:$0xff] %vm556, %v473
        %589 = vst.msk [vmem:[#allocation2 + $0xaf] sm:$0x1] %vm558, %v475
        %590 = vst.msk [vmem:[#allocation2 + $0xaf] sm:$0xfe] %vm554, %v477
        %591 = vst.msk [vmem:[#allocation2 + $0xb7] sm:$0xff] %vm556, %v479
        %592 = vst.msk [vmem:[#allocation2 + $0xbf] sm:$0x1] %vm558, %v481
        %593 = vst.msk [vmem:[#allocation2 + $0xbf] sm:$0xfe] %vm554, %v483
        %594 = vst.msk [vmem:[#allocation2 + $0xc7] sm:$0xff] %vm556, %v485
        %595 = vst.msk [vmem:[#allocation2 + $0xcf] sm:$0x1] %vm558, %v487
        %596 = vst.msk [vmem:[#allocation2 + $0xcf] sm:$0xfe] %vm554, %v489
        %597 = vst.msk [vmem:[#allocation2 + $0xd7] sm:$0xff] %vm556, %v491
        %598 = vst.msk [vmem:[#allocation2 + $0xdf] sm:$0x1] %vm558, %v493
        %599 = vst.msk [vmem:[#allocation2 + $0xdf] sm:$0xfe] %vm554, %v495
        %600 = vst.msk [vmem:[#allocation2 + $0xe7] sm:$0xff] %vm556, %v497
        %601 = vst.msk [vmem:[#allocation2 + $0xef] sm:$0x1] %vm558, %v499
        %602 = vst.msk [vmem:[#allocation2 + $0xef] sm:$0xfe] %vm554, %v501
        %603 = vst.msk [vmem:[#allocation2 + $0xf7] sm:$0xff] %vm556, %v503
        %604 = vst.msk [vmem:[#allocation2 + $0xff] sm:$0x1] %vm558, %v505
        %605 = vrot.lane.b32.xlu0 %v275, 6
        %v606 = vpop.permute.xlu0 %605
        %607 = vrot.lane.b32.xlu0 %v276, 6
        %v608 = vpop.permute.xlu0 %607
        %609 = vrot.lane.b32.xlu0 %v277, 6
        %v610 = vpop.permute.xlu0 %609
        %611 = vrot.lane.b32.xlu0 %v278, 6
        %v612 = vpop.permute.xlu0 %611
        %613 = vrot.lane.b32.xlu0 %v279, 6
        %v614 = vpop.permute.xlu0 %613
        %615 = vrot.lane.b32.xlu0 %v280, 6
        %v616 = vpop.permute.xlu0 %615
        %617 = vrot.lane.b32.xlu0 %v281, 6
        %v618 = vpop.permute.xlu0 %617
        %619 = vrot.lane.b32.xlu0 %v282, 6
        %v620 = vpop.permute.xlu0 %619
        %621 = vrot.lane.b32.xlu0 %v283, 6
        %v622 = vpop.permute.xlu0 %621
        %623 = vrot.lane.b32.xlu0 %v284, 6
        %v624 = vpop.permute.xlu0 %623
        %625 = vrot.lane.b32.xlu0 %v285, 6
        %v626 = vpop.permute.xlu0 %625
        %627 = vrot.lane.b32.xlu0 %v286, 6
        %v628 = vpop.permute.xlu0 %627
        %629 = vrot.lane.b32.xlu0 %v287, 6
        %v630 = vpop.permute.xlu0 %629
        %631 = vrot.lane.b32.xlu0 %v288, 6
        %v632 = vpop.permute.xlu0 %631
        %633 = vrot.lane.b32.xlu0 %v289, 6
        %v634 = vpop.permute.xlu0 %633
        %635 = vrot.lane.b32.xlu0 %v290, 6
        %v636 = vpop.permute.xlu0 %635
        %637 = vrot.lane.b32.xlu0 %v291, 6
        %v638 = vpop.permute.xlu0 %637
        %639 = vrot.lane.b32.xlu0 %v292, 6
        %v640 = vpop.permute.xlu0 %639
        %641 = vrot.lane.b32.xlu0 %v293, 6
        %v642 = vpop.permute.xlu0 %641
        %643 = vrot.lane.b32.xlu0 %v294, 6
        %v644 = vpop.permute.xlu0 %643
        %645 = vrot.lane.b32.xlu0 %v295, 6
        %v646 = vpop.permute.xlu0 %645
        %647 = vrot.lane.b32.xlu0 %v296, 6
        %v648 = vpop.permute.xlu0 %647
        %649 = vrot.lane.b32.xlu0 %v297, 6
        %v650 = vpop.permute.xlu0 %649
        %651 = vrot.lane.b32.xlu0 %v298, 6
        %v652 = vpop.permute.xlu0 %651
        %653 = vrot.lane.b32.xlu0 %v299, 6
        %v654 = vpop.permute.xlu0 %653
        %655 = vrot.lane.b32.xlu0 %v300, 6
        %v656 = vpop.permute.xlu0 %655
        %657 = vrot.lane.b32.xlu0 %v301, 6
        %v658 = vpop.permute.xlu0 %657
        %659 = vrot.lane.b32.xlu0 %v302, 6
        %v660 = vpop.permute.xlu0 %659
        %661 = vrot.lane.b32.xlu0 %v303, 6
        %v662 = vpop.permute.xlu0 %661
        %663 = vrot.lane.b32.xlu0 %v304, 6
        %v664 = vpop.permute.xlu0 %663
        %665 = vrot.lane.b32.xlu0 %v305, 6
        %v666 = vpop.permute.xlu0 %665
        %667 = vrot.lane.b32.xlu0 %v306, 6
        %v668 = vpop.permute.xlu0 %667
        %669 = vrot.lane.b32.xlu0 %v307, 6
        %v670 = vpop.permute.xlu0 %669
        %671 = vrot.lane.b32.xlu0 %v308, 6
        %v672 = vpop.permute.xlu0 %671
        %673 = vrot.lane.b32.xlu0 %v309, 6
        %v674 = vpop.permute.xlu0 %673
        %675 = vrot.lane.b32.xlu0 %v310, 6
        %v676 = vpop.permute.xlu0 %675
        %677 = vrot.lane.b32.xlu0 %v311, 6
        %v678 = vpop.permute.xlu0 %677
        %679 = vrot.lane.b32.xlu0 %v312, 6
        %v680 = vpop.permute.xlu0 %679
        %681 = vrot.lane.b32.xlu0 %v313, 6
        %v682 = vpop.permute.xlu0 %681
        %683 = vrot.lane.b32.xlu0 %v314, 6
        %v684 = vpop.permute.xlu0 %683
        %685 = vrot.lane.b32.xlu0 %v315, 6
        %v686 = vpop.permute.xlu0 %685
        %687 = vrot.lane.b32.xlu0 %v316, 6
        %v688 = vpop.permute.xlu0 %687
        %689 = vrot.lane.b32.xlu0 %v317, 6
        %v690 = vpop.permute.xlu0 %689
        %691 = vrot.lane.b32.xlu0 %v318, 6
        %v692 = vpop.permute.xlu0 %691
        %693 = vrot.lane.b32.xlu0 %v319, 6
        %v694 = vpop.permute.xlu0 %693
        %695 = vrot.lane.b32.xlu0 %v320, 6
        %v696 = vpop.permute.xlu0 %695
        %697 = vrot.lane.b32.xlu0 %v321, 6
        %v698 = vpop.permute.xlu0 %697
        %699 = vrot.lane.b32.xlu0 %v322, 6
        %v700 = vpop.permute.xlu0 %699
        %vm749 = vcmask 72754
        %750 = vst.msk [vmem:[#allocation2 - $0x2] sm:$0xfc] %vm749, %v606
        %vm751 = vcmask 72752
        %752 = vst.msk [vmem:[#allocation2 + $0x6] sm:$0xff] %vm751, %v608
        %vm753 = vcmask 66608
        %754 = vst.msk [vmem:[#allocation2 + $0xe] sm:$0x3] %vm753, %v610
        %755 = vst.msk [vmem:[#allocation2 + $0xe] sm:$0xfc] %vm749, %v612
        %756 = vst.msk [vmem:[#allocation2 + $0x16] sm:$0xff] %vm751, %v614
        %757 = vst.msk [vmem:[#allocation2 + $0x1e] sm:$0x3] %vm753, %v616
        %758 = vst.msk [vmem:[#allocation2 + $0x1e] sm:$0xfc] %vm749, %v618
        %759 = vst.msk [vmem:[#allocation2 + $0x26] sm:$0xff] %vm751, %v620
        %760 = vst.msk [vmem:[#allocation2 + $0x2e] sm:$0x3] %vm753, %v622
        %761 = vst.msk [vmem:[#allocation2 + $0x2e] sm:$0xfc] %vm749, %v624
        %762 = vst.msk [vmem:[#allocation2 + $0x36] sm:$0xff] %vm751, %v626
        %763 = vst.msk [vmem:[#allocation2 + $0x3e] sm:$0x3] %vm753, %v628
        %764 = vst.msk [vmem:[#allocation2 + $0x3e] sm:$0xfc] %vm749, %v630
        %765 = vst.msk [vmem:[#allocation2 + $0x46] sm:$0xff] %vm751, %v632
        %766 = vst.msk [vmem:[#allocation2 + $0x4e] sm:$0x3] %vm753, %v634
        %767 = vst.msk [vmem:[#allocation2 + $0x4e] sm:$0xfc] %vm749, %v636
        %768 = vst.msk [vmem:[#allocation2 + $0x56] sm:$0xff] %vm751, %v638
        %769 = vst.msk [vmem:[#allocation2 + $0x5e] sm:$0x3] %vm753, %v640
        %770 = vst.msk [vmem:[#allocation2 + $0x5e] sm:$0xfc] %vm749, %v642
        %771 = vst.msk [vmem:[#allocation2 + $0x66] sm:$0xff] %vm751, %v644
        %772 = vst.msk [vmem:[#allocation2 + $0x6e] sm:$0x3] %vm753, %v646
        %773 = vst.msk [vmem:[#allocation2 + $0x6e] sm:$0xfc] %vm749, %v648
        %774 = vst.msk [vmem:[#allocation2 + $0x76] sm:$0xff] %vm751, %v650
        %775 = vst.msk [vmem:[#allocation2 + $0x7e] sm:$0x3] %vm753, %v652
        %776 = vst.msk [vmem:[#allocation2 + $0x7e] sm:$0xfc] %vm749, %v654
        %777 = vst.msk [vmem:[#allocation2 + $0x86] sm:$0xff] %vm751, %v656
        %778 = vst.msk [vmem:[#allocation2 + $0x8e] sm:$0x3] %vm753, %v658
        %779 = vst.msk [vmem:[#allocation2 + $0x8e] sm:$0xfc] %vm749, %v660
        %780 = vst.msk [vmem:[#allocation2 + $0x96] sm:$0xff] %vm751, %v662
        %781 = vst.msk [vmem:[#allocation2 + $0x9e] sm:$0x3] %vm753, %v664
        %782 = vst.msk [vmem:[#allocation2 + $0x9e] sm:$0xfc] %vm749, %v666
        %783 = vst.msk [vmem:[#allocation2 + $0xa6] sm:$0xff] %vm751, %v668
        %784 = vst.msk [vmem:[#allocation2 + $0xae] sm:$0x3] %vm753, %v670
        %785 = vst.msk [vmem:[#allocation2 + $0xae] sm:$0xfc] %vm749, %v672
        %786 = vst.msk [vmem:[#allocation2 + $0xb6] sm:$0xff] %vm751, %v674
        %787 = vst.msk [vmem:[#allocation2 + $0xbe] sm:$0x3] %vm753, %v676
        %788 = vst.msk [vmem:[#allocation2 + $0xbe] sm:$0xfc] %vm749, %v678
        %789 = vst.msk [vmem:[#allocation2 + $0xc6] sm:$0xff] %vm751, %v680
        %790 = vst.msk [vmem:[#allocation2 + $0xce] sm:$0x3] %vm753, %v682
        %791 = vst.msk [vmem:[#allocation2 + $0xce] sm:$0xfc] %vm749, %v684
        %792 = vst.msk [vmem:[#allocation2 + $0xd6] sm:$0xff] %vm751, %v686
        %793 = vst.msk [vmem:[#allocation2 + $0xde] sm:$0x3] %vm753, %v688
        %794 = vst.msk [vmem:[#allocation2 + $0xde] sm:$0xfc] %vm749, %v690
        %795 = vst.msk [vmem:[#allocation2 + $0xe6] sm:$0xff] %vm751, %v692
        %796 = vst.msk [vmem:[#allocation2 + $0xee] sm:$0x3] %vm753, %v694
        %797 = vst.msk [vmem:[#allocation2 + $0xee] sm:$0xfc] %vm749, %v696
        %798 = vst.msk [vmem:[#allocation2 + $0xf6] sm:$0xff] %vm751, %v698
        %799 = vst.msk [vmem:[#allocation2 + $0xfe] sm:$0x3] %vm753, %v700
        %802 = vrot.lane.b32.xlu0 %v278, 9
        %v803 = vpop.permute.xlu0 %802
        %804 = vrot.lane.b32.xlu0 %v279, 9
        %v805 = vpop.permute.xlu0 %804
        %806 = vrot.lane.b32.xlu0 %v281, 9
        %v807 = vpop.permute.xlu0 %806
        %808 = vrot.lane.b32.xlu0 %v282, 9
        %v809 = vpop.permute.xlu0 %808
        %810 = vrot.lane.b32.xlu0 %v284, 9
        %v811 = vpop.permute.xlu0 %810
        %812 = vrot.lane.b32.xlu0 %v285, 9
        %v813 = vpop.permute.xlu0 %812
        %814 = vrot.lane.b32.xlu0 %v287, 9
        %v815 = vpop.permute.xlu0 %814
        %816 = vrot.lane.b32.xlu0 %v288, 9
        %v817 = vpop.permute.xlu0 %816
        %818 = vrot.lane.b32.xlu0 %v290, 9
        %v819 = vpop.permute.xlu0 %818
        %820 = vrot.lane.b32.xlu0 %v291, 9
        %v821 = vpop.permute.xlu0 %820
        %822 = vrot.lane.b32.xlu0 %v293, 9
        %v823 = vpop.permute.xlu0 %822
        %824 = vrot.lane.b32.xlu0 %v294, 9
        %v825 = vpop.permute.xlu0 %824
        %826 = vrot.lane.b32.xlu0 %v296, 9
        %v827 = vpop.permute.xlu0 %826
        %828 = vrot.lane.b32.xlu0 %v297, 9
        %v829 = vpop.permute.xlu0 %828
        %830 = vrot.lane.b32.xlu0 %v299, 9
        %v831 = vpop.permute.xlu0 %830
        %832 = vrot.lane.b32.xlu0 %v300, 9
        %v833 = vpop.permute.xlu0 %832
        %834 = vrot.lane.b32.xlu0 %v302, 9
        %v835 = vpop.permute.xlu0 %834
        %836 = vrot.lane.b32.xlu0 %v303, 9
        %v837 = vpop.permute.xlu0 %836
        %838 = vrot.lane.b32.xlu0 %v305, 9
        %v839 = vpop.permute.xlu0 %838
        %840 = vrot.lane.b32.xlu0 %v306, 9
        %v841 = vpop.permute.xlu0 %840
        %842 = vrot.lane.b32.xlu0 %v308, 9
        %v843 = vpop.permute.xlu0 %842
        %844 = vrot.lane.b32.xlu0 %v309, 9
        %v845 = vpop.permute.xlu0 %844
        %846 = vrot.lane.b32.xlu0 %v311, 9
        %v847 = vpop.permute.xlu0 %846
        %848 = vrot.lane.b32.xlu0 %v312, 9
        %v849 = vpop.permute.xlu0 %848
        %850 = vrot.lane.b32.xlu0 %v314, 9
        %v851 = vpop.permute.xlu0 %850
        %852 = vrot.lane.b32.xlu0 %v315, 9
        %v853 = vpop.permute.xlu0 %852
        %854 = vrot.lane.b32.xlu0 %v317, 9
        %v855 = vpop.permute.xlu0 %854
        %856 = vrot.lane.b32.xlu0 %v318, 9
        %v857 = vpop.permute.xlu0 %856
        %858 = vrot.lane.b32.xlu0 %v320, 9
        %v859 = vpop.permute.xlu0 %858
        %860 = vrot.lane.b32.xlu0 %v321, 9
        %v861 = vpop.permute.xlu0 %860
        %862 = vrot.lane.b32.xlu0 %v323, 9
        %v863 = vpop.permute.xlu0 %862
        %864 = vrot.lane.b32.xlu0 %v324, 9
        %v865 = vpop.permute.xlu0 %864
        %vm898 = vcmask 97352
        %899 = vst.msk [vmem:[#allocation2] sm:$0xff] %vm898, %v803
        %900 = vst.msk [vmem:[#allocation2 + $0x8] sm:$0xff] %vm898, %v805
        %901 = vst.msk [vmem:[#allocation2 + $0x10] sm:$0xff] %vm898, %v807
        %902 = vst.msk [vmem:[#allocation2 + $0x18] sm:$0xff] %vm898, %v809
        %903 = vst.msk [vmem:[#allocation2 + $0x20] sm:$0xff] %vm898, %v811
        %904 = vst.msk [vmem:[#allocation2 + $0x28] sm:$0xff] %vm898, %v813
        %905 = vst.msk [vmem:[#allocation2 + $0x30] sm:$0xff] %vm898, %v815
        %906 = vst.msk [vmem:[#allocation2 + $0x38] sm:$0xff] %vm898, %v817
        %907 = vst.msk [vmem:[#allocation2 + $0x40] sm:$0xff] %vm898, %v819
        %908 = vst.msk [vmem:[#allocation2 + $0x48] sm:$0xff] %vm898, %v821
        %909 = vst.msk [vmem:[#allocation2 + $0x50] sm:$0xff] %vm898, %v823
        %910 = vst.msk [vmem:[#allocation2 + $0x58] sm:$0xff] %vm898, %v825
        %911 = vst.msk [vmem:[#allocation2 + $0x60] sm:$0xff] %vm898, %v827
        %912 = vst.msk [vmem:[#allocation2 + $0x68] sm:$0xff] %vm898, %v829
        %913 = vst.msk [vmem:[#allocation2 + $0x70] sm:$0xff] %vm898, %v831
        %914 = vst.msk [vmem:[#allocation2 + $0x78] sm:$0xff] %vm898, %v833
        %915 = vst.msk [vmem:[#allocation2 + $0x80] sm:$0xff] %vm898, %v835
        %916 = vst.msk [vmem:[#allocation2 + $0x88] sm:$0xff] %vm898, %v837
        %917 = vst.msk [vmem:[#allocation2 + $0x90] sm:$0xff] %vm898, %v839
        %918 = vst.msk [vmem:[#allocation2 + $0x98] sm:$0xff] %vm898, %v841
        %919 = vst.msk [vmem:[#allocation2 + $0xa0] sm:$0xff] %vm898, %v843
        %920 = vst.msk [vmem:[#allocation2 + $0xa8] sm:$0xff] %vm898, %v845
        %921 = vst.msk [vmem:[#allocation2 + $0xb0] sm:$0xff] %vm898, %v847
        %922 = vst.msk [vmem:[#allocation2 + $0xb8] sm:$0xff] %vm898, %v849
        %923 = vst.msk [vmem:[#allocation2 + $0xc0] sm:$0xff] %vm898, %v851
        %924 = vst.msk [vmem:[#allocation2 + $0xc8] sm:$0xff] %vm898, %v853
        %925 = vst.msk [vmem:[#allocation2 + $0xd0] sm:$0xff] %vm898, %v855
        %926 = vst.msk [vmem:[#allocation2 + $0xd8] sm:$0xff] %vm898, %v857
        %927 = vst.msk [vmem:[#allocation2 + $0xe0] sm:$0xff] %vm898, %v859
        %928 = vst.msk [vmem:[#allocation2 + $0xe8] sm:$0xff] %vm898, %v861
        %929 = vst.msk [vmem:[#allocation2 + $0xf0] sm:$0xff] %vm898, %v863
        %930 = vst.msk [vmem:[#allocation2 + $0xf8] sm:$0xff] %vm898, %v865
        %932 = vrot.lane.b32.xlu0 %v278, 12
        %v933 = vpop.permute.xlu0 %932
        %934 = vrot.lane.b32.xlu0 %v279, 12
        %v935 = vpop.permute.xlu0 %934
        %936 = vrot.lane.b32.xlu0 %v280, 12
        %v937 = vpop.permute.xlu0 %936
        %938 = vrot.lane.b32.xlu0 %v281, 12
        %v939 = vpop.permute.xlu0 %938
        %940 = vrot.lane.b32.xlu0 %v282, 12
        %v941 = vpop.permute.xlu0 %940
        %942 = vrot.lane.b32.xlu0 %v283, 12
        %v943 = vpop.permute.xlu0 %942
        %944 = vrot.lane.b32.xlu0 %v284, 12
        %v945 = vpop.permute.xlu0 %944
        %946 = vrot.lane.b32.xlu0 %v285, 12
        %v947 = vpop.permute.xlu0 %946
        %948 = vrot.lane.b32.xlu0 %v286, 12
        %v949 = vpop.permute.xlu0 %948
        %950 = vrot.lane.b32.xlu0 %v287, 12
        %v951 = vpop.permute.xlu0 %950
        %952 = vrot.lane.b32.xlu0 %v288, 12
        %v953 = vpop.permute.xlu0 %952
        %954 = vrot.lane.b32.xlu0 %v289, 12
        %v955 = vpop.permute.xlu0 %954
        %956 = vrot.lane.b32.xlu0 %v290, 12
        %v957 = vpop.permute.xlu0 %956
        %958 = vrot.lane.b32.xlu0 %v291, 12
        %v959 = vpop.permute.xlu0 %958
        %960 = vrot.lane.b32.xlu0 %v292, 12
        %v961 = vpop.permute.xlu0 %960
        %962 = vrot.lane.b32.xlu0 %v293, 12
        %v963 = vpop.permute.xlu0 %962
        %964 = vrot.lane.b32.xlu0 %v294, 12
        %v965 = vpop.permute.xlu0 %964
        %966 = vrot.lane.b32.xlu0 %v295, 12
        %v967 = vpop.permute.xlu0 %966
        %968 = vrot.lane.b32.xlu0 %v296, 12
        %v969 = vpop.permute.xlu0 %968
        %970 = vrot.lane.b32.xlu0 %v297, 12
        %v971 = vpop.permute.xlu0 %970
        %972 = vrot.lane.b32.xlu0 %v298, 12
        %v973 = vpop.permute.xlu0 %972
        %974 = vrot.lane.b32.xlu0 %v299, 12
        %v975 = vpop.permute.xlu0 %974
        %976 = vrot.lane.b32.xlu0 %v300, 12
        %v977 = vpop.permute.xlu0 %976
        %978 = vrot.lane.b32.xlu0 %v301, 12
        %v979 = vpop.permute.xlu0 %978
        %980 = vrot.lane.b32.xlu0 %v302, 12
        %v981 = vpop.permute.xlu0 %980
        %982 = vrot.lane.b32.xlu0 %v303, 12
        %v983 = vpop.permute.xlu0 %982
        %984 = vrot.lane.b32.xlu0 %v304, 12
        %v985 = vpop.permute.xlu0 %984
        %986 = vrot.lane.b32.xlu0 %v305, 12
        %v987 = vpop.permute.xlu0 %986
        %988 = vrot.lane.b32.xlu0 %v306, 12
        %v989 = vpop.permute.xlu0 %988
        %990 = vrot.lane.b32.xlu0 %v307, 12
        %v991 = vpop.permute.xlu0 %990
        %992 = vrot.lane.b32.xlu0 %v308, 12
        %v993 = vpop.permute.xlu0 %992
        %994 = vrot.lane.b32.xlu0 %v309, 12
        %v995 = vpop.permute.xlu0 %994
        %996 = vrot.lane.b32.xlu0 %v310, 12
        %v997 = vpop.permute.xlu0 %996
        %998 = vrot.lane.b32.xlu0 %v311, 12
        %v999 = vpop.permute.xlu0 %998
        %1000 = vrot.lane.b32.xlu0 %v312, 12
        %v1001 = vpop.permute.xlu0 %1000
        %1002 = vrot.lane.b32.xlu0 %v313, 12
        %v1003 = vpop.permute.xlu0 %1002
        %1004 = vrot.lane.b32.xlu0 %v314, 12
        %v1005 = vpop.permute.xlu0 %1004
        %1006 = vrot.lane.b32.xlu0 %v315, 12
        %v1007 = vpop.permute.xlu0 %1006
        %1008 = vrot.lane.b32.xlu0 %v316, 12
        %v1009 = vpop.permute.xlu0 %1008
        %1010 = vrot.lane.b32.xlu0 %v317, 12
        %v1011 = vpop.permute.xlu0 %1010
        %1012 = vrot.lane.b32.xlu0 %v318, 12
        %v1013 = vpop.permute.xlu0 %1012
        %1014 = vrot.lane.b32.xlu0 %v319, 12
        %v1015 = vpop.permute.xlu0 %1014
        %1016 = vrot.lane.b32.xlu0 %v320, 12
        %v1017 = vpop.permute.xlu0 %1016
        %1018 = vrot.lane.b32.xlu0 %v321, 12
        %v1019 = vpop.permute.xlu0 %1018
        %1020 = vrot.lane.b32.xlu0 %v322, 12
        %v1021 = vpop.permute.xlu0 %1020
        %1022 = vrot.lane.b32.xlu0 %v323, 12
        %v1023 = vpop.permute.xlu0 %1022
        %1024 = vrot.lane.b32.xlu0 %v324, 12
        %v1025 = vpop.permute.xlu0 %1024
        %1026 = vrot.lane.b32.xlu0 %v325, 12
        %v1027 = vpop.permute.xlu0 %1026
        %vm1076 = vcmask 121953
        %1077 = vst.msk [vmem:[#allocation2 - $0x1] sm:$0xfe] %vm1076, %v933
        %vm1078 = vcmask 121952
        %1079 = vst.msk [vmem:[#allocation2 + $0x7] sm:$0xff] %vm1078, %v935
        %vm1080 = vcmask 114784
        %1081 = vst.msk [vmem:[#allocation2 + $0xf] sm:$0x1] %vm1080, %v937
        %1082 = vst.msk [vmem:[#allocation2 + $0xf] sm:$0xfe] %vm1076, %v939
        %1083 = vst.msk [vmem:[#allocation2 + $0x17] sm:$0xff] %vm1078, %v941
        %1084 = vst.msk [vmem:[#allocation2 + $0x1f] sm:$0x1] %vm1080, %v943
        %1085 = vst.msk [vmem:[#allocation2 + $0x1f] sm:$0xfe] %vm1076, %v945
        %1086 = vst.msk [vmem:[#allocation2 + $0x27] sm:$0xff] %vm1078, %v947
        %1087 = vst.msk [vmem:[#allocation2 + $0x2f] sm:$0x1] %vm1080, %v949
        %1088 = vst.msk [vmem:[#allocation2 + $0x2f] sm:$0xfe] %vm1076, %v951
        %1089 = vst.msk [vmem:[#allocation2 + $0x37] sm:$0xff] %vm1078, %v953
        %1090 = vst.msk [vmem:[#allocation2 + $0x3f] sm:$0x1] %vm1080, %v955
        %1091 = vst.msk [vmem:[#allocation2 + $0x3f] sm:$0xfe] %vm1076, %v957
        %1092 = vst.msk [vmem:[#allocation2 + $0x47] sm:$0xff] %vm1078, %v959
        %1093 = vst.msk [vmem:[#allocation2 + $0x4f] sm:$0x1] %vm1080, %v961
        %1094 = vst.msk [vmem:[#allocation2 + $0x4f] sm:$0xfe] %vm1076, %v963
        %1095 = vst.msk [vmem:[#allocation2 + $0x57] sm:$0xff] %vm1078, %v965
        %1096 = vst.msk [vmem:[#allocation2 + $0x5f] sm:$0x1] %vm1080, %v967
        %1097 = vst.msk [vmem:[#allocation2 + $0x5f] sm:$0xfe] %vm1076, %v969
        %1098 = vst.msk [vmem:[#allocation2 + $0x67] sm:$0xff] %vm1078, %v971
        %1099 = vst.msk [vmem:[#allocation2 + $0x6f] sm:$0x1] %vm1080, %v973
        %1100 = vst.msk [vmem:[#allocation2 + $0x6f] sm:$0xfe] %vm1076, %v975
        %1101 = vst.msk [vmem:[#allocation2 + $0x77] sm:$0xff] %vm1078, %v977
        %1102 = vst.msk [vmem:[#allocation2 + $0x7f] sm:$0x1] %vm1080, %v979
        %1103 = vst.msk [vmem:[#allocation2 + $0x7f] sm:$0xfe] %vm1076, %v981
        %1104 = vst.msk [vmem:[#allocation2 + $0x87] sm:$0xff] %vm1078, %v983
        %1105 = vst.msk [vmem:[#allocation2 + $0x8f] sm:$0x1] %vm1080, %v985
        %1106 = vst.msk [vmem:[#allocation2 + $0x8f] sm:$0xfe] %vm1076, %v987
        %1107 = vst.msk [vmem:[#allocation2 + $0x97] sm:$0xff] %vm1078, %v989
        %1108 = vst.msk [vmem:[#allocation2 + $0x9f] sm:$0x1] %vm1080, %v991
        %1109 = vst.msk [vmem:[#allocation2 + $0x9f] sm:$0xfe] %vm1076, %v993
        %1110 = vst.msk [vmem:[#allocation2 + $0xa7] sm:$0xff] %vm1078, %v995
        %1111 = vst.msk [vmem:[#allocation2 + $0xaf] sm:$0x1] %vm1080, %v997
        %1112 = vst.msk [vmem:[#allocation2 + $0xaf] sm:$0xfe] %vm1076, %v999
        %1113 = vst.msk [vmem:[#allocation2 + $0xb7] sm:$0xff] %vm1078, %v1001
        %1114 = vst.msk [vmem:[#allocation2 + $0xbf] sm:$0x1] %vm1080, %v1003
        %1115 = vst.msk [vmem:[#allocation2 + $0xbf] sm:$0xfe] %vm1076, %v1005
        %1116 = vst.msk [vmem:[#allocation2 + $0xc7] sm:$0xff] %vm1078, %v1007
        %1117 = vst.msk [vmem:[#allocation2 + $0xcf] sm:$0x1] %vm1080, %v1009
        %1118 = vst.msk [vmem:[#allocation2 + $0xcf] sm:$0xfe] %vm1076, %v1011
        %1119 = vst.msk [vmem:[#allocation2 + $0xd7] sm:$0xff] %vm1078, %v1013
        %1120 = vst.msk [vmem:[#allocation2 + $0xdf] sm:$0x1] %vm1080, %v1015
        %1121 = vst.msk [vmem:[#allocation2 + $0xdf] sm:$0xfe] %vm1076, %v1017
        %1122 = vst.msk [vmem:[#allocation2 + $0xe7] sm:$0xff] %vm1078, %v1019
        %1123 = vst.msk [vmem:[#allocation2 + $0xef] sm:$0x1] %vm1080, %v1021
        %1124 = vst.msk [vmem:[#allocation2 + $0xef] sm:$0xfe] %vm1076, %v1023
        %1125 = vst.msk [vmem:[#allocation2 + $0xf7] sm:$0xff] %vm1078, %v1025
        %1126 = vst.msk [vmem:[#allocation2 + $0xff] sm:$0x1] %vm1080, %v1027
        %1127 = vrot.lane.b32.xlu0 %v278, 15
        %v1128 = vpop.permute.xlu0 %1127
        %1129 = vrot.lane.b32.xlu0 %v279, 15
        %v1130 = vpop.permute.xlu0 %1129
        %1131 = vrot.lane.b32.xlu0 %v280, 15
        %v1132 = vpop.permute.xlu0 %1131
        %1133 = vrot.lane.b32.xlu0 %v281, 15
        %v1134 = vpop.permute.xlu0 %1133
        %1135 = vrot.lane.b32.xlu0 %v282, 15
        %v1136 = vpop.permute.xlu0 %1135
        %1137 = vrot.lane.b32.xlu0 %v283, 15
        %v1138 = vpop.permute.xlu0 %1137
        %1139 = vrot.lane.b32.xlu0 %v284, 15
        %v1140 = vpop.permute.xlu0 %1139
        %1141 = vrot.lane.b32.xlu0 %v285, 15
        %v1142 = vpop.permute.xlu0 %1141
        %1143 = vrot.lane.b32.xlu0 %v286, 15
        %v1144 = vpop.permute.xlu0 %1143
        %1145 = vrot.lane.b32.xlu0 %v287, 15
        %v1146 = vpop.permute.xlu0 %1145
        %1147 = vrot.lane.b32.xlu0 %v288, 15
        %v1148 = vpop.permute.xlu0 %1147
        %1149 = vrot.lane.b32.xlu0 %v289, 15
        %v1150 = vpop.permute.xlu0 %1149
        %1151 = vrot.lane.b32.xlu0 %v290, 15
        %v1152 = vpop.permute.xlu0 %1151
        %1153 = vrot.lane.b32.xlu0 %v291, 15
        %v1154 = vpop.permute.xlu0 %1153
        %1155 = vrot.lane.b32.xlu0 %v292, 15
        %v1156 = vpop.permute.xlu0 %1155
        %1157 = vrot.lane.b32.xlu0 %v293, 15
        %v1158 = vpop.permute.xlu0 %1157
        %1159 = vrot.lane.b32.xlu0 %v294, 15
        %v1160 = vpop.permute.xlu0 %1159
        %1161 = vrot.lane.b32.xlu0 %v295, 15
        %v1162 = vpop.permute.xlu0 %1161
        %1163 = vrot.lane.b32.xlu0 %v296, 15
        %v1164 = vpop.permute.xlu0 %1163
        %1165 = vrot.lane.b32.xlu0 %v297, 15
        %v1166 = vpop.permute.xlu0 %1165
        %1167 = vrot.lane.b32.xlu0 %v298, 15
        %v1168 = vpop.permute.xlu0 %1167
        %1169 = vrot.lane.b32.xlu0 %v299, 15
        %v1170 = vpop.permute.xlu0 %1169
        %1171 = vrot.lane.b32.xlu0 %v300, 15
        %v1172 = vpop.permute.xlu0 %1171
        %1173 = vrot.lane.b32.xlu0 %v301, 15
        %v1174 = vpop.permute.xlu0 %1173
        %1175 = vrot.lane.b32.xlu0 %v302, 15
        %v1176 = vpop.permute.xlu0 %1175
        %1177 = vrot.lane.b32.xlu0 %v303, 15
        %v1178 = vpop.permute.xlu0 %1177
        %1179 = vrot.lane.b32.xlu0 %v304, 15
        %v1180 = vpop.permute.xlu0 %1179
        %1181 = vrot.lane.b32.xlu0 %v305, 15
        %v1182 = vpop.permute.xlu0 %1181
        %1183 = vrot.lane.b32.xlu0 %v306, 15
        %v1184 = vpop.permute.xlu0 %1183
        %1185 = vrot.lane.b32.xlu0 %v307, 15
        %v1186 = vpop.permute.xlu0 %1185
        %1187 = vrot.lane.b32.xlu0 %v308, 15
        %v1188 = vpop.permute.xlu0 %1187
        %1189 = vrot.lane.b32.xlu0 %v309, 15
        %v1190 = vpop.permute.xlu0 %1189
        %1191 = vrot.lane.b32.xlu0 %v310, 15
        %v1192 = vpop.permute.xlu0 %1191
        %1193 = vrot.lane.b32.xlu0 %v311, 15
        %v1194 = vpop.permute.xlu0 %1193
        %1195 = vrot.lane.b32.xlu0 %v312, 15
        %v1196 = vpop.permute.xlu0 %1195
        %1197 = vrot.lane.b32.xlu0 %v313, 15
        %v1198 = vpop.permute.xlu0 %1197
        %1199 = vrot.lane.b32.xlu0 %v314, 15
        %v1200 = vpop.permute.xlu0 %1199
        %1201 = vrot.lane.b32.xlu0 %v315, 15
        %v1202 = vpop.permute.xlu0 %1201
        %1203 = vrot.lane.b32.xlu0 %v316, 15
        %v1204 = vpop.permute.xlu0 %1203
        %1205 = vrot.lane.b32.xlu0 %v317, 15
        %v1206 = vpop.permute.xlu0 %1205
        %1207 = vrot.lane.b32.xlu0 %v318, 15
        %v1208 = vpop.permute.xlu0 %1207
        %1209 = vrot.lane.b32.xlu0 %v319, 15
        %v1210 = vpop.permute.xlu0 %1209
        %1211 = vrot.lane.b32.xlu0 %v320, 15
        %v1212 = vpop.permute.xlu0 %1211
        %1213 = vrot.lane.b32.xlu0 %v321, 15
        %v1214 = vpop.permute.xlu0 %1213
        %1215 = vrot.lane.b32.xlu0 %v322, 15
        %v1216 = vpop.permute.xlu0 %1215
        %1217 = vrot.lane.b32.xlu0 %v323, 15
        %v1218 = vpop.permute.xlu0 %1217
        %1219 = vrot.lane.b32.xlu0 %v324, 15
        %v1220 = vpop.permute.xlu0 %1219
        %1221 = vrot.lane.b32.xlu0 %v325, 15
        %v1222 = vpop.permute.xlu0 %1221
        %vm1271 = vcmask 146554
        %1272 = vst.msk [vmem:[#allocation2 - $0x2] sm:$0xfc] %vm1271, %v1128
        %vm1273 = vcmask 146552
        %1274 = vst.msk [vmem:[#allocation2 + $0x6] sm:$0xff] %vm1273, %v1130
        %vm1275 = vcmask 140408
        %1276 = vst.msk [vmem:[#allocation2 + $0xe] sm:$0x3] %vm1275, %v1132
        %1277 = vst.msk [vmem:[#allocation2 + $0xe] sm:$0xfc] %vm1271, %v1134
        %1278 = vst.msk [vmem:[#allocation2 + $0x16] sm:$0xff] %vm1273, %v1136
        %1279 = vst.msk [vmem:[#allocation2 + $0x1e] sm:$0x3] %vm1275, %v1138
        %1280 = vst.msk [vmem:[#allocation2 + $0x1e] sm:$0xfc] %vm1271, %v1140
        %1281 = vst.msk [vmem:[#allocation2 + $0x26] sm:$0xff] %vm1273, %v1142
        %1282 = vst.msk [vmem:[#allocation2 + $0x2e] sm:$0x3] %vm1275, %v1144
        %1283 = vst.msk [vmem:[#allocation2 + $0x2e] sm:$0xfc] %vm1271, %v1146
        %1284 = vst.msk [vmem:[#allocation2 + $0x36] sm:$0xff] %vm1273, %v1148
        %1285 = vst.msk [vmem:[#allocation2 + $0x3e] sm:$0x3] %vm1275, %v1150
        %1286 = vst.msk [vmem:[#allocation2 + $0x3e] sm:$0xfc] %vm1271, %v1152
        %1287 = vst.msk [vmem:[#allocation2 + $0x46] sm:$0xff] %vm1273, %v1154
        %1288 = vst.msk [vmem:[#allocation2 + $0x4e] sm:$0x3] %vm1275, %v1156
        %1289 = vst.msk [vmem:[#allocation2 + $0x4e] sm:$0xfc] %vm1271, %v1158
        %1290 = vst.msk [vmem:[#allocation2 + $0x56] sm:$0xff] %vm1273, %v1160
        %1291 = vst.msk [vmem:[#allocation2 + $0x5e] sm:$0x3] %vm1275, %v1162
        %1292 = vst.msk [vmem:[#allocation2 + $0x5e] sm:$0xfc] %vm1271, %v1164
        %1293 = vst.msk [vmem:[#allocation2 + $0x66] sm:$0xff] %vm1273, %v1166
        %1294 = vst.msk [vmem:[#allocation2 + $0x6e] sm:$0x3] %vm1275, %v1168
        %1295 = vst.msk [vmem:[#allocation2 + $0x6e] sm:$0xfc] %vm1271, %v1170
        %1296 = vst.msk [vmem:[#allocation2 + $0x76] sm:$0xff] %vm1273, %v1172
        %1297 = vst.msk [vmem:[#allocation2 + $0x7e] sm:$0x3] %vm1275, %v1174
        %1298 = vst.msk [vmem:[#allocation2 + $0x7e] sm:$0xfc] %vm1271, %v1176
        %1299 = vst.msk [vmem:[#allocation2 + $0x86] sm:$0xff] %vm1273, %v1178
        %1300 = vst.msk [vmem:[#allocation2 + $0x8e] sm:$0x3] %vm1275, %v1180
        %1301 = vst.msk [vmem:[#allocation2 + $0x8e] sm:$0xfc] %vm1271, %v1182
        %1302 = vst.msk [vmem:[#allocation2 + $0x96] sm:$0xff] %vm1273, %v1184
        %1303 = vst.msk [vmem:[#allocation2 + $0x9e] sm:$0x3] %vm1275, %v1186
        %1304 = vst.msk [vmem:[#allocation2 + $0x9e] sm:$0xfc] %vm1271, %v1188
        %1305 = vst.msk [vmem:[#allocation2 + $0xa6] sm:$0xff] %vm1273, %v1190
        %1306 = vst.msk [vmem:[#allocation2 + $0xae] sm:$0x3] %vm1275, %v1192
        %1307 = vst.msk [vmem:[#allocation2 + $0xae] sm:$0xfc] %vm1271, %v1194
        %1308 = vst.msk [vmem:[#allocation2 + $0xb6] sm:$0xff] %vm1273, %v1196
        %1309 = vst.msk [vmem:[#allocation2 + $0xbe] sm:$0x3] %vm1275, %v1198
        %1310 = vst.msk [vmem:[#allocation2 + $0xbe] sm:$0xfc] %vm1271, %v1200
        %1311 = vst.msk [vmem:[#allocation2 + $0xc6] sm:$0xff] %vm1273, %v1202
        %1312 = vst.msk [vmem:[#allocation2 + $0xce] sm:$0x3] %vm1275, %v1204
        %1313 = vst.msk [vmem:[#allocation2 + $0xce] sm:$0xfc] %vm1271, %v1206
        %1314 = vst.msk [vmem:[#allocation2 + $0xd6] sm:$0xff] %vm1273, %v1208
        %1315 = vst.msk [vmem:[#allocation2 + $0xde] sm:$0x3] %vm1275, %v1210
        %1316 = vst.msk [vmem:[#allocation2 + $0xde] sm:$0xfc] %vm1271, %v1212
        %1317 = vst.msk [vmem:[#allocation2 + $0xe6] sm:$0xff] %vm1273, %v1214
        %1318 = vst.msk [vmem:[#allocation2 + $0xee] sm:$0x3] %vm1275, %v1216
        %1319 = vst.msk [vmem:[#allocation2 + $0xee] sm:$0xfc] %vm1271, %v1218
        %1320 = vst.msk [vmem:[#allocation2 + $0xf6] sm:$0xff] %vm1273, %v1220
        %1321 = vst.msk [vmem:[#allocation2 + $0xfe] sm:$0x3] %vm1275, %v1222
        %1324 = vrot.lane.b32.xlu0 %v281, 18
        %v1325 = vpop.permute.xlu0 %1324
        %1326 = vrot.lane.b32.xlu0 %v282, 18
        %v1327 = vpop.permute.xlu0 %1326
        %1328 = vrot.lane.b32.xlu0 %v284, 18
        %v1329 = vpop.permute.xlu0 %1328
        %1330 = vrot.lane.b32.xlu0 %v285, 18
        %v1331 = vpop.permute.xlu0 %1330
        %1332 = vrot.lane.b32.xlu0 %v287, 18
        %v1333 = vpop.permute.xlu0 %1332
        %1334 = vrot.lane.b32.xlu0 %v288, 18
        %v1335 = vpop.permute.xlu0 %1334
        %1336 = vrot.lane.b32.xlu0 %v290, 18
        %v1337 = vpop.permute.xlu0 %1336
        %1338 = vrot.lane.b32.xlu0 %v291, 18
        %v1339 = vpop.permute.xlu0 %1338
        %1340 = vrot.lane.b32.xlu0 %v293, 18
        %v1341 = vpop.permute.xlu0 %1340
        %1342 = vrot.lane.b32.xlu0 %v294, 18
        %v1343 = vpop.permute.xlu0 %1342
        %1344 = vrot.lane.b32.xlu0 %v296, 18
        %v1345 = vpop.permute.xlu0 %1344
        %1346 = vrot.lane.b32.xlu0 %v297, 18
        %v1347 = vpop.permute.xlu0 %1346
        %1348 = vrot.lane.b32.xlu0 %v299, 18
        %v1349 = vpop.permute.xlu0 %1348
        %1350 = vrot.lane.b32.xlu0 %v300, 18
        %v1351 = vpop.permute.xlu0 %1350
        %1352 = vrot.lane.b32.xlu0 %v302, 18
        %v1353 = vpop.permute.xlu0 %1352
        %1354 = vrot.lane.b32.xlu0 %v303, 18
        %v1355 = vpop.permute.xlu0 %1354
        %1356 = vrot.lane.b32.xlu0 %v305, 18
        %v1357 = vpop.permute.xlu0 %1356
        %1358 = vrot.lane.b32.xlu0 %v306, 18
        %v1359 = vpop.permute.xlu0 %1358
        %1360 = vrot.lane.b32.xlu0 %v308, 18
        %v1361 = vpop.permute.xlu0 %1360
        %1362 = vrot.lane.b32.xlu0 %v309, 18
        %v1363 = vpop.permute.xlu0 %1362
        %1364 = vrot.lane.b32.xlu0 %v311, 18
        %v1365 = vpop.permute.xlu0 %1364
        %1366 = vrot.lane.b32.xlu0 %v312, 18
        %v1367 = vpop.permute.xlu0 %1366
        %1368 = vrot.lane.b32.xlu0 %v314, 18
        %v1369 = vpop.permute.xlu0 %1368
        %1370 = vrot.lane.b32.xlu0 %v315, 18
        %v1371 = vpop.permute.xlu0 %1370
        %1372 = vrot.lane.b32.xlu0 %v317, 18
        %v1373 = vpop.permute.xlu0 %1372
        %1374 = vrot.lane.b32.xlu0 %v318, 18
        %v1375 = vpop.permute.xlu0 %1374
        %1376 = vrot.lane.b32.xlu0 %v320, 18
        %v1377 = vpop.permute.xlu0 %1376
        %1378 = vrot.lane.b32.xlu0 %v321, 18
        %v1379 = vpop.permute.xlu0 %1378
        %1380 = vrot.lane.b32.xlu0 %v323, 18
        %v1381 = vpop.permute.xlu0 %1380
        %1382 = vrot.lane.b32.xlu0 %v324, 18
        %v1383 = vpop.permute.xlu0 %1382
        %1384 = vrot.lane.b32.xlu0 %v326, 18
        %v1385 = vpop.permute.xlu0 %1384
        %1386 = vrot.lane.b32.xlu0 %v327, 18
        %v1387 = vpop.permute.xlu0 %1386
        %vm1420 = vcmask 171152
        %1421 = vst.msk [vmem:[#allocation2] sm:$0xff] %vm1420, %v1325
        %1422 = vst.msk [vmem:[#allocation2 + $0x8] sm:$0xff] %vm1420, %v1327
        %1423 = vst.msk [vmem:[#allocation2 + $0x10] sm:$0xff] %vm1420, %v1329
        %1424 = vst.msk [vmem:[#allocation2 + $0x18] sm:$0xff] %vm1420, %v1331
        %1425 = vst.msk [vmem:[#allocation2 + $0x20] sm:$0xff] %vm1420, %v1333
        %1426 = vst.msk [vmem:[#allocation2 + $0x28] sm:$0xff] %vm1420, %v1335
        %1427 = vst.msk [vmem:[#allocation2 + $0x30] sm:$0xff] %vm1420, %v1337
        %1428 = vst.msk [vmem:[#allocation2 + $0x38] sm:$0xff] %vm1420, %v1339
        %1429 = vst.msk [vmem:[#allocation2 + $0x40] sm:$0xff] %vm1420, %v1341
        %1430 = vst.msk [vmem:[#allocation2 + $0x48] sm:$0xff] %vm1420, %v1343
        %1431 = vst.msk [vmem:[#allocation2 + $0x50] sm:$0xff] %vm1420, %v1345
        %1432 = vst.msk [vmem:[#allocation2 + $0x58] sm:$0xff] %vm1420, %v1347
        %1433 = vst.msk [vmem:[#allocation2 + $0x60] sm:$0xff] %vm1420, %v1349
        %1434 = vst.msk [vmem:[#allocation2 + $0x68] sm:$0xff] %vm1420, %v1351
        %1435 = vst.msk [vmem:[#allocation2 + $0x70] sm:$0xff] %vm1420, %v1353
        %1436 = vst.msk [vmem:[#allocation2 + $0x78] sm:$0xff] %vm1420, %v1355
        %1437 = vst.msk [vmem:[#allocation2 + $0x80] sm:$0xff] %vm1420, %v1357
        %1438 = vst.msk [vmem:[#allocation2 + $0x88] sm:$0xff] %vm1420, %v1359
        %1439 = vst.msk [vmem:[#allocation2 + $0x90] sm:$0xff] %vm1420, %v1361
        %1440 = vst.msk [vmem:[#allocation2 + $0x98] sm:$0xff] %vm1420, %v1363
        %1441 = vst.msk [vmem:[#allocation2 + $0xa0] sm:$0xff] %vm1420, %v1365
        %1442 = vst.msk [vmem:[#allocation2 + $0xa8] sm:$0xff] %vm1420, %v1367
        %1443 = vst.msk [vmem:[#allocation2 + $0xb0] sm:$0xff] %vm1420, %v1369
        %1444 = vst.msk [vmem:[#allocation2 + $0xb8] sm:$0xff] %vm1420, %v1371
        %1445 = vst.msk [vmem:[#allocation2 + $0xc0] sm:$0xff] %vm1420, %v1373
        %1446 = vst.msk [vmem:[#allocation2 + $0xc8] sm:$0xff] %vm1420, %v1375
        %1447 = vst.msk [vmem:[#allocation2 + $0xd0] sm:$0xff] %vm1420, %v1377
        %1448 = vst.msk [vmem:[#allocation2 + $0xd8] sm:$0xff] %vm1420, %v1379
        %1449 = vst.msk [vmem:[#allocation2 + $0xe0] sm:$0xff] %vm1420, %v1381
        %1450 = vst.msk [vmem:[#allocation2 + $0xe8] sm:$0xff] %vm1420, %v1383
        %1451 = vst.msk [vmem:[#allocation2 + $0xf0] sm:$0xff] %vm1420, %v1385
        %1452 = vst.msk [vmem:[#allocation2 + $0xf8] sm:$0xff] %vm1420, %v1387
        %1454 = vrot.lane.b32.xlu0 %v281, 21
        %v1455 = vpop.permute.xlu0 %1454
        %1456 = vrot.lane.b32.xlu0 %v282, 21
        %v1457 = vpop.permute.xlu0 %1456
        %1458 = vrot.lane.b32.xlu0 %v283, 21
        %v1459 = vpop.permute.xlu0 %1458
        %1460 = vrot.lane.b32.xlu0 %v284, 21
        %v1461 = vpop.permute.xlu0 %1460
        %1462 = vrot.lane.b32.xlu0 %v285, 21
        %v1463 = vpop.permute.xlu0 %1462
        %1464 = vrot.lane.b32.xlu0 %v286, 21
        %v1465 = vpop.permute.xlu0 %1464
        %1466 = vrot.lane.b32.xlu0 %v287, 21
        %v1467 = vpop.permute.xlu0 %1466
        %1468 = vrot.lane.b32.xlu0 %v288, 21
        %v1469 = vpop.permute.xlu0 %1468
        %1470 = vrot.lane.b32.xlu0 %v289, 21
        %v1471 = vpop.permute.xlu0 %1470
        %1472 = vrot.lane.b32.xlu0 %v290, 21
        %v1473 = vpop.permute.xlu0 %1472
        %1474 = vrot.lane.b32.xlu0 %v291, 21
        %v1475 = vpop.permute.xlu0 %1474
        %1476 = vrot.lane.b32.xlu0 %v292, 21
        %v1477 = vpop.permute.xlu0 %1476
        %1478 = vrot.lane.b32.xlu0 %v293, 21
        %v1479 = vpop.permute.xlu0 %1478
        %1480 = vrot.lane.b32.xlu0 %v294, 21
        %v1481 = vpop.permute.xlu0 %1480
        %1482 = vrot.lane.b32.xlu0 %v295, 21
        %v1483 = vpop.permute.xlu0 %1482
        %1484 = vrot.lane.b32.xlu0 %v296, 21
        %v1485 = vpop.permute.xlu0 %1484
        %1486 = vrot.lane.b32.xlu0 %v297, 21
        %v1487 = vpop.permute.xlu0 %1486
        %1488 = vrot.lane.b32.xlu0 %v298, 21
        %v1489 = vpop.permute.xlu0 %1488
        %1490 = vrot.lane.b32.xlu0 %v299, 21
        %v1491 = vpop.permute.xlu0 %1490
        %1492 = vrot.lane.b32.xlu0 %v300, 21
        %v1493 = vpop.permute.xlu0 %1492
        %1494 = vrot.lane.b32.xlu0 %v301, 21
        %v1495 = vpop.permute.xlu0 %1494
        %1496 = vrot.lane.b32.xlu0 %v302, 21
        %v1497 = vpop.permute.xlu0 %1496
        %1498 = vrot.lane.b32.xlu0 %v303, 21
        %v1499 = vpop.permute.xlu0 %1498
        %1500 = vrot.lane.b32.xlu0 %v304, 21
        %v1501 = vpop.permute.xlu0 %1500
        %1502 = vrot.lane.b32.xlu0 %v305, 21
        %v1503 = vpop.permute.xlu0 %1502
        %1504 = vrot.lane.b32.xlu0 %v306, 21
        %v1505 = vpop.permute.xlu0 %1504
        %1506 = vrot.lane.b32.xlu0 %v307, 21
        %v1507 = vpop.permute.xlu0 %1506
        %1508 = vrot.lane.b32.xlu0 %v308, 21
        %v1509 = vpop.permute.xlu0 %1508
        %1510 = vrot.lane.b32.xlu0 %v309, 21
        %v1511 = vpop.permute.xlu0 %1510
        %1512 = vrot.lane.b32.xlu0 %v310, 21
        %v1513 = vpop.permute.xlu0 %1512
        %1514 = vrot.lane.b32.xlu0 %v311, 21
        %v1515 = vpop.permute.xlu0 %1514
        %1516 = vrot.lane.b32.xlu0 %v312, 21
        %v1517 = vpop.permute.xlu0 %1516
        %1518 = vrot.lane.b32.xlu0 %v313, 21
        %v1519 = vpop.permute.xlu0 %1518
        %1520 = vrot.lane.b32.xlu0 %v314, 21
        %v1521 = vpop.permute.xlu0 %1520
        %1522 = vrot.lane.b32.xlu0 %v315, 21
        %v1523 = vpop.permute.xlu0 %1522
        %1524 = vrot.lane.b32.xlu0 %v316, 21
        %v1525 = vpop.permute.xlu0 %1524
        %1526 = vrot.lane.b32.xlu0 %v317, 21
        %v1527 = vpop.permute.xlu0 %1526
        %1528 = vrot.lane.b32.xlu0 %v318, 21
        %v1529 = vpop.permute.xlu0 %1528
        %1530 = vrot.lane.b32.xlu0 %v319, 21
        %v1531 = vpop.permute.xlu0 %1530
        %1532 = vrot.lane.b32.xlu0 %v320, 21
        %v1533 = vpop.permute.xlu0 %1532
        %1534 = vrot.lane.b32.xlu0 %v321, 21
        %v1535 = vpop.permute.xlu0 %1534
        %1536 = vrot.lane.b32.xlu0 %v322, 21
        %v1537 = vpop.permute.xlu0 %1536
        %1538 = vrot.lane.b32.xlu0 %v323, 21
        %v1539 = vpop.permute.xlu0 %1538
        %1540 = vrot.lane.b32.xlu0 %v324, 21
        %v1541 = vpop.permute.xlu0 %1540
        %1542 = vrot.lane.b32.xlu0 %v325, 21
        %v1543 = vpop.permute.xlu0 %1542
        %1544 = vrot.lane.b32.xlu0 %v326, 21
        %v1545 = vpop.permute.xlu0 %1544
        %1546 = vrot.lane.b32.xlu0 %v327, 21
        %v1547 = vpop.permute.xlu0 %1546
        %1548 = vrot.lane.b32.xlu0 %v328, 21
        %v1549 = vpop.permute.xlu0 %1548
        %vm1598 = vcmask 195753
        %1599 = vst.msk [vmem:[#allocation2 - $0x1] sm:$0xfe] %vm1598, %v1455
        %vm1600 = vcmask 195752
        %1601 = vst.msk [vmem:[#allocation2 + $0x7] sm:$0xff] %vm1600, %v1457
        %vm1602 = vcmask 188584
        %1603 = vst.msk [vmem:[#allocation2 + $0xf] sm:$0x1] %vm1602, %v1459
        %1604 = vst.msk [vmem:[#allocation2 + $0xf] sm:$0xfe] %vm1598, %v1461
        %1605 = vst.msk [vmem:[#allocation2 + $0x17] sm:$0xff] %vm1600, %v1463
        %1606 = vst.msk [vmem:[#allocation2 + $0x1f] sm:$0x1] %vm1602, %v1465
        %1607 = vst.msk [vmem:[#allocation2 + $0x1f] sm:$0xfe] %vm1598, %v1467
        %1608 = vst.msk [vmem:[#allocation2 + $0x27] sm:$0xff] %vm1600, %v1469
        %1609 = vst.msk [vmem:[#allocation2 + $0x2f] sm:$0x1] %vm1602, %v1471
        %1610 = vst.msk [vmem:[#allocation2 + $0x2f] sm:$0xfe] %vm1598, %v1473
        %1611 = vst.msk [vmem:[#allocation2 + $0x37] sm:$0xff] %vm1600, %v1475
        %1612 = vst.msk [vmem:[#allocation2 + $0x3f] sm:$0x1] %vm1602, %v1477
        %1613 = vst.msk [vmem:[#allocation2 + $0x3f] sm:$0xfe] %vm1598, %v1479
        %1614 = vst.msk [vmem:[#allocation2 + $0x47] sm:$0xff] %vm1600, %v1481
        %1615 = vst.msk [vmem:[#allocation2 + $0x4f] sm:$0x1] %vm1602, %v1483
        %1616 = vst.msk [vmem:[#allocation2 + $0x4f] sm:$0xfe] %vm1598, %v1485
        %1617 = vst.msk [vmem:[#allocation2 + $0x57] sm:$0xff] %vm1600, %v1487
        %1618 = vst.msk [vmem:[#allocation2 + $0x5f] sm:$0x1] %vm1602, %v1489
        %1619 = vst.msk [vmem:[#allocation2 + $0x5f] sm:$0xfe] %vm1598, %v1491
        %1620 = vst.msk [vmem:[#allocation2 + $0x67] sm:$0xff] %vm1600, %v1493
        %1621 = vst.msk [vmem:[#allocation2 + $0x6f] sm:$0x1] %vm1602, %v1495
        %1622 = vst.msk [vmem:[#allocation2 + $0x6f] sm:$0xfe] %vm1598, %v1497
        %1623 = vst.msk [vmem:[#allocation2 + $0x77] sm:$0xff] %vm1600, %v1499
        %1624 = vst.msk [vmem:[#allocation2 + $0x7f] sm:$0x1] %vm1602, %v1501
        %1625 = vst.msk [vmem:[#allocation2 + $0x7f] sm:$0xfe] %vm1598, %v1503
        %1626 = vst.msk [vmem:[#allocation2 + $0x87] sm:$0xff] %vm1600, %v1505
        %1627 = vst.msk [vmem:[#allocation2 + $0x8f] sm:$0x1] %vm1602, %v1507
        %1628 = vst.msk [vmem:[#allocation2 + $0x8f] sm:$0xfe] %vm1598, %v1509
        %1629 = vst.msk [vmem:[#allocation2 + $0x97] sm:$0xff] %vm1600, %v1511
        %1630 = vst.msk [vmem:[#allocation2 + $0x9f] sm:$0x1] %vm1602, %v1513
        %1631 = vst.msk [vmem:[#allocation2 + $0x9f] sm:$0xfe] %vm1598, %v1515
        %1632 = vst.msk [vmem:[#allocation2 + $0xa7] sm:$0xff] %vm1600, %v1517
        %1633 = vst.msk [vmem:[#allocation2 + $0xaf] sm:$0x1] %vm1602, %v1519
        %1634 = vst.msk [vmem:[#allocation2 + $0xaf] sm:$0xfe] %vm1598, %v1521
        %1635 = vst.msk [vmem:[#allocation2 + $0xb7] sm:$0xff] %vm1600, %v1523
        %1636 = vst.msk [vmem:[#allocation2 + $0xbf] sm:$0x1] %vm1602, %v1525
        %1637 = vst.msk [vmem:[#allocation2 + $0xbf] sm:$0xfe] %vm1598, %v1527
        %1638 = vst.msk [vmem:[#allocation2 + $0xc7] sm:$0xff] %vm1600, %v1529
        %1639 = vst.msk [vmem:[#allocation2 + $0xcf] sm:$0x1] %vm1602, %v1531
        %1640 = vst.msk [vmem:[#allocation2 + $0xcf] sm:$0xfe] %vm1598, %v1533
        %1641 = vst.msk [vmem:[#allocation2 + $0xd7] sm:$0xff] %vm1600, %v1535
        %1642 = vst.msk [vmem:[#allocation2 + $0xdf] sm:$0x1] %vm1602, %v1537
        %1643 = vst.msk [vmem:[#allocation2 + $0xdf] sm:$0xfe] %vm1598, %v1539
        %1644 = vst.msk [vmem:[#allocation2 + $0xe7] sm:$0xff] %vm1600, %v1541
        %1645 = vst.msk [vmem:[#allocation2 + $0xef] sm:$0x1] %vm1602, %v1543
        %1646 = vst.msk [vmem:[#allocation2 + $0xef] sm:$0xfe] %vm1598, %v1545
        %1647 = vst.msk [vmem:[#allocation2 + $0xf7] sm:$0xff] %vm1600, %v1547
        %1648 = vst.msk [vmem:[#allocation2 + $0xff] sm:$0x1] %vm1602, %v1549
        %1649 = vrot.lane.b32.xlu0 %v281, 24
        %v1650 = vpop.permute.xlu0 %1649
        %1651 = vrot.lane.b32.xlu0 %v282, 24
        %v1652 = vpop.permute.xlu0 %1651
        %1653 = vrot.lane.b32.xlu0 %v283, 24
        %v1654 = vpop.permute.xlu0 %1653
        %1655 = vrot.lane.b32.xlu0 %v284, 24
        %v1656 = vpop.permute.xlu0 %1655
        %1657 = vrot.lane.b32.xlu0 %v285, 24
        %v1658 = vpop.permute.xlu0 %1657
        %1659 = vrot.lane.b32.xlu0 %v286, 24
        %v1660 = vpop.permute.xlu0 %1659
        %1661 = vrot.lane.b32.xlu0 %v287, 24
        %v1662 = vpop.permute.xlu0 %1661
        %1663 = vrot.lane.b32.xlu0 %v288, 24
        %v1664 = vpop.permute.xlu0 %1663
        %1665 = vrot.lane.b32.xlu0 %v289, 24
        %v1666 = vpop.permute.xlu0 %1665
        %1667 = vrot.lane.b32.xlu0 %v290, 24
        %v1668 = vpop.permute.xlu0 %1667
        %1669 = vrot.lane.b32.xlu0 %v291, 24
        %v1670 = vpop.permute.xlu0 %1669
        %1671 = vrot.lane.b32.xlu0 %v292, 24
        %v1672 = vpop.permute.xlu0 %1671
        %1673 = vrot.lane.b32.xlu0 %v293, 24
        %v1674 = vpop.permute.xlu0 %1673
        %1675 = vrot.lane.b32.xlu0 %v294, 24
        %v1676 = vpop.permute.xlu0 %1675
        %1677 = vrot.lane.b32.xlu0 %v295, 24
        %v1678 = vpop.permute.xlu0 %1677
        %1679 = vrot.lane.b32.xlu0 %v296, 24
        %v1680 = vpop.permute.xlu0 %1679
        %1681 = vrot.lane.b32.xlu0 %v297, 24
        %v1682 = vpop.permute.xlu0 %1681
        %1683 = vrot.lane.b32.xlu0 %v298, 24
        %v1684 = vpop.permute.xlu0 %1683
        %1685 = vrot.lane.b32.xlu0 %v299, 24
        %v1686 = vpop.permute.xlu0 %1685
        %1687 = vrot.lane.b32.xlu0 %v300, 24
        %v1688 = vpop.permute.xlu0 %1687
        %1689 = vrot.lane.b32.xlu0 %v301, 24
        %v1690 = vpop.permute.xlu0 %1689
        %1691 = vrot.lane.b32.xlu0 %v302, 24
        %v1692 = vpop.permute.xlu0 %1691
        %1693 = vrot.lane.b32.xlu0 %v303, 24
        %v1694 = vpop.permute.xlu0 %1693
        %1695 = vrot.lane.b32.xlu0 %v304, 24
        %v1696 = vpop.permute.xlu0 %1695
        %1697 = vrot.lane.b32.xlu0 %v305, 24
        %v1698 = vpop.permute.xlu0 %1697
        %1699 = vrot.lane.b32.xlu0 %v306, 24
        %v1700 = vpop.permute.xlu0 %1699
        %1701 = vrot.lane.b32.xlu0 %v307, 24
        %v1702 = vpop.permute.xlu0 %1701
        %1703 = vrot.lane.b32.xlu0 %v308, 24
        %v1704 = vpop.permute.xlu0 %1703
        %1705 = vrot.lane.b32.xlu0 %v309, 24
        %v1706 = vpop.permute.xlu0 %1705
        %1707 = vrot.lane.b32.xlu0 %v310, 24
        %v1708 = vpop.permute.xlu0 %1707
        %1709 = vrot.lane.b32.xlu0 %v311, 24
        %v1710 = vpop.permute.xlu0 %1709
        %1711 = vrot.lane.b32.xlu0 %v312, 24
        %v1712 = vpop.permute.xlu0 %1711
        %1713 = vrot.lane.b32.xlu0 %v313, 24
        %v1714 = vpop.permute.xlu0 %1713
        %1715 = vrot.lane.b32.xlu0 %v314, 24
        %v1716 = vpop.permute.xlu0 %1715
        %1717 = vrot.lane.b32.xlu0 %v315, 24
        %v1718 = vpop.permute.xlu0 %1717
        %1719 = vrot.lane.b32.xlu0 %v316, 24
        %v1720 = vpop.permute.xlu0 %1719
        %1721 = vrot.lane.b32.xlu0 %v317, 24
        %v1722 = vpop.permute.xlu0 %1721
        %1723 = vrot.lane.b32.xlu0 %v318, 24
        %v1724 = vpop.permute.xlu0 %1723
        %1725 = vrot.lane.b32.xlu0 %v319, 24
        %v1726 = vpop.permute.xlu0 %1725
        %1727 = vrot.lane.b32.xlu0 %v320, 24
        %v1728 = vpop.permute.xlu0 %1727
        %1729 = vrot.lane.b32.xlu0 %v321, 24
        %v1730 = vpop.permute.xlu0 %1729
        %1731 = vrot.lane.b32.xlu0 %v322, 24
        %v1732 = vpop.permute.xlu0 %1731
        %1733 = vrot.lane.b32.xlu0 %v323, 24
        %v1734 = vpop.permute.xlu0 %1733
        %1735 = vrot.lane.b32.xlu0 %v324, 24
        %v1736 = vpop.permute.xlu0 %1735
        %1737 = vrot.lane.b32.xlu0 %v325, 24
        %v1738 = vpop.permute.xlu0 %1737
        %1739 = vrot.lane.b32.xlu0 %v326, 24
        %v1740 = vpop.permute.xlu0 %1739
        %1741 = vrot.lane.b32.xlu0 %v327, 24
        %v1742 = vpop.permute.xlu0 %1741
        %1743 = vrot.lane.b32.xlu0 %v328, 24
        %v1744 = vpop.permute.xlu0 %1743
        %vm1793 = vcmask 220354
        %1794 = vst.msk [vmem:[#allocation2 - $0x2] sm:$0xfc] %vm1793, %v1650
        %vm1795 = vcmask 220352
        %1796 = vst.msk [vmem:[#allocation2 + $0x6] sm:$0xff] %vm1795, %v1652
        %vm1797 = vcmask 214208
        %1798 = vst.msk [vmem:[#allocation2 + $0xe] sm:$0x3] %vm1797, %v1654
        %1799 = vst.msk [vmem:[#allocation2 + $0xe] sm:$0xfc] %vm1793, %v1656
        %1800 = vst.msk [vmem:[#allocation2 + $0x16] sm:$0xff] %vm1795, %v1658
        %1801 = vst.msk [vmem:[#allocation2 + $0x1e] sm:$0x3] %vm1797, %v1660
        %1802 = vst.msk [vmem:[#allocation2 + $0x1e] sm:$0xfc] %vm1793, %v1662
        %1803 = vst.msk [vmem:[#allocation2 + $0x26] sm:$0xff] %vm1795, %v1664
        %1804 = vst.msk [vmem:[#allocation2 + $0x2e] sm:$0x3] %vm1797, %v1666
        %1805 = vst.msk [vmem:[#allocation2 + $0x2e] sm:$0xfc] %vm1793, %v1668
        %1806 = vst.msk [vmem:[#allocation2 + $0x36] sm:$0xff] %vm1795, %v1670
        %1807 = vst.msk [vmem:[#allocation2 + $0x3e] sm:$0x3] %vm1797, %v1672
        %1808 = vst.msk [vmem:[#allocation2 + $0x3e] sm:$0xfc] %vm1793, %v1674
        %1809 = vst.msk [vmem:[#allocation2 + $0x46] sm:$0xff] %vm1795, %v1676
        %1810 = vst.msk [vmem:[#allocation2 + $0x4e] sm:$0x3] %vm1797, %v1678
        %1811 = vst.msk [vmem:[#allocation2 + $0x4e] sm:$0xfc] %vm1793, %v1680
        %1812 = vst.msk [vmem:[#allocation2 + $0x56] sm:$0xff] %vm1795, %v1682
        %1813 = vst.msk [vmem:[#allocation2 + $0x5e] sm:$0x3] %vm1797, %v1684
        %1814 = vst.msk [vmem:[#allocation2 + $0x5e] sm:$0xfc] %vm1793, %v1686
        %1815 = vst.msk [vmem:[#allocation2 + $0x66] sm:$0xff] %vm1795, %v1688
        %1816 = vst.msk [vmem:[#allocation2 + $0x6e] sm:$0x3] %vm1797, %v1690
        %1817 = vst.msk [vmem:[#allocation2 + $0x6e] sm:$0xfc] %vm1793, %v1692
        %1818 = vst.msk [vmem:[#allocation2 + $0x76] sm:$0xff] %vm1795, %v1694
        %1819 = vst.msk [vmem:[#allocation2 + $0x7e] sm:$0x3] %vm1797, %v1696
        %1820 = vst.msk [vmem:[#allocation2 + $0x7e] sm:$0xfc] %vm1793, %v1698
        %1821 = vst.msk [vmem:[#allocation2 + $0x86] sm:$0xff] %vm1795, %v1700
        %1822 = vst.msk [vmem:[#allocation2 + $0x8e] sm:$0x3] %vm1797, %v1702
        %1823 = vst.msk [vmem:[#allocation2 + $0x8e] sm:$0xfc] %vm1793, %v1704
        %1824 = vst.msk [vmem:[#allocation2 + $0x96] sm:$0xff] %vm1795, %v1706
        %1825 = vst.msk [vmem:[#allocation2 + $0x9e] sm:$0x3] %vm1797, %v1708
        %1826 = vst.msk [vmem:[#allocation2 + $0x9e] sm:$0xfc] %vm1793, %v1710
        %1827 = vst.msk [vmem:[#allocation2 + $0xa6] sm:$0xff] %vm1795, %v1712
        %1828 = vst.msk [vmem:[#allocation2 + $0xae] sm:$0x3] %vm1797, %v1714
        %1829 = vst.msk [vmem:[#allocation2 + $0xae] sm:$0xfc] %vm1793, %v1716
        %1830 = vst.msk [vmem:[#allocation2 + $0xb6] sm:$0xff] %vm1795, %v1718
        %1831 = vst.msk [vmem:[#allocation2 + $0xbe] sm:$0x3] %vm1797, %v1720
        %1832 = vst.msk [vmem:[#allocation2 + $0xbe] sm:$0xfc] %vm1793, %v1722
        %1833 = vst.msk [vmem:[#allocation2 + $0xc6] sm:$0xff] %vm1795, %v1724
        %1834 = vst.msk [vmem:[#allocation2 + $0xce] sm:$0x3] %vm1797, %v1726
        %1835 = vst.msk [vmem:[#allocation2 + $0xce] sm:$0xfc] %vm1793, %v1728
        %1836 = vst.msk [vmem:[#allocation2 + $0xd6] sm:$0xff] %vm1795, %v1730
        %1837 = vst.msk [vmem:[#allocation2 + $0xde] sm:$0x3] %vm1797, %v1732
        %1838 = vst.msk [vmem:[#allocation2 + $0xde] sm:$0xfc] %vm1793, %v1734
        %1839 = vst.msk [vmem:[#allocation2 + $0xe6] sm:$0xff] %vm1795, %v1736
        %1840 = vst.msk [vmem:[#allocation2 + $0xee] sm:$0x3] %vm1797, %v1738
        %1841 = vst.msk [vmem:[#allocation2 + $0xee] sm:$0xfc] %vm1793, %v1740
        %1842 = vst.msk [vmem:[#allocation2 + $0xf6] sm:$0xff] %vm1795, %v1742
        %1843 = vst.msk [vmem:[#allocation2 + $0xfe] sm:$0x3] %vm1797, %v1744
        %v1844 = vld [vmem:[#allocation2] sm:$0xff]
        %v1845 = vld [vmem:[#allocation2 + $0x8] sm:$0xff]
        %v1846 = vld [vmem:[#allocation2 + $0x10] sm:$0xff]
        %v1847 = vld [vmem:[#allocation2 + $0x18] sm:$0xff]
        %v1848 = vld [vmem:[#allocation2 + $0x20] sm:$0xff]
        %v1849 = vld [vmem:[#allocation2 + $0x28] sm:$0xff]
        %v1850 = vld [vmem:[#allocation2 + $0x30] sm:$0xff]
        %v1851 = vld [vmem:[#allocation2 + $0x38] sm:$0xff]
        %v1852 = vld [vmem:[#allocation2 + $0x40] sm:$0xff]
        %v1853 = vld [vmem:[#allocation2 + $0x48] sm:$0xff]
        %v1854 = vld [vmem:[#allocation2 + $0x50] sm:$0xff]
        %v1855 = vld [vmem:[#allocation2 + $0x58] sm:$0xff]
        %v1856 = vld [vmem:[#allocation2 + $0x60] sm:$0xff]
        %v1857 = vld [vmem:[#allocation2 + $0x68] sm:$0xff]
        %v1858 = vld [vmem:[#allocation2 + $0x70] sm:$0xff]
        %v1859 = vld [vmem:[#allocation2 + $0x78] sm:$0xff]
        %v1860 = vld [vmem:[#allocation2 + $0x80] sm:$0xff]
        %v1861 = vld [vmem:[#allocation2 + $0x88] sm:$0xff]
        %v1862 = vld [vmem:[#allocation2 + $0x90] sm:$0xff]
        %v1863 = vld [vmem:[#allocation2 + $0x98] sm:$0xff]
        %v1864 = vld [vmem:[#allocation2 + $0xa0] sm:$0xff]
        %v1865 = vld [vmem:[#allocation2 + $0xa8] sm:$0xff]
        %v1866 = vld [vmem:[#allocation2 + $0xb0] sm:$0xff]
        %v1867 = vld [vmem:[#allocation2 + $0xb8] sm:$0xff]
        %v1868 = vld [vmem:[#allocation2 + $0xc0] sm:$0xff]
        %v1869 = vld [vmem:[#allocation2 + $0xc8] sm:$0xff]
        %v1870 = vld [vmem:[#allocation2 + $0xd0] sm:$0xff]
        %v1871 = vld [vmem:[#allocation2 + $0xd8] sm:$0xff]
        %v1872 = vld [vmem:[#allocation2 + $0xe0] sm:$0xff]
        %v1873 = vld [vmem:[#allocation2 + $0xe8] sm:$0xff]
        %v1874 = vld [vmem:[#allocation2 + $0xf0] sm:$0xff]
        %v1875 = vld [vmem:[#allocation2 + $0xf8] sm:$0xff]
        %v1876 = vpack.c.bf16 %v1845, %v1844
        %v1877 = vpack.c.bf16 %v1847, %v1846
        %v1878 = vpack.c.bf16 %v1849, %v1848
        %v1879 = vpack.c.bf16 %v1851, %v1850
        %v1880 = vpack.c.bf16 %v1853, %v1852
        %v1881 = vpack.c.bf16 %v1855, %v1854
        %v1882 = vpack.c.bf16 %v1857, %v1856
        %v1883 = vpack.c.bf16 %v1859, %v1858
        %v1884 = vpack.c.bf16 %v1861, %v1860
        %v1885 = vpack.c.bf16 %v1863, %v1862
        %v1886 = vpack.c.bf16 %v1865, %v1864
        %v1887 = vpack.c.bf16 %v1867, %v1866
        %v1888 = vpack.c.bf16 %v1869, %v1868
        %v1889 = vpack.c.bf16 %v1871, %v1870
        %v1890 = vpack.c.bf16 %v1873, %v1872
        %v1891 = vpack.c.bf16 %v1875, %v1874
        %v1892 = vld [vmem:[#allocation6] sm:$0xf]
        %v1893 = vld [vmem:[#allocation6 + $0x4] sm:$0xf]
        %v1894 = vld [vmem:[#allocation6 + $0x8] sm:$0xf]
        %v1895 = vld [vmem:[#allocation6 + $0xc] sm:$0x3]
        %v1900 = vunpack.c.l.b16 %v1892
        %v1901 = vunpack.c.l.b16 %v1893
        %v1902 = vunpack.c.l.b16 %v1894
        %v1903 = vunpack.c.l.b16 %v1895
        %v1904 = vpack.c.b16 %v1901, %v1900
        %v1905 = vpack.c.b16 %v1903, %v1902
        %vm1907 = vcmask 220160
        %v1909 = vsel %vm1907, %v1876, 0
        %v1912 = vsel %vm1907, %v1877, 0
        %v1915 = vsel %vm1907, %v1878, 0
        %v1918 = vsel %vm1907, %v1879, 0
        %v1921 = vsel %vm1907, %v1880, 0
        %v1924 = vsel %vm1907, %v1881, 0
        %v1927 = vsel %vm1907, %v1882, 0
        %v1930 = vsel %vm1907, %v1883, 0
        %v1933 = vsel %vm1907, %v1884, 0
        %v1936 = vsel %vm1907, %v1885, 0
        %v1939 = vsel %vm1907, %v1886, 0
        %v1942 = vsel %vm1907, %v1887, 0
        %v1945 = vsel %vm1907, %v1888, 0
        %v1948 = vsel %vm1907, %v1889, 0
        %v1951 = vsel %vm1907, %v1890, 0
        %v1954 = vsel %vm1907, %v1891, 0
        %vm1956 = vcmask 1044480
        %vm1957 = vcmask 1045504
        %v1958 = vsel %vm1956, 4294967295, 65535
        %v1959 = vsel %vm1957, %v1958, 0
        %v1961 = vand.u32 %v1905, %v1959
        %1963 = vmatprep.subr.bf16.mxu0 0
        %1964 = vmatpush1.bf16.msra.mxu0 %v1904
        %1965 = vmatprep.subr.bf16.mxu0 0
        %1966 = vmatpush1.bf16.msra.mxu0 %v1961
        %1967 = vmatprep.subr.bf16.mxu0 0
        %1968 = vmatpush1.bf16.msra.mxu0 0
        %1969 = vmatprep.subr.bf16.mxu0 0
        %1970 = vmatpush1.bf16.msra.mxu0 0
        %1971 = vmatprep.subr.bf16.mxu0 0
        %1972 = vmatpush1.bf16.msra.mxu0 0
        %1973 = vmatprep.subr.bf16.mxu0 0
        %1974 = vmatpush1.bf16.msra.mxu0 0
        %1975 = vmatprep.subr.bf16.mxu0 0
        %1976 = vmatpush1.bf16.msra.mxu0 0
        %1977 = vmatprep.subr.bf16.mxu0 0
        %1978 = vmatpush1.bf16.msra.mxu0 0
        %1979 = vmatprep.subr.bf16.mxu0 0
        %1980 = vmatpush1.bf16.msra.mxu0 0
        %1981 = vmatprep.subr.bf16.mxu0 0
        %1982 = vmatpush1.bf16.msra.mxu0 0
        %1983 = vmatprep.subr.bf16.mxu0 0
        %1984 = vmatpush1.bf16.msra.mxu0 0
        %1985 = vmatprep.subr.bf16.mxu0 0
        %1986 = vmatpush1.bf16.msra.mxu0 0
        %1987 = vmatprep.subr.bf16.mxu0 0
        %1988 = vmatpush1.bf16.msra.mxu0 0
        %1989 = vmatprep.subr.bf16.mxu0 0
        %1990 = vmatpush1.bf16.msra.mxu0 0
        %1991 = vmatprep.subr.bf16.mxu0 0
        %1992 = vmatpush1.bf16.msra.mxu0 0
        %1993 = vmatprep.subr.bf16.mxu0 0
        %1994 = vmatpush1.bf16.msra.mxu0 0
        %1995 = vmatprep.mubr.bf16.mxu0 0
        %1996 = vmatmul.mubr.bf16.gmra.mrb[0].mxu0 %v1909
        %v1997 = vpop.f32.mrb[0].mxu0
        %v1998 = vadd.f32 0.0, %v1997
        %v1999 = vpop.f32.mrb[0].mxu0
        %v2000 = vpop.f32.mrb[0].mxu0
        %v2001 = vadd.f32 0.0, %v2000
        %v2002 = vpop.f32.mrb[0].mxu0
        %2003 = vmatprep.mubr.bf16.mxu0 0
        %2004 = vmatmul.mubr.bf16.gmra.mrb[0].mxu0 %v1912
        %v2005 = vpop.f32.mrb[0].mxu0
        %v2006 = vadd.f32 0.0, %v2005
        %v2007 = vpop.f32.mrb[0].mxu0
        %v2008 = vpop.f32.mrb[0].mxu0
        %v2009 = vadd.f32 0.0, %v2008
        %v2010 = vpop.f32.mrb[0].mxu0
        %2011 = vmatprep.mubr.bf16.mxu0 0
        %2012 = vmatmul.mubr.bf16.gmra.mrb[0].mxu0 %v1915
        %v2013 = vpop.f32.mrb[0].mxu0
        %v2014 = vadd.f32 0.0, %v2013
        %v2015 = vpop.f32.mrb[0].mxu0
        %v2016 = vpop.f32.mrb[0].mxu0
        %v2017 = vadd.f32 0.0, %v2016
        %v2018 = vpop.f32.mrb[0].mxu0
        %2019 = vmatprep.mubr.bf16.mxu0 0
        %2020 = vmatmul.mubr.bf16.gmra.mrb[0].mxu0 %v1918
        %v2021 = vpop.f32.mrb[0].mxu0
        %v2022 = vadd.f32 0.0, %v2021
        %v2023 = vpop.f32.mrb[0].mxu0
        %v2024 = vpop.f32.mrb[0].mxu0
        %v2025 = vadd.f32 0.0, %v2024
        %v2026 = vpop.f32.mrb[0].mxu0
        %2027 = vmatprep.mubr.bf16.mxu0 0
        %2028 = vmatmul.mubr.bf16.gmra.mrb[0].mxu0 %v1921
        %v2029 = vpop.f32.mrb[0].mxu0
        %v2030 = vadd.f32 0.0, %v2029
        %v2031 = vpop.f32.mrb[0].mxu0
        %v2032 = vpop.f32.mrb[0].mxu0
        %v2033 = vadd.f32 0.0, %v2032
        %v2034 = vpop.f32.mrb[0].mxu0
        %2035 = vmatprep.mubr.bf16.mxu0 0
        %2036 = vmatmul.mubr.bf16.gmra.mrb[0].mxu0 %v1924
        %v2037 = vpop.f32.mrb[0].mxu0
        %v2038 = vadd.f32 0.0, %v2037
        %v2039 = vpop.f32.mrb[0].mxu0
        %v2040 = vpop.f32.mrb[0].mxu0
        %v2041 = vadd.f32 0.0, %v2040
        %v2042 = vpop.f32.mrb[0].mxu0
        %2043 = vmatprep.mubr.bf16.mxu0 0
        %2044 = vmatmul.mubr.bf16.gmra.mrb[0].mxu0 %v1927
        %v2045 = vpop.f32.mrb[0].mxu0
        %v2046 = vadd.f32 0.0, %v2045
        %v2047 = vpop.f32.mrb[0].mxu0
        %v2048 = vpop.f32.mrb[0].mxu0
        %v2049 = vadd.f32 0.0, %v2048
        %v2050 = vpop.f32.mrb[0].mxu0
        %2051 = vmatprep.mubr.bf16.mxu0 0
        %2052 = vmatmul.mubr.bf16.gmra.mrb[0].mxu0 %v1930
        %v2053 = vpop.f32.mrb[0].mxu0
        %v2054 = vadd.f32 0.0, %v2053
        %v2055 = vpop.f32.mrb[0].mxu0
        %v2056 = vpop.f32.mrb[0].mxu0
        %v2057 = vadd.f32 0.0, %v2056
        %v2058 = vpop.f32.mrb[0].mxu0
        %2059 = vmatprep.mubr.bf16.mxu0 0
        %2060 = vmatmul.mubr.bf16.gmra.mrb[0].mxu0 %v1933
        %v2061 = vpop.f32.mrb[0].mxu0
        %v2062 = vadd.f32 0.0, %v2061
        %v2063 = vpop.f32.mrb[0].mxu0
        %v2064 = vpop.f32.mrb[0].mxu0
        %v2065 = vadd.f32 0.0, %v2064
        %v2066 = vpop.f32.mrb[0].mxu0
        %2067 = vmatprep.mubr.bf16.mxu0 0
        %2068 = vmatmul.mubr.bf16.gmra.mrb[0].mxu0 %v1936
        %v2069 = vpop.f32.mrb[0].mxu0
        %v2070 = vadd.f32 0.0, %v2069
        %v2071 = vpop.f32.mrb[0].mxu0
        %v2072 = vpop.f32.mrb[0].mxu0
        %v2073 = vadd.f32 0.0, %v2072
        %v2074 = vpop.f32.mrb[0].mxu0
        %2075 = vmatprep.mubr.bf16.mxu0 0
        %2076 = vmatmul.mubr.bf16.gmra.mrb[0].mxu0 %v1939
        %v2077 = vpop.f32.mrb[0].mxu0
        %v2078 = vadd.f32 0.0, %v2077
        %v2079 = vpop.f32.mrb[0].mxu0
        %v2080 = vpop.f32.mrb[0].mxu0
        %v2081 = vadd.f32 0.0, %v2080
        %v2082 = vpop.f32.mrb[0].mxu0
        %2083 = vmatprep.mubr.bf16.mxu0 0
        %2084 = vmatmul.mubr.bf16.gmra.mrb[0].mxu0 %v1942
        %v2085 = vpop.f32.mrb[0].mxu0
        %v2086 = vadd.f32 0.0, %v2085
        %v2087 = vpop.f32.mrb[0].mxu0
        %v2088 = vpop.f32.mrb[0].mxu0
        %v2089 = vadd.f32 0.0, %v2088
        %v2090 = vpop.f32.mrb[0].mxu0
        %2091 = vmatprep.mubr.bf16.mxu0 0
        %2092 = vmatmul.mubr.bf16.gmra.mrb[0].mxu0 %v1945
        %v2093 = vpop.f32.mrb[0].mxu0
        %v2094 = vadd.f32 0.0, %v2093
        %v2095 = vpop.f32.mrb[0].mxu0
        %v2096 = vpop.f32.mrb[0].mxu0
        %v2097 = vadd.f32 0.0, %v2096
        %v2098 = vpop.f32.mrb[0].mxu0
        %2099 = vmatprep.mubr.bf16.mxu0 0
        %2100 = vmatmul.mubr.bf16.gmra.mrb[0].mxu0 %v1948
        %v2101 = vpop.f32.mrb[0].mxu0
        %v2102 = vadd.f32 0.0, %v2101
        %v2103 = vpop.f32.mrb[0].mxu0
        %v2104 = vpop.f32.mrb[0].mxu0
        %v2105 = vadd.f32 0.0, %v2104
        %v2106 = vpop.f32.mrb[0].mxu0
        %2107 = vmatprep.mubr.bf16.mxu0 0
        %2108 = vmatmul.mubr.bf16.gmra.mrb[0].mxu0 %v1951
        %v2109 = vpop.f32.mrb[0].mxu0
        %v2110 = vadd.f32 0.0, %v2109
        %v2111 = vpop.f32.mrb[0].mxu0
        %v2112 = vpop.f32.mrb[0].mxu0
        %v2113 = vadd.f32 0.0, %v2112
        %v2114 = vpop.f32.mrb[0].mxu0
        %2115 = vmatprep.mubr.bf16.mxu0 0
        %2116 = vmatmul.mubr.bf16.gmra.mrb[0].mxu0 %v1954
        %v2117 = vpop.f32.mrb[0].mxu0
        %v2118 = vadd.f32 0.0, %v2117
        %v2119 = vpop.f32.mrb[0].mxu0
        %v2120 = vpop.f32.mrb[0].mxu0
        %v2121 = vadd.f32 0.0, %v2120
        %v2122 = vpop.f32.mrb[0].mxu0
        %2123 = vdwg.mxu0
        %v2124 = vld [vmem:[#allocation8] sm:$0x1]
        %v2126 = vlaneseq
        %v2127 = vshrl.u32 %v2126, 7
        %v2128 = vsub.s32 0, %v2127
        %v2129 = vrot.slane %v2124, %v2128
        %v2131 = vmul.f32 %v1998, %v2129
        %v2132 = vmul.f32 %v2001, %v2129
        %v2133 = vmul.f32 %v2006, %v2129
        %v2134 = vmul.f32 %v2009, %v2129
        %v2135 = vmul.f32 %v2014, %v2129
        %v2136 = vmul.f32 %v2017, %v2129
        %v2137 = vmul.f32 %v2022, %v2129
        %v2138 = vmul.f32 %v2025, %v2129
        %v2139 = vmul.f32 %v2030, %v2129
        %v2140 = vmul.f32 %v2033, %v2129
        %v2141 = vmul.f32 %v2038, %v2129
        %v2142 = vmul.f32 %v2041, %v2129
        %v2143 = vmul.f32 %v2046, %v2129
        %v2144 = vmul.f32 %v2049, %v2129
        %v2145 = vmul.f32 %v2054, %v2129
        %v2146 = vmul.f32 %v2057, %v2129
        %v2147 = vmul.f32 %v2062, %v2129
        %v2148 = vmul.f32 %v2065, %v2129
        %v2149 = vmul.f32 %v2070, %v2129
        %v2150 = vmul.f32 %v2073, %v2129
        %v2151 = vmul.f32 %v2078, %v2129
        %v2152 = vmul.f32 %v2081, %v2129
        %v2153 = vmul.f32 %v2086, %v2129
        %v2154 = vmul.f32 %v2089, %v2129
        %v2155 = vmul.f32 %v2094, %v2129
        %v2156 = vmul.f32 %v2097, %v2129
        %v2157 = vmul.f32 %v2102, %v2129
        %v2158 = vmul.f32 %v2105, %v2129
        %v2159 = vmul.f32 %v2110, %v2129
        %v2160 = vmul.f32 %v2113, %v2129
        %v2161 = vmul.f32 %v2118, %v2129
        %v2162 = vmul.f32 %v2121, %v2129
        %v2163 = vld [vmem:[#allocation9] sm:$0x1]
        %v2165 = vlaneseq
        %v2166 = vshrl.u32 %v2165, 7
        %v2167 = vsub.s32 0, %v2166
        %v2168 = vrot.slane %v2163, %v2167
        %v2170 = vadd.f32 %v2131, %v2168
        %v2171 = vadd.f32 %v2132, %v2168
        %v2172 = vadd.f32 %v2133, %v2168
        %v2173 = vadd.f32 %v2134, %v2168
        %v2174 = vadd.f32 %v2135, %v2168
        %v2175 = vadd.f32 %v2136, %v2168
        %v2176 = vadd.f32 %v2137, %v2168
        %v2177 = vadd.f32 %v2138, %v2168
        %v2178 = vadd.f32 %v2139, %v2168
        %v2179 = vadd.f32 %v2140, %v2168
        %v2180 = vadd.f32 %v2141, %v2168
        %v2181 = vadd.f32 %v2142, %v2168
        %v2182 = vadd.f32 %v2143, %v2168
        %v2183 = vadd.f32 %v2144, %v2168
        %v2184 = vadd.f32 %v2145, %v2168
        %v2185 = vadd.f32 %v2146, %v2168
        %v2186 = vadd.f32 %v2147, %v2168
        %v2187 = vadd.f32 %v2148, %v2168
        %v2188 = vadd.f32 %v2149, %v2168
        %v2189 = vadd.f32 %v2150, %v2168
        %v2190 = vadd.f32 %v2151, %v2168
        %v2191 = vadd.f32 %v2152, %v2168
        %v2192 = vadd.f32 %v2153, %v2168
        %v2193 = vadd.f32 %v2154, %v2168
        %v2194 = vadd.f32 %v2155, %v2168
        %v2195 = vadd.f32 %v2156, %v2168
        %v2196 = vadd.f32 %v2157, %v2168
        %v2197 = vadd.f32 %v2158, %v2168
        %v2198 = vadd.f32 %v2159, %v2168
        %v2199 = vadd.f32 %v2160, %v2168
        %v2200 = vadd.f32 %v2161, %v2168
        %v2201 = vadd.f32 %v2162, %v2168
        %v2202 = vmax.f32 %v2170, 0.0
        %v2203 = vmax.f32 %v2171, 0.0
        %v2204 = vmax.f32 %v2172, 0.0
        %v2205 = vmax.f32 %v2173, 0.0
        %v2206 = vmax.f32 %v2174, 0.0
        %v2207 = vmax.f32 %v2175, 0.0
        %v2208 = vmax.f32 %v2176, 0.0
        %v2209 = vmax.f32 %v2177, 0.0
        %v2210 = vmax.f32 %v2178, 0.0
        %v2211 = vmax.f32 %v2179, 0.0
        %v2212 = vmax.f32 %v2180, 0.0
        %v2213 = vmax.f32 %v2181, 0.0
        %v2214 = vmax.f32 %v2182, 0.0
        %v2215 = vmax.f32 %v2183, 0.0
        %v2216 = vmax.f32 %v2184, 0.0
        %v2217 = vmax.f32 %v2185, 0.0
        %v2218 = vmax.f32 %v2186, 0.0
        %v2219 = vmax.f32 %v2187, 0.0
        %v2220 = vmax.f32 %v2188, 0.0
        %v2221 = vmax.f32 %v2189, 0.0
        %v2222 = vmax.f32 %v2190, 0.0
        %v2223 = vmax.f32 %v2191, 0.0
        %v2224 = vmax.f32 %v2192, 0.0
        %v2225 = vmax.f32 %v2193, 0.0
        %v2226 = vmax.f32 %v2194, 0.0
        %v2227 = vmax.f32 %v2195, 0.0
        %v2228 = vmax.f32 %v2196, 0.0
        %v2229 = vmax.f32 %v2197, 0.0
        %v2230 = vmax.f32 %v2198, 0.0
        %v2231 = vmax.f32 %v2199, 0.0
        %v2232 = vmax.f32 %v2200, 0.0
        %v2233 = vmax.f32 %v2201, 0.0
        %v2266 = vcombine.high %v2202, %v2202
        %v2268 = vunpack.c.l.s4 1983009808
        %v2269 = vunpack.c.0.s8 %v2268
        %v2270 = vlaneseq
        %v2271 = vshrl.u32 %v2270, 7
        %v2272 = vsub.s32 %v2269, %v2271
        %v2273 = vrot.slane %v2202, %v2272
        %v2275 = vunpack.c.l.s4 1983009808
        %v2276 = vunpack.c.0.s8 %v2275
        %v2277 = vlaneseq
        %v2278 = vshrl.u32 %v2277, 7
        %v2279 = vsub.s32 %v2276, %v2278
        %v2280 = vrot.slane %v2266, %v2279
        %v2281 = vcombine.high %v2273, %v2273
        %v2282 = vcombine.high %v2280, %v2280
        %v2283 = vcombine.high %v2203, %v2203
        %v2285 = vunpack.c.l.s4 1983009808
        %v2286 = vunpack.c.0.s8 %v2285
        %v2287 = vlaneseq
        %v2288 = vshrl.u32 %v2287, 7
        %v2289 = vsub.s32 %v2286, %v2288
        %v2290 = vrot.slane %v2203, %v2289
        %v2292 = vunpack.c.l.s4 1983009808
        %v2293 = vunpack.c.0.s8 %v2292
        %v2294 = vlaneseq
        %v2295 = vshrl.u32 %v2294, 7
        %v2296 = vsub.s32 %v2293, %v2295
        %v2297 = vrot.slane %v2283, %v2296
        %v2298 = vcombine.high %v2290, %v2290
        %v2299 = vcombine.high %v2297, %v2297
        %v2300 = vcombine.high %v2204, %v2204
        %v2302 = vunpack.c.l.s4 1983009808
        %v2303 = vunpack.c.0.s8 %v2302
        %v2304 = vlaneseq
        %v2305 = vshrl.u32 %v2304, 7
        %v2306 = vsub.s32 %v2303, %v2305
        %v2307 = vrot.slane %v2204, %v2306
        %v2309 = vunpack.c.l.s4 1983009808
        %v2310 = vunpack.c.0.s8 %v2309
        %v2311 = vlaneseq
        %v2312 = vshrl.u32 %v2311, 7
        %v2313 = vsub.s32 %v2310, %v2312
        %v2314 = vrot.slane %v2300, %v2313
        %v2315 = vcombine.high %v2307, %v2307
        %v2316 = vcombine.high %v2314, %v2314
        %v2317 = vcombine.high %v2205, %v2205
        %v2319 = vunpack.c.l.s4 1983009808
        %v2320 = vunpack.c.0.s8 %v2319
        %v2321 = vlaneseq
        %v2322 = vshrl.u32 %v2321, 7
        %v2323 = vsub.s32 %v2320, %v2322
        %v2324 = vrot.slane %v2205, %v2323
        %v2326 = vunpack.c.l.s4 1983009808
        %v2327 = vunpack.c.0.s8 %v2326
        %v2328 = vlaneseq
        %v2329 = vshrl.u32 %v2328, 7
        %v2330 = vsub.s32 %v2327, %v2329
        %v2331 = vrot.slane %v2317, %v2330
        %v2332 = vcombine.high %v2324, %v2324
        %v2333 = vcombine.high %v2331, %v2331
        %v2334 = vcombine.high %v2206, %v2206
        %v2336 = vunpack.c.l.s4 1983009808
        %v2337 = vunpack.c.0.s8 %v2336
        %v2338 = vlaneseq
        %v2339 = vshrl.u32 %v2338, 7
        %v2340 = vsub.s32 %v2337, %v2339
        %v2341 = vrot.slane %v2206, %v2340
        %v2343 = vunpack.c.l.s4 1983009808
        %v2344 = vunpack.c.0.s8 %v2343
        %v2345 = vlaneseq
        %v2346 = vshrl.u32 %v2345, 7
        %v2347 = vsub.s32 %v2344, %v2346
        %v2348 = vrot.slane %v2334, %v2347
        %v2349 = vcombine.high %v2341, %v2341
        %v2350 = vcombine.high %v2348, %v2348
        %v2351 = vcombine.high %v2207, %v2207
        %v2353 = vunpack.c.l.s4 1983009808
        %v2354 = vunpack.c.0.s8 %v2353
        %v2355 = vlaneseq
        %v2356 = vshrl.u32 %v2355, 7
        %v2357 = vsub.s32 %v2354, %v2356
        %v2358 = vrot.slane %v2207, %v2357
        %v2360 = vunpack.c.l.s4 1983009808
        %v2361 = vunpack.c.0.s8 %v2360
        %v2362 = vlaneseq
        %v2363 = vshrl.u32 %v2362, 7
        %v2364 = vsub.s32 %v2361, %v2363
        %v2365 = vrot.slane %v2351, %v2364
        %v2366 = vcombine.high %v2358, %v2358
        %v2367 = vcombine.high %v2365, %v2365
        %v2368 = vcombine.high %v2208, %v2208
        %v2370 = vunpack.c.l.s4 1983009808
        %v2371 = vunpack.c.0.s8 %v2370
        %v2372 = vlaneseq
        %v2373 = vshrl.u32 %v2372, 7
        %v2374 = vsub.s32 %v2371, %v2373
        %v2375 = vrot.slane %v2208, %v2374
        %v2377 = vunpack.c.l.s4 1983009808
        %v2378 = vunpack.c.0.s8 %v2377
        %v2379 = vlaneseq
        %v2380 = vshrl.u32 %v2379, 7
        %v2381 = vsub.s32 %v2378, %v2380
        %v2382 = vrot.slane %v2368, %v2381
        %v2383 = vcombine.high %v2375, %v2375
        %v2384 = vcombine.high %v2382, %v2382
        %v2385 = vcombine.high %v2209, %v2209
        %v2387 = vunpack.c.l.s4 1983009808
        %v2388 = vunpack.c.0.s8 %v2387
        %v2389 = vlaneseq
        %v2390 = vshrl.u32 %v2389, 7
        %v2391 = vsub.s32 %v2388, %v2390
        %v2392 = vrot.slane %v2209, %v2391
        %v2394 = vunpack.c.l.s4 1983009808
        %v2395 = vunpack.c.0.s8 %v2394
        %v2396 = vlaneseq
        %v2397 = vshrl.u32 %v2396, 7
        %v2398 = vsub.s32 %v2395, %v2397
        %v2399 = vrot.slane %v2385, %v2398
        %v2400 = vcombine.high %v2392, %v2392
        %v2401 = vcombine.high %v2399, %v2399
        %v2402 = vcombine.high %v2210, %v2210
        %v2404 = vunpack.c.l.s4 1983009808
        %v2405 = vunpack.c.0.s8 %v2404
        %v2406 = vlaneseq
        %v2407 = vshrl.u32 %v2406, 7
        %v2408 = vsub.s32 %v2405, %v2407
        %v2409 = vrot.slane %v2210, %v2408
        %v2411 = vunpack.c.l.s4 1983009808
        %v2412 = vunpack.c.0.s8 %v2411
        %v2413 = vlaneseq
        %v2414 = vshrl.u32 %v2413, 7
        %v2415 = vsub.s32 %v2412, %v2414
        %v2416 = vrot.slane %v2402, %v2415
        %v2417 = vcombine.high %v2409, %v2409
        %v2418 = vcombine.high %v2416, %v2416
        %v2419 = vcombine.high %v2211, %v2211
        %v2421 = vunpack.c.l.s4 1983009808
        %v2422 = vunpack.c.0.s8 %v2421
        %v2423 = vlaneseq
        %v2424 = vshrl.u32 %v2423, 7
        %v2425 = vsub.s32 %v2422, %v2424
        %v2426 = vrot.slane %v2211, %v2425
        %v2428 = vunpack.c.l.s4 1983009808
        %v2429 = vunpack.c.0.s8 %v2428
        %v2430 = vlaneseq
        %v2431 = vshrl.u32 %v2430, 7
        %v2432 = vsub.s32 %v2429, %v2431
        %v2433 = vrot.slane %v2419, %v2432
        %v2434 = vcombine.high %v2426, %v2426
        %v2435 = vcombine.high %v2433, %v2433
        %v2436 = vcombine.high %v2212, %v2212
        %v2438 = vunpack.c.l.s4 1983009808
        %v2439 = vunpack.c.0.s8 %v2438
        %v2440 = vlaneseq
        %v2441 = vshrl.u32 %v2440, 7
        %v2442 = vsub.s32 %v2439, %v2441
        %v2443 = vrot.slane %v2212, %v2442
        %v2445 = vunpack.c.l.s4 1983009808
        %v2446 = vunpack.c.0.s8 %v2445
        %v2447 = vlaneseq
        %v2448 = vshrl.u32 %v2447, 7
        %v2449 = vsub.s32 %v2446, %v2448
        %v2450 = vrot.slane %v2436, %v2449
        %v2451 = vcombine.high %v2443, %v2443
        %v2452 = vcombine.high %v2450, %v2450
        %v2453 = vcombine.high %v2213, %v2213
        %v2455 = vunpack.c.l.s4 1983009808
        %v2456 = vunpack.c.0.s8 %v2455
        %v2457 = vlaneseq
        %v2458 = vshrl.u32 %v2457, 7
        %v2459 = vsub.s32 %v2456, %v2458
        %v2460 = vrot.slane %v2213, %v2459
        %v2462 = vunpack.c.l.s4 1983009808
        %v2463 = vunpack.c.0.s8 %v2462
        %v2464 = vlaneseq
        %v2465 = vshrl.u32 %v2464, 7
        %v2466 = vsub.s32 %v2463, %v2465
        %v2467 = vrot.slane %v2453, %v2466
        %v2468 = vcombine.high %v2460, %v2460
        %v2469 = vcombine.high %v2467, %v2467
        %v2470 = vcombine.high %v2214, %v2214
        %v2472 = vunpack.c.l.s4 1983009808
        %v2473 = vunpack.c.0.s8 %v2472
        %v2474 = vlaneseq
        %v2475 = vshrl.u32 %v2474, 7
        %v2476 = vsub.s32 %v2473, %v2475
        %v2477 = vrot.slane %v2214, %v2476
        %v2479 = vunpack.c.l.s4 1983009808
        %v2480 = vunpack.c.0.s8 %v2479
        %v2481 = vlaneseq
        %v2482 = vshrl.u32 %v2481, 7
        %v2483 = vsub.s32 %v2480, %v2482
        %v2484 = vrot.slane %v2470, %v2483
        %v2485 = vcombine.high %v2477, %v2477
        %v2486 = vcombine.high %v2484, %v2484
        %v2487 = vcombine.high %v2215, %v2215
        %v2489 = vunpack.c.l.s4 1983009808
        %v2490 = vunpack.c.0.s8 %v2489
        %v2491 = vlaneseq
        %v2492 = vshrl.u32 %v2491, 7
        %v2493 = vsub.s32 %v2490, %v2492
        %v2494 = vrot.slane %v2215, %v2493
        %v2496 = vunpack.c.l.s4 1983009808
        %v2497 = vunpack.c.0.s8 %v2496
        %v2498 = vlaneseq
        %v2499 = vshrl.u32 %v2498, 7
        %v2500 = vsub.s32 %v2497, %v2499
        %v2501 = vrot.slane %v2487, %v2500
        %v2502 = vcombine.high %v2494, %v2494
        %v2503 = vcombine.high %v2501, %v2501
        %v2504 = vcombine.high %v2216, %v2216
        %v2506 = vunpack.c.l.s4 1983009808
        %v2507 = vunpack.c.0.s8 %v2506
        %v2508 = vlaneseq
        %v2509 = vshrl.u32 %v2508, 7
        %v2510 = vsub.s32 %v2507, %v2509
        %v2511 = vrot.slane %v2216, %v2510
        %v2513 = vunpack.c.l.s4 1983009808
        %v2514 = vunpack.c.0.s8 %v2513
        %v2515 = vlaneseq
        %v2516 = vshrl.u32 %v2515, 7
        %v2517 = vsub.s32 %v2514, %v2516
        %v2518 = vrot.slane %v2504, %v2517
        %v2519 = vcombine.high %v2511, %v2511
        %v2520 = vcombine.high %v2518, %v2518
        %v2521 = vcombine.high %v2217, %v2217
        %v2523 = vunpack.c.l.s4 1983009808
        %v2524 = vunpack.c.0.s8 %v2523
        %v2525 = vlaneseq
        %v2526 = vshrl.u32 %v2525, 7
        %v2527 = vsub.s32 %v2524, %v2526
        %v2528 = vrot.slane %v2217, %v2527
        %v2530 = vunpack.c.l.s4 1983009808
        %v2531 = vunpack.c.0.s8 %v2530
        %v2532 = vlaneseq
        %v2533 = vshrl.u32 %v2532, 7
        %v2534 = vsub.s32 %v2531, %v2533
        %v2535 = vrot.slane %v2521, %v2534
        %v2536 = vcombine.high %v2528, %v2528
        %v2537 = vcombine.high %v2535, %v2535
        %v2538 = vcombine.high %v2218, %v2218
        %v2540 = vunpack.c.l.s4 1983009808
        %v2541 = vunpack.c.0.s8 %v2540
        %v2542 = vlaneseq
        %v2543 = vshrl.u32 %v2542, 7
        %v2544 = vsub.s32 %v2541, %v2543
        %v2545 = vrot.slane %v2218, %v2544
        %v2547 = vunpack.c.l.s4 1983009808
        %v2548 = vunpack.c.0.s8 %v2547
        %v2549 = vlaneseq
        %v2550 = vshrl.u32 %v2549, 7
        %v2551 = vsub.s32 %v2548, %v2550
        %v2552 = vrot.slane %v2538, %v2551
        %v2553 = vcombine.high %v2545, %v2545
        %v2554 = vcombine.high %v2552, %v2552
        %v2555 = vcombine.high %v2219, %v2219
        %v2557 = vunpack.c.l.s4 1983009808
        %v2558 = vunpack.c.0.s8 %v2557
        %v2559 = vlaneseq
        %v2560 = vshrl.u32 %v2559, 7
        %v2561 = vsub.s32 %v2558, %v2560
        %v2562 = vrot.slane %v2219, %v2561
        %v2564 = vunpack.c.l.s4 1983009808
        %v2565 = vunpack.c.0.s8 %v2564
        %v2566 = vlaneseq
        %v2567 = vshrl.u32 %v2566, 7
        %v2568 = vsub.s32 %v2565, %v2567
        %v2569 = vrot.slane %v2555, %v2568
        %v2570 = vcombine.high %v2562, %v2562
        %v2571 = vcombine.high %v2569, %v2569
        %v2572 = vcombine.high %v2220, %v2220
        %v2574 = vunpack.c.l.s4 1983009808
        %v2575 = vunpack.c.0.s8 %v2574
        %v2576 = vlaneseq
        %v2577 = vshrl.u32 %v2576, 7
        %v2578 = vsub.s32 %v2575, %v2577
        %v2579 = vrot.slane %v2220, %v2578
        %v2581 = vunpack.c.l.s4 1983009808
        %v2582 = vunpack.c.0.s8 %v2581
        %v2583 = vlaneseq
        %v2584 = vshrl.u32 %v2583, 7
        %v2585 = vsub.s32 %v2582, %v2584
        %v2586 = vrot.slane %v2572, %v2585
        %v2587 = vcombine.high %v2579, %v2579
        %v2588 = vcombine.high %v2586, %v2586
        %v2589 = vcombine.high %v2221, %v2221
        %v2591 = vunpack.c.l.s4 1983009808
        %v2592 = vunpack.c.0.s8 %v2591
        %v2593 = vlaneseq
        %v2594 = vshrl.u32 %v2593, 7
        %v2595 = vsub.s32 %v2592, %v2594
        %v2596 = vrot.slane %v2221, %v2595
        %v2598 = vunpack.c.l.s4 1983009808
        %v2599 = vunpack.c.0.s8 %v2598
        %v2600 = vlaneseq
        %v2601 = vshrl.u32 %v2600, 7
        %v2602 = vsub.s32 %v2599, %v2601
        %v2603 = vrot.slane %v2589, %v2602
        %v2604 = vcombine.high %v2596, %v2596
        %v2605 = vcombine.high %v2603, %v2603
        %v2606 = vcombine.high %v2222, %v2222
        %v2608 = vunpack.c.l.s4 1983009808
        %v2609 = vunpack.c.0.s8 %v2608
        %v2610 = vlaneseq
        %v2611 = vshrl.u32 %v2610, 7
        %v2612 = vsub.s32 %v2609, %v2611
        %v2613 = vrot.slane %v2222, %v2612
        %v2615 = vunpack.c.l.s4 1983009808
        %v2616 = vunpack.c.0.s8 %v2615
        %v2617 = vlaneseq
        %v2618 = vshrl.u32 %v2617, 7
        %v2619 = vsub.s32 %v2616, %v2618
        %v2620 = vrot.slane %v2606, %v2619
        %v2621 = vcombine.high %v2613, %v2613
        %v2622 = vcombine.high %v2620, %v2620
        %v2623 = vcombine.high %v2223, %v2223
        %v2625 = vunpack.c.l.s4 1983009808
        %v2626 = vunpack.c.0.s8 %v2625
        %v2627 = vlaneseq
        %v2628 = vshrl.u32 %v2627, 7
        %v2629 = vsub.s32 %v2626, %v2628
        %v2630 = vrot.slane %v2223, %v2629
        %v2632 = vunpack.c.l.s4 1983009808
        %v2633 = vunpack.c.0.s8 %v2632
        %v2634 = vlaneseq
        %v2635 = vshrl.u32 %v2634, 7
        %v2636 = vsub.s32 %v2633, %v2635
        %v2637 = vrot.slane %v2623, %v2636
        %v2638 = vcombine.high %v2630, %v2630
        %v2639 = vcombine.high %v2637, %v2637
        %v2640 = vcombine.high %v2224, %v2224
        %v2642 = vunpack.c.l.s4 1983009808
        %v2643 = vunpack.c.0.s8 %v2642
        %v2644 = vlaneseq
        %v2645 = vshrl.u32 %v2644, 7
        %v2646 = vsub.s32 %v2643, %v2645
        %v2647 = vrot.slane %v2224, %v2646
        %v2649 = vunpack.c.l.s4 1983009808
        %v2650 = vunpack.c.0.s8 %v2649
        %v2651 = vlaneseq
        %v2652 = vshrl.u32 %v2651, 7
        %v2653 = vsub.s32 %v2650, %v2652
        %v2654 = vrot.slane %v2640, %v2653
        %v2655 = vcombine.high %v2647, %v2647
        %v2656 = vcombine.high %v2654, %v2654
        %v2657 = vcombine.high %v2225, %v2225
        %v2659 = vunpack.c.l.s4 1983009808
        %v2660 = vunpack.c.0.s8 %v2659
        %v2661 = vlaneseq
        %v2662 = vshrl.u32 %v2661, 7
        %v2663 = vsub.s32 %v2660, %v2662
        %v2664 = vrot.slane %v2225, %v2663
        %v2666 = vunpack.c.l.s4 1983009808
        %v2667 = vunpack.c.0.s8 %v2666
        %v2668 = vlaneseq
        %v2669 = vshrl.u32 %v2668, 7
        %v2670 = vsub.s32 %v2667, %v2669
        %v2671 = vrot.slane %v2657, %v2670
        %v2672 = vcombine.high %v2664, %v2664
        %v2673 = vcombine.high %v2671, %v2671
        %v2674 = vcombine.high %v2226, %v2226
        %v2676 = vunpack.c.l.s4 1983009808
        %v2677 = vunpack.c.0.s8 %v2676
        %v2678 = vlaneseq
        %v2679 = vshrl.u32 %v2678, 7
        %v2680 = vsub.s32 %v2677, %v2679
        %v2681 = vrot.slane %v2226, %v2680
        %v2683 = vunpack.c.l.s4 1983009808
        %v2684 = vunpack.c.0.s8 %v2683
        %v2685 = vlaneseq
        %v2686 = vshrl.u32 %v2685, 7
        %v2687 = vsub.s32 %v2684, %v2686
        %v2688 = vrot.slane %v2674, %v2687
        %v2689 = vcombine.high %v2681, %v2681
        %v2690 = vcombine.high %v2688, %v2688
        %v2691 = vcombine.high %v2227, %v2227
        %v2693 = vunpack.c.l.s4 1983009808
        %v2694 = vunpack.c.0.s8 %v2693
        %v2695 = vlaneseq
        %v2696 = vshrl.u32 %v2695, 7
        %v2697 = vsub.s32 %v2694, %v2696
        %v2698 = vrot.slane %v2227, %v2697
        %v2700 = vunpack.c.l.s4 1983009808
        %v2701 = vunpack.c.0.s8 %v2700
        %v2702 = vlaneseq
        %v2703 = vshrl.u32 %v2702, 7
        %v2704 = vsub.s32 %v2701, %v2703
        %v2705 = vrot.slane %v2691, %v2704
        %v2706 = vcombine.high %v2698, %v2698
        %v2707 = vcombine.high %v2705, %v2705
        %v2708 = vcombine.high %v2228, %v2228
        %v2710 = vunpack.c.l.s4 1983009808
        %v2711 = vunpack.c.0.s8 %v2710
        %v2712 = vlaneseq
        %v2713 = vshrl.u32 %v2712, 7
        %v2714 = vsub.s32 %v2711, %v2713
        %v2715 = vrot.slane %v2228, %v2714
        %v2717 = vunpack.c.l.s4 1983009808
        %v2718 = vunpack.c.0.s8 %v2717
        %v2719 = vlaneseq
        %v2720 = vshrl.u32 %v2719, 7
        %v2721 = vsub.s32 %v2718, %v2720
        %v2722 = vrot.slane %v2708, %v2721
        %v2723 = vcombine.high %v2715, %v2715
        %v2724 = vcombine.high %v2722, %v2722
        %v2725 = vcombine.high %v2229, %v2229
        %v2727 = vunpack.c.l.s4 1983009808
        %v2728 = vunpack.c.0.s8 %v2727
        %v2729 = vlaneseq
        %v2730 = vshrl.u32 %v2729, 7
        %v2731 = vsub.s32 %v2728, %v2730
        %v2732 = vrot.slane %v2229, %v2731
        %v2734 = vunpack.c.l.s4 1983009808
        %v2735 = vunpack.c.0.s8 %v2734
        %v2736 = vlaneseq
        %v2737 = vshrl.u32 %v2736, 7
        %v2738 = vsub.s32 %v2735, %v2737
        %v2739 = vrot.slane %v2725, %v2738
        %v2740 = vcombine.high %v2732, %v2732
        %v2741 = vcombine.high %v2739, %v2739
        %v2742 = vcombine.high %v2230, %v2230
        %v2744 = vunpack.c.l.s4 1983009808
        %v2745 = vunpack.c.0.s8 %v2744
        %v2746 = vlaneseq
        %v2747 = vshrl.u32 %v2746, 7
        %v2748 = vsub.s32 %v2745, %v2747
        %v2749 = vrot.slane %v2230, %v2748
        %v2751 = vunpack.c.l.s4 1983009808
        %v2752 = vunpack.c.0.s8 %v2751
        %v2753 = vlaneseq
        %v2754 = vshrl.u32 %v2753, 7
        %v2755 = vsub.s32 %v2752, %v2754
        %v2756 = vrot.slane %v2742, %v2755
        %v2757 = vcombine.high %v2749, %v2749
        %v2758 = vcombine.high %v2756, %v2756
        %v2759 = vcombine.high %v2231, %v2231
        %v2761 = vunpack.c.l.s4 1983009808
        %v2762 = vunpack.c.0.s8 %v2761
        %v2763 = vlaneseq
        %v2764 = vshrl.u32 %v2763, 7
        %v2765 = vsub.s32 %v2762, %v2764
        %v2766 = vrot.slane %v2231, %v2765
        %v2768 = vunpack.c.l.s4 1983009808
        %v2769 = vunpack.c.0.s8 %v2768
        %v2770 = vlaneseq
        %v2771 = vshrl.u32 %v2770, 7
        %v2772 = vsub.s32 %v2769, %v2771
        %v2773 = vrot.slane %v2759, %v2772
        %v2774 = vcombine.high %v2766, %v2766
        %v2775 = vcombine.high %v2773, %v2773
        %v2776 = vcombine.high %v2232, %v2232
        %v2778 = vunpack.c.l.s4 1983009808
        %v2779 = vunpack.c.0.s8 %v2778
        %v2780 = vlaneseq
        %v2781 = vshrl.u32 %v2780, 7
        %v2782 = vsub.s32 %v2779, %v2781
        %v2783 = vrot.slane %v2232, %v2782
        %v2785 = vunpack.c.l.s4 1983009808
        %v2786 = vunpack.c.0.s8 %v2785
        %v2787 = vlaneseq
        %v2788 = vshrl.u32 %v2787, 7
        %v2789 = vsub.s32 %v2786, %v2788
        %v2790 = vrot.slane %v2776, %v2789
        %v2791 = vcombine.high %v2783, %v2783
        %v2792 = vcombine.high %v2790, %v2790
        %v2793 = vcombine.high %v2233, %v2233
        %v2795 = vunpack.c.l.s4 1983009808
        %v2796 = vunpack.c.0.s8 %v2795
        %v2797 = vlaneseq
        %v2798 = vshrl.u32 %v2797, 7
        %v2799 = vsub.s32 %v2796, %v2798
        %v2800 = vrot.slane %v2233, %v2799
        %v2802 = vunpack.c.l.s4 1983009808
        %v2803 = vunpack.c.0.s8 %v2802
        %v2804 = vlaneseq
        %v2805 = vshrl.u32 %v2804, 7
        %v2806 = vsub.s32 %v2803, %v2805
        %v2807 = vrot.slane %v2793, %v2806
        %v2808 = vcombine.high %v2800, %v2800
        %v2809 = vcombine.high %v2807, %v2807
        %vm2938 = vcmask 91136
        %v2939 = vsel %vm2938, %v2273, -inf
        %v2940 = vrot.slane %v2939, 4
        %v2941 = vmax.f32 %v2939, %v2940
        %v2942 = vrot.slane %v2941, 2
        %v2943 = vmax.f32 %v2941, %v2942
        %v2944 = vrot.slane %v2943, 1
        %v2945 = vmax.f32 %v2943, %v2944
        %v2946 = vsel %vm2938, %v2281, -inf
        %v2947 = vrot.slane %v2946, 4
        %v2948 = vmax.f32 %v2946, %v2947
        %v2949 = vrot.slane %v2948, 2
        %v2950 = vmax.f32 %v2948, %v2949
        %v2951 = vrot.slane %v2950, 1
        %v2952 = vmax.f32 %v2950, %v2951
        %v2953 = vsel %vm2938, %v2280, -inf
        %v2954 = vrot.slane %v2953, 4
        %v2955 = vmax.f32 %v2953, %v2954
        %v2956 = vrot.slane %v2955, 2
        %v2957 = vmax.f32 %v2955, %v2956
        %v2958 = vrot.slane %v2957, 1
        %v2959 = vmax.f32 %v2957, %v2958
        %v2960 = vsel %vm2938, %v2282, -inf
        %v2961 = vrot.slane %v2960, 4
        %v2962 = vmax.f32 %v2960, %v2961
        %v2963 = vrot.slane %v2962, 2
        %v2964 = vmax.f32 %v2962, %v2963
        %v2965 = vrot.slane %v2964, 1
        %v2966 = vmax.f32 %v2964, %v2965
        %v2967 = vsel %vm2938, %v2290, -inf
        %v2968 = vrot.slane %v2967, 4
        %v2969 = vmax.f32 %v2967, %v2968
        %v2970 = vrot.slane %v2969, 2
        %v2971 = vmax.f32 %v2969, %v2970
        %v2972 = vrot.slane %v2971, 1
        %v2973 = vmax.f32 %v2971, %v2972
        %v2974 = vsel %vm2938, %v2298, -inf
        %v2975 = vrot.slane %v2974, 4
        %v2976 = vmax.f32 %v2974, %v2975
        %v2977 = vrot.slane %v2976, 2
        %v2978 = vmax.f32 %v2976, %v2977
        %v2979 = vrot.slane %v2978, 1
        %v2980 = vmax.f32 %v2978, %v2979
        %v2981 = vsel %vm2938, %v2297, -inf
        %v2982 = vrot.slane %v2981, 4
        %v2983 = vmax.f32 %v2981, %v2982
        %v2984 = vrot.slane %v2983, 2
        %v2985 = vmax.f32 %v2983, %v2984
        %v2986 = vrot.slane %v2985, 1
        %v2987 = vmax.f32 %v2985, %v2986
        %v2988 = vsel %vm2938, %v2299, -inf
        %v2989 = vrot.slane %v2988, 4
        %v2990 = vmax.f32 %v2988, %v2989
        %v2991 = vrot.slane %v2990, 2
        %v2992 = vmax.f32 %v2990, %v2991
        %v2993 = vrot.slane %v2992, 1
        %v2994 = vmax.f32 %v2992, %v2993
        %v2995 = vsel %vm2938, %v2307, -inf
        %v2996 = vrot.slane %v2995, 4
        %v2997 = vmax.f32 %v2995, %v2996
        %v2998 = vrot.slane %v2997, 2
        %v2999 = vmax.f32 %v2997, %v2998
        %v3000 = vrot.slane %v2999, 1
        %v3001 = vmax.f32 %v2999, %v3000
        %v3002 = vsel %vm2938, %v2315, -inf
        %v3003 = vrot.slane %v3002, 4
        %v3004 = vmax.f32 %v3002, %v3003
        %v3005 = vrot.slane %v3004, 2
        %v3006 = vmax.f32 %v3004, %v3005
        %v3007 = vrot.slane %v3006, 1
        %v3008 = vmax.f32 %v3006, %v3007
        %v3009 = vsel %vm2938, %v2314, -inf
        %v3010 = vrot.slane %v3009, 4
        %v3011 = vmax.f32 %v3009, %v3010
        %v3012 = vrot.slane %v3011, 2
        %v3013 = vmax.f32 %v3011, %v3012
        %v3014 = vrot.slane %v3013, 1
        %v3015 = vmax.f32 %v3013, %v3014
        %v3016 = vsel %vm2938, %v2316, -inf
        %v3017 = vrot.slane %v3016, 4
        %v3018 = vmax.f32 %v3016, %v3017
        %v3019 = vrot.slane %v3018, 2
        %v3020 = vmax.f32 %v3018, %v3019
        %v3021 = vrot.slane %v3020, 1
        %v3022 = vmax.f32 %v3020, %v3021
        %v3023 = vsel %vm2938, %v2324, -inf
        %v3024 = vrot.slane %v3023, 4
        %v3025 = vmax.f32 %v3023, %v3024
        %v3026 = vrot.slane %v3025, 2
        %v3027 = vmax.f32 %v3025, %v3026
        %v3028 = vrot.slane %v3027, 1
        %v3029 = vmax.f32 %v3027, %v3028
        %v3030 = vsel %vm2938, %v2332, -inf
        %v3031 = vrot.slane %v3030, 4
        %v3032 = vmax.f32 %v3030, %v3031
        %v3033 = vrot.slane %v3032, 2
        %v3034 = vmax.f32 %v3032, %v3033
        %v3035 = vrot.slane %v3034, 1
        %v3036 = vmax.f32 %v3034, %v3035
        %v3037 = vsel %vm2938, %v2331, -inf
        %v3038 = vrot.slane %v3037, 4
        %v3039 = vmax.f32 %v3037, %v3038
        %v3040 = vrot.slane %v3039, 2
        %v3041 = vmax.f32 %v3039, %v3040
        %v3042 = vrot.slane %v3041, 1
        %v3043 = vmax.f32 %v3041, %v3042
        %v3044 = vsel %vm2938, %v2333, -inf
        %v3045 = vrot.slane %v3044, 4
        %v3046 = vmax.f32 %v3044, %v3045
        %v3047 = vrot.slane %v3046, 2
        %v3048 = vmax.f32 %v3046, %v3047
        %v3049 = vrot.slane %v3048, 1
        %v3050 = vmax.f32 %v3048, %v3049
        %v3051 = vsel %vm2938, %v2341, -inf
        %v3052 = vrot.slane %v3051, 4
        %v3053 = vmax.f32 %v3051, %v3052
        %v3054 = vrot.slane %v3053, 2
        %v3055 = vmax.f32 %v3053, %v3054
        %v3056 = vrot.slane %v3055, 1
        %v3057 = vmax.f32 %v3055, %v3056
        %v3058 = vsel %vm2938, %v2349, -inf
        %v3059 = vrot.slane %v3058, 4
        %v3060 = vmax.f32 %v3058, %v3059
        %v3061 = vrot.slane %v3060, 2
        %v3062 = vmax.f32 %v3060, %v3061
        %v3063 = vrot.slane %v3062, 1
        %v3064 = vmax.f32 %v3062, %v3063
        %v3065 = vsel %vm2938, %v2348, -inf
        %v3066 = vrot.slane %v3065, 4
        %v3067 = vmax.f32 %v3065, %v3066
        %v3068 = vrot.slane %v3067, 2
        %v3069 = vmax.f32 %v3067, %v3068
        %v3070 = vrot.slane %v3069, 1
        %v3071 = vmax.f32 %v3069, %v3070
        %v3072 = vsel %vm2938, %v2350, -inf
        %v3073 = vrot.slane %v3072, 4
        %v3074 = vmax.f32 %v3072, %v3073
        %v3075 = vrot.slane %v3074, 2
        %v3076 = vmax.f32 %v3074, %v3075
        %v3077 = vrot.slane %v3076, 1
        %v3078 = vmax.f32 %v3076, %v3077
        %v3079 = vsel %vm2938, %v2358, -inf
        %v3080 = vrot.slane %v3079, 4
        %v3081 = vmax.f32 %v3079, %v3080
        %v3082 = vrot.slane %v3081, 2
        %v3083 = vmax.f32 %v3081, %v3082
        %v3084 = vrot.slane %v3083, 1
        %v3085 = vmax.f32 %v3083, %v3084
        %v3086 = vsel %vm2938, %v2366, -inf
        %v3087 = vrot.slane %v3086, 4
        %v3088 = vmax.f32 %v3086, %v3087
        %v3089 = vrot.slane %v3088, 2
        %v3090 = vmax.f32 %v3088, %v3089
        %v3091 = vrot.slane %v3090, 1
        %v3092 = vmax.f32 %v3090, %v3091
        %v3093 = vsel %vm2938, %v2365, -inf
        %v3094 = vrot.slane %v3093, 4
        %v3095 = vmax.f32 %v3093, %v3094
        %v3096 = vrot.slane %v3095, 2
        %v3097 = vmax.f32 %v3095, %v3096
        %v3098 = vrot.slane %v3097, 1
        %v3099 = vmax.f32 %v3097, %v3098
        %v3100 = vsel %vm2938, %v2367, -inf
        %v3101 = vrot.slane %v3100, 4
        %v3102 = vmax.f32 %v3100, %v3101
        %v3103 = vrot.slane %v3102, 2
        %v3104 = vmax.f32 %v3102, %v3103
        %v3105 = vrot.slane %v3104, 1
        %v3106 = vmax.f32 %v3104, %v3105
        %v3107 = vsel %vm2938, %v2375, -inf
        %v3108 = vrot.slane %v3107, 4
        %v3109 = vmax.f32 %v3107, %v3108
        %v3110 = vrot.slane %v3109, 2
        %v3111 = vmax.f32 %v3109, %v3110
        %v3112 = vrot.slane %v3111, 1
        %v3113 = vmax.f32 %v3111, %v3112
        %v3114 = vsel %vm2938, %v2383, -inf
        %v3115 = vrot.slane %v3114, 4
        %v3116 = vmax.f32 %v3114, %v3115
        %v3117 = vrot.slane %v3116, 2
        %v3118 = vmax.f32 %v3116, %v3117
        %v3119 = vrot.slane %v3118, 1
        %v3120 = vmax.f32 %v3118, %v3119
        %v3121 = vsel %vm2938, %v2382, -inf
        %v3122 = vrot.slane %v3121, 4
        %v3123 = vmax.f32 %v3121, %v3122
        %v3124 = vrot.slane %v3123, 2
        %v3125 = vmax.f32 %v3123, %v3124
        %v3126 = vrot.slane %v3125, 1
        %v3127 = vmax.f32 %v3125, %v3126
        %v3128 = vsel %vm2938, %v2384, -inf
        %v3129 = vrot.slane %v3128, 4
        %v3130 = vmax.f32 %v3128, %v3129
        %v3131 = vrot.slane %v3130, 2
        %v3132 = vmax.f32 %v3130, %v3131
        %v3133 = vrot.slane %v3132, 1
        %v3134 = vmax.f32 %v3132, %v3133
        %v3135 = vsel %vm2938, %v2392, -inf
        %v3136 = vrot.slane %v3135, 4
        %v3137 = vmax.f32 %v3135, %v3136
        %v3138 = vrot.slane %v3137, 2
        %v3139 = vmax.f32 %v3137, %v3138
        %v3140 = vrot.slane %v3139, 1
        %v3141 = vmax.f32 %v3139, %v3140
        %v3142 = vsel %vm2938, %v2400, -inf
        %v3143 = vrot.slane %v3142, 4
        %v3144 = vmax.f32 %v3142, %v3143
        %v3145 = vrot.slane %v3144, 2
        %v3146 = vmax.f32 %v3144, %v3145
        %v3147 = vrot.slane %v3146, 1
        %v3148 = vmax.f32 %v3146, %v3147
        %v3149 = vsel %vm2938, %v2399, -inf
        %v3150 = vrot.slane %v3149, 4
        %v3151 = vmax.f32 %v3149, %v3150
        %v3152 = vrot.slane %v3151, 2
        %v3153 = vmax.f32 %v3151, %v3152
        %v3154 = vrot.slane %v3153, 1
        %v3155 = vmax.f32 %v3153, %v3154
        %v3156 = vsel %vm2938, %v2401, -inf
        %v3157 = vrot.slane %v3156, 4
        %v3158 = vmax.f32 %v3156, %v3157
        %v3159 = vrot.slane %v3158, 2
        %v3160 = vmax.f32 %v3158, %v3159
        %v3161 = vrot.slane %v3160, 1
        %v3162 = vmax.f32 %v3160, %v3161
        %v3163 = vsel %vm2938, %v2409, -inf
        %v3164 = vrot.slane %v3163, 4
        %v3165 = vmax.f32 %v3163, %v3164
        %v3166 = vrot.slane %v3165, 2
        %v3167 = vmax.f32 %v3165, %v3166
        %v3168 = vrot.slane %v3167, 1
        %v3169 = vmax.f32 %v3167, %v3168
        %v3170 = vsel %vm2938, %v2417, -inf
        %v3171 = vrot.slane %v3170, 4
        %v3172 = vmax.f32 %v3170, %v3171
        %v3173 = vrot.slane %v3172, 2
        %v3174 = vmax.f32 %v3172, %v3173
        %v3175 = vrot.slane %v3174, 1
        %v3176 = vmax.f32 %v3174, %v3175
        %v3177 = vsel %vm2938, %v2416, -inf
        %v3178 = vrot.slane %v3177, 4
        %v3179 = vmax.f32 %v3177, %v3178
        %v3180 = vrot.slane %v3179, 2
        %v3181 = vmax.f32 %v3179, %v3180
        %v3182 = vrot.slane %v3181, 1
        %v3183 = vmax.f32 %v3181, %v3182
        %v3184 = vsel %vm2938, %v2418, -inf
        %v3185 = vrot.slane %v3184, 4
        %v3186 = vmax.f32 %v3184, %v3185
        %v3187 = vrot.slane %v3186, 2
        %v3188 = vmax.f32 %v3186, %v3187
        %v3189 = vrot.slane %v3188, 1
        %v3190 = vmax.f32 %v3188, %v3189
        %v3191 = vsel %vm2938, %v2426, -inf
        %v3192 = vrot.slane %v3191, 4
        %v3193 = vmax.f32 %v3191, %v3192
        %v3194 = vrot.slane %v3193, 2
        %v3195 = vmax.f32 %v3193, %v3194
        %v3196 = vrot.slane %v3195, 1
        %v3197 = vmax.f32 %v3195, %v3196
        %v3198 = vsel %vm2938, %v2434, -inf
        %v3199 = vrot.slane %v3198, 4
        %v3200 = vmax.f32 %v3198, %v3199
        %v3201 = vrot.slane %v3200, 2
        %v3202 = vmax.f32 %v3200, %v3201
        %v3203 = vrot.slane %v3202, 1
        %v3204 = vmax.f32 %v3202, %v3203
        %v3205 = vsel %vm2938, %v2433, -inf
        %v3206 = vrot.slane %v3205, 4
        %v3207 = vmax.f32 %v3205, %v3206
        %v3208 = vrot.slane %v3207, 2
        %v3209 = vmax.f32 %v3207, %v3208
        %v3210 = vrot.slane %v3209, 1
        %v3211 = vmax.f32 %v3209, %v3210
        %v3212 = vsel %vm2938, %v2435, -inf
        %v3213 = vrot.slane %v3212, 4
        %v3214 = vmax.f32 %v3212, %v3213
        %v3215 = vrot.slane %v3214, 2
        %v3216 = vmax.f32 %v3214, %v3215
        %v3217 = vrot.slane %v3216, 1
        %v3218 = vmax.f32 %v3216, %v3217
        %v3219 = vsel %vm2938, %v2443, -inf
        %v3220 = vrot.slane %v3219, 4
        %v3221 = vmax.f32 %v3219, %v3220
        %v3222 = vrot.slane %v3221, 2
        %v3223 = vmax.f32 %v3221, %v3222
        %v3224 = vrot.slane %v3223, 1
        %v3225 = vmax.f32 %v3223, %v3224
        %v3226 = vsel %vm2938, %v2451, -inf
        %v3227 = vrot.slane %v3226, 4
        %v3228 = vmax.f32 %v3226, %v3227
        %v3229 = vrot.slane %v3228, 2
        %v3230 = vmax.f32 %v3228, %v3229
        %v3231 = vrot.slane %v3230, 1
        %v3232 = vmax.f32 %v3230, %v3231
        %v3233 = vsel %vm2938, %v2450, -inf
        %v3234 = vrot.slane %v3233, 4
        %v3235 = vmax.f32 %v3233, %v3234
        %v3236 = vrot.slane %v3235, 2
        %v3237 = vmax.f32 %v3235, %v3236
        %v3238 = vrot.slane %v3237, 1
        %v3239 = vmax.f32 %v3237, %v3238
        %v3240 = vsel %vm2938, %v2452, -inf
        %v3241 = vrot.slane %v3240, 4
        %v3242 = vmax.f32 %v3240, %v3241
        %v3243 = vrot.slane %v3242, 2
        %v3244 = vmax.f32 %v3242, %v3243
        %v3245 = vrot.slane %v3244, 1
        %v3246 = vmax.f32 %v3244, %v3245
        %v3247 = vsel %vm2938, %v2460, -inf
        %v3248 = vrot.slane %v3247, 4
        %v3249 = vmax.f32 %v3247, %v3248
        %v3250 = vrot.slane %v3249, 2
        %v3251 = vmax.f32 %v3249, %v3250
        %v3252 = vrot.slane %v3251, 1
        %v3253 = vmax.f32 %v3251, %v3252
        %v3254 = vsel %vm2938, %v2468, -inf
        %v3255 = vrot.slane %v3254, 4
        %v3256 = vmax.f32 %v3254, %v3255
        %v3257 = vrot.slane %v3256, 2
        %v3258 = vmax.f32 %v3256, %v3257
        %v3259 = vrot.slane %v3258, 1
        %v3260 = vmax.f32 %v3258, %v3259
        %v3261 = vsel %vm2938, %v2467, -inf
        %v3262 = vrot.slane %v3261, 4
        %v3263 = vmax.f32 %v3261, %v3262
        %v3264 = vrot.slane %v3263, 2
        %v3265 = vmax.f32 %v3263, %v3264
        %v3266 = vrot.slane %v3265, 1
        %v3267 = vmax.f32 %v3265, %v3266
        %v3268 = vsel %vm2938, %v2469, -inf
        %v3269 = vrot.slane %v3268, 4
        %v3270 = vmax.f32 %v3268, %v3269
        %v3271 = vrot.slane %v3270, 2
        %v3272 = vmax.f32 %v3270, %v3271
        %v3273 = vrot.slane %v3272, 1
        %v3274 = vmax.f32 %v3272, %v3273
        %v3275 = vsel %vm2938, %v2477, -inf
        %v3276 = vrot.slane %v3275, 4
        %v3277 = vmax.f32 %v3275, %v3276
        %v3278 = vrot.slane %v3277, 2
        %v3279 = vmax.f32 %v3277, %v3278
        %v3280 = vrot.slane %v3279, 1
        %v3281 = vmax.f32 %v3279, %v3280
        %v3282 = vsel %vm2938, %v2485, -inf
        %v3283 = vrot.slane %v3282, 4
        %v3284 = vmax.f32 %v3282, %v3283
        %v3285 = vrot.slane %v3284, 2
        %v3286 = vmax.f32 %v3284, %v3285
        %v3287 = vrot.slane %v3286, 1
        %v3288 = vmax.f32 %v3286, %v3287
        %v3289 = vsel %vm2938, %v2484, -inf
        %v3290 = vrot.slane %v3289, 4
        %v3291 = vmax.f32 %v3289, %v3290
        %v3292 = vrot.slane %v3291, 2
        %v3293 = vmax.f32 %v3291, %v3292
        %v3294 = vrot.slane %v3293, 1
        %v3295 = vmax.f32 %v3293, %v3294
        %v3296 = vsel %vm2938, %v2486, -inf
        %v3297 = vrot.slane %v3296, 4
        %v3298 = vmax.f32 %v3296, %v3297
        %v3299 = vrot.slane %v3298, 2
        %v3300 = vmax.f32 %v3298, %v3299
        %v3301 = vrot.slane %v3300, 1
        %v3302 = vmax.f32 %v3300, %v3301
        %v3303 = vsel %vm2938, %v2494, -inf
        %v3304 = vrot.slane %v3303, 4
        %v3305 = vmax.f32 %v3303, %v3304
        %v3306 = vrot.slane %v3305, 2
        %v3307 = vmax.f32 %v3305, %v3306
        %v3308 = vrot.slane %v3307, 1
        %v3309 = vmax.f32 %v3307, %v3308
        %v3310 = vsel %vm2938, %v2502, -inf
        %v3311 = vrot.slane %v3310, 4
        %v3312 = vmax.f32 %v3310, %v3311
        %v3313 = vrot.slane %v3312, 2
        %v3314 = vmax.f32 %v3312, %v3313
        %v3315 = vrot.slane %v3314, 1
        %v3316 = vmax.f32 %v3314, %v3315
        %v3317 = vsel %vm2938, %v2501, -inf
        %v3318 = vrot.slane %v3317, 4
        %v3319 = vmax.f32 %v3317, %v3318
        %v3320 = vrot.slane %v3319, 2
        %v3321 = vmax.f32 %v3319, %v3320
        %v3322 = vrot.slane %v3321, 1
        %v3323 = vmax.f32 %v3321, %v3322
        %v3324 = vsel %vm2938, %v2503, -inf
        %v3325 = vrot.slane %v3324, 4
        %v3326 = vmax.f32 %v3324, %v3325
        %v3327 = vrot.slane %v3326, 2
        %v3328 = vmax.f32 %v3326, %v3327
        %v3329 = vrot.slane %v3328, 1
        %v3330 = vmax.f32 %v3328, %v3329
        %v3331 = vsel %vm2938, %v2511, -inf
        %v3332 = vrot.slane %v3331, 4
        %v3333 = vmax.f32 %v3331, %v3332
        %v3334 = vrot.slane %v3333, 2
        %v3335 = vmax.f32 %v3333, %v3334
        %v3336 = vrot.slane %v3335, 1
        %v3337 = vmax.f32 %v3335, %v3336
        %v3338 = vsel %vm2938, %v2519, -inf
        %v3339 = vrot.slane %v3338, 4
        %v3340 = vmax.f32 %v3338, %v3339
        %v3341 = vrot.slane %v3340, 2
        %v3342 = vmax.f32 %v3340, %v3341
        %v3343 = vrot.slane %v3342, 1
        %v3344 = vmax.f32 %v3342, %v3343
        %v3345 = vsel %vm2938, %v2518, -inf
        %v3346 = vrot.slane %v3345, 4
        %v3347 = vmax.f32 %v3345, %v3346
        %v3348 = vrot.slane %v3347, 2
        %v3349 = vmax.f32 %v3347, %v3348
        %v3350 = vrot.slane %v3349, 1
        %v3351 = vmax.f32 %v3349, %v3350
        %v3352 = vsel %vm2938, %v2520, -inf
        %v3353 = vrot.slane %v3352, 4
        %v3354 = vmax.f32 %v3352, %v3353
        %v3355 = vrot.slane %v3354, 2
        %v3356 = vmax.f32 %v3354, %v3355
        %v3357 = vrot.slane %v3356, 1
        %v3358 = vmax.f32 %v3356, %v3357
        %v3359 = vsel %vm2938, %v2528, -inf
        %v3360 = vrot.slane %v3359, 4
        %v3361 = vmax.f32 %v3359, %v3360
        %v3362 = vrot.slane %v3361, 2
        %v3363 = vmax.f32 %v3361, %v3362
        %v3364 = vrot.slane %v3363, 1
        %v3365 = vmax.f32 %v3363, %v3364
        %v3366 = vsel %vm2938, %v2536, -inf
        %v3367 = vrot.slane %v3366, 4
        %v3368 = vmax.f32 %v3366, %v3367
        %v3369 = vrot.slane %v3368, 2
        %v3370 = vmax.f32 %v3368, %v3369
        %v3371 = vrot.slane %v3370, 1
        %v3372 = vmax.f32 %v3370, %v3371
        %v3373 = vsel %vm2938, %v2535, -inf
        %v3374 = vrot.slane %v3373, 4
        %v3375 = vmax.f32 %v3373, %v3374
        %v3376 = vrot.slane %v3375, 2
        %v3377 = vmax.f32 %v3375, %v3376
        %v3378 = vrot.slane %v3377, 1
        %v3379 = vmax.f32 %v3377, %v3378
        %v3380 = vsel %vm2938, %v2537, -inf
        %v3381 = vrot.slane %v3380, 4
        %v3382 = vmax.f32 %v3380, %v3381
        %v3383 = vrot.slane %v3382, 2
        %v3384 = vmax.f32 %v3382, %v3383
        %v3385 = vrot.slane %v3384, 1
        %v3386 = vmax.f32 %v3384, %v3385
        %v3387 = vsel %vm2938, %v2545, -inf
        %v3388 = vrot.slane %v3387, 4
        %v3389 = vmax.f32 %v3387, %v3388
        %v3390 = vrot.slane %v3389, 2
        %v3391 = vmax.f32 %v3389, %v3390
        %v3392 = vrot.slane %v3391, 1
        %v3393 = vmax.f32 %v3391, %v3392
        %v3394 = vsel %vm2938, %v2553, -inf
        %v3395 = vrot.slane %v3394, 4
        %v3396 = vmax.f32 %v3394, %v3395
        %v3397 = vrot.slane %v3396, 2
        %v3398 = vmax.f32 %v3396, %v3397
        %v3399 = vrot.slane %v3398, 1
        %v3400 = vmax.f32 %v3398, %v3399
        %v3401 = vsel %vm2938, %v2552, -inf
        %v3402 = vrot.slane %v3401, 4
        %v3403 = vmax.f32 %v3401, %v3402
        %v3404 = vrot.slane %v3403, 2
        %v3405 = vmax.f32 %v3403, %v3404
        %v3406 = vrot.slane %v3405, 1
        %v3407 = vmax.f32 %v3405, %v3406
        %v3408 = vsel %vm2938, %v2554, -inf
        %v3409 = vrot.slane %v3408, 4
        %v3410 = vmax.f32 %v3408, %v3409
        %v3411 = vrot.slane %v3410, 2
        %v3412 = vmax.f32 %v3410, %v3411
        %v3413 = vrot.slane %v3412, 1
        %v3414 = vmax.f32 %v3412, %v3413
        %v3415 = vsel %vm2938, %v2562, -inf
        %v3416 = vrot.slane %v3415, 4
        %v3417 = vmax.f32 %v3415, %v3416
        %v3418 = vrot.slane %v3417, 2
        %v3419 = vmax.f32 %v3417, %v3418
        %v3420 = vrot.slane %v3419, 1
        %v3421 = vmax.f32 %v3419, %v3420
        %v3422 = vsel %vm2938, %v2570, -inf
        %v3423 = vrot.slane %v3422, 4
        %v3424 = vmax.f32 %v3422, %v3423
        %v3425 = vrot.slane %v3424, 2
        %v3426 = vmax.f32 %v3424, %v3425
        %v3427 = vrot.slane %v3426, 1
        %v3428 = vmax.f32 %v3426, %v3427
        %v3429 = vsel %vm2938, %v2569, -inf
        %v3430 = vrot.slane %v3429, 4
        %v3431 = vmax.f32 %v3429, %v3430
        %v3432 = vrot.slane %v3431, 2
        %v3433 = vmax.f32 %v3431, %v3432
        %v3434 = vrot.slane %v3433, 1
        %v3435 = vmax.f32 %v3433, %v3434
        %v3436 = vsel %vm2938, %v2571, -inf
        %v3437 = vrot.slane %v3436, 4
        %v3438 = vmax.f32 %v3436, %v3437
        %v3439 = vrot.slane %v3438, 2
        %v3440 = vmax.f32 %v3438, %v3439
        %v3441 = vrot.slane %v3440, 1
        %v3442 = vmax.f32 %v3440, %v3441
        %v3443 = vsel %vm2938, %v2579, -inf
        %v3444 = vrot.slane %v3443, 4
        %v3445 = vmax.f32 %v3443, %v3444
        %v3446 = vrot.slane %v3445, 2
        %v3447 = vmax.f32 %v3445, %v3446
        %v3448 = vrot.slane %v3447, 1
        %v3449 = vmax.f32 %v3447, %v3448
        %v3450 = vsel %vm2938, %v2587, -inf
        %v3451 = vrot.slane %v3450, 4
        %v3452 = vmax.f32 %v3450, %v3451
        %v3453 = vrot.slane %v3452, 2
        %v3454 = vmax.f32 %v3452, %v3453
        %v3455 = vrot.slane %v3454, 1
        %v3456 = vmax.f32 %v3454, %v3455
        %v3457 = vsel %vm2938, %v2586, -inf
        %v3458 = vrot.slane %v3457, 4
        %v3459 = vmax.f32 %v3457, %v3458
        %v3460 = vrot.slane %v3459, 2
        %v3461 = vmax.f32 %v3459, %v3460
        %v3462 = vrot.slane %v3461, 1
        %v3463 = vmax.f32 %v3461, %v3462
        %v3464 = vsel %vm2938, %v2588, -inf
        %v3465 = vrot.slane %v3464, 4
        %v3466 = vmax.f32 %v3464, %v3465
        %v3467 = vrot.slane %v3466, 2
        %v3468 = vmax.f32 %v3466, %v3467
        %v3469 = vrot.slane %v3468, 1
        %v3470 = vmax.f32 %v3468, %v3469
        %v3471 = vsel %vm2938, %v2596, -inf
        %v3472 = vrot.slane %v3471, 4
        %v3473 = vmax.f32 %v3471, %v3472
        %v3474 = vrot.slane %v3473, 2
        %v3475 = vmax.f32 %v3473, %v3474
        %v3476 = vrot.slane %v3475, 1
        %v3477 = vmax.f32 %v3475, %v3476
        %v3478 = vsel %vm2938, %v2604, -inf
        %v3479 = vrot.slane %v3478, 4
        %v3480 = vmax.f32 %v3478, %v3479
        %v3481 = vrot.slane %v3480, 2
        %v3482 = vmax.f32 %v3480, %v3481
        %v3483 = vrot.slane %v3482, 1
        %v3484 = vmax.f32 %v3482, %v3483
        %v3485 = vsel %vm2938, %v2603, -inf
        %v3486 = vrot.slane %v3485, 4
        %v3487 = vmax.f32 %v3485, %v3486
        %v3488 = vrot.slane %v3487, 2
        %v3489 = vmax.f32 %v3487, %v3488
        %v3490 = vrot.slane %v3489, 1
        %v3491 = vmax.f32 %v3489, %v3490
        %v3492 = vsel %vm2938, %v2605, -inf
        %v3493 = vrot.slane %v3492, 4
        %v3494 = vmax.f32 %v3492, %v3493
        %v3495 = vrot.slane %v3494, 2
        %v3496 = vmax.f32 %v3494, %v3495
        %v3497 = vrot.slane %v3496, 1
        %v3498 = vmax.f32 %v3496, %v3497
        %v3499 = vsel %vm2938, %v2613, -inf
        %v3500 = vrot.slane %v3499, 4
        %v3501 = vmax.f32 %v3499, %v3500
        %v3502 = vrot.slane %v3501, 2
        %v3503 = vmax.f32 %v3501, %v3502
        %v3504 = vrot.slane %v3503, 1
        %v3505 = vmax.f32 %v3503, %v3504
        %v3506 = vsel %vm2938, %v2621, -inf
        %v3507 = vrot.slane %v3506, 4
        %v3508 = vmax.f32 %v3506, %v3507
        %v3509 = vrot.slane %v3508, 2
        %v3510 = vmax.f32 %v3508, %v3509
        %v3511 = vrot.slane %v3510, 1
        %v3512 = vmax.f32 %v3510, %v3511
        %v3513 = vsel %vm2938, %v2620, -inf
        %v3514 = vrot.slane %v3513, 4
        %v3515 = vmax.f32 %v3513, %v3514
        %v3516 = vrot.slane %v3515, 2
        %v3517 = vmax.f32 %v3515, %v3516
        %v3518 = vrot.slane %v3517, 1
        %v3519 = vmax.f32 %v3517, %v3518
        %v3520 = vsel %vm2938, %v2622, -inf
        %v3521 = vrot.slane %v3520, 4
        %v3522 = vmax.f32 %v3520, %v3521
        %v3523 = vrot.slane %v3522, 2
        %v3524 = vmax.f32 %v3522, %v3523
        %v3525 = vrot.slane %v3524, 1
        %v3526 = vmax.f32 %v3524, %v3525
        %v3527 = vsel %vm2938, %v2630, -inf
        %v3528 = vrot.slane %v3527, 4
        %v3529 = vmax.f32 %v3527, %v3528
        %v3530 = vrot.slane %v3529, 2
        %v3531 = vmax.f32 %v3529, %v3530
        %v3532 = vrot.slane %v3531, 1
        %v3533 = vmax.f32 %v3531, %v3532
        %v3534 = vsel %vm2938, %v2638, -inf
        %v3535 = vrot.slane %v3534, 4
        %v3536 = vmax.f32 %v3534, %v3535
        %v3537 = vrot.slane %v3536, 2
        %v3538 = vmax.f32 %v3536, %v3537
        %v3539 = vrot.slane %v3538, 1
        %v3540 = vmax.f32 %v3538, %v3539
        %v3541 = vsel %vm2938, %v2637, -inf
        %v3542 = vrot.slane %v3541, 4
        %v3543 = vmax.f32 %v3541, %v3542
        %v3544 = vrot.slane %v3543, 2
        %v3545 = vmax.f32 %v3543, %v3544
        %v3546 = vrot.slane %v3545, 1
        %v3547 = vmax.f32 %v3545, %v3546
        %v3548 = vsel %vm2938, %v2639, -inf
        %v3549 = vrot.slane %v3548, 4
        %v3550 = vmax.f32 %v3548, %v3549
        %v3551 = vrot.slane %v3550, 2
        %v3552 = vmax.f32 %v3550, %v3551
        %v3553 = vrot.slane %v3552, 1
        %v3554 = vmax.f32 %v3552, %v3553
        %v3555 = vsel %vm2938, %v2647, -inf
        %v3556 = vrot.slane %v3555, 4
        %v3557 = vmax.f32 %v3555, %v3556
        %v3558 = vrot.slane %v3557, 2
        %v3559 = vmax.f32 %v3557, %v3558
        %v3560 = vrot.slane %v3559, 1
        %v3561 = vmax.f32 %v3559, %v3560
        %v3562 = vsel %vm2938, %v2655, -inf
        %v3563 = vrot.slane %v3562, 4
        %v3564 = vmax.f32 %v3562, %v3563
        %v3565 = vrot.slane %v3564, 2
        %v3566 = vmax.f32 %v3564, %v3565
        %v3567 = vrot.slane %v3566, 1
        %v3568 = vmax.f32 %v3566, %v3567
        %v3569 = vsel %vm2938, %v2654, -inf
        %v3570 = vrot.slane %v3569, 4
        %v3571 = vmax.f32 %v3569, %v3570
        %v3572 = vrot.slane %v3571, 2
        %v3573 = vmax.f32 %v3571, %v3572
        %v3574 = vrot.slane %v3573, 1
        %v3575 = vmax.f32 %v3573, %v3574
        %v3576 = vsel %vm2938, %v2656, -inf
        %v3577 = vrot.slane %v3576, 4
        %v3578 = vmax.f32 %v3576, %v3577
        %v3579 = vrot.slane %v3578, 2
        %v3580 = vmax.f32 %v3578, %v3579
        %v3581 = vrot.slane %v3580, 1
        %v3582 = vmax.f32 %v3580, %v3581
        %v3583 = vsel %vm2938, %v2664, -inf
        %v3584 = vrot.slane %v3583, 4
        %v3585 = vmax.f32 %v3583, %v3584
        %v3586 = vrot.slane %v3585, 2
        %v3587 = vmax.f32 %v3585, %v3586
        %v3588 = vrot.slane %v3587, 1
        %v3589 = vmax.f32 %v3587, %v3588
        %v3590 = vsel %vm2938, %v2672, -inf
        %v3591 = vrot.slane %v3590, 4
        %v3592 = vmax.f32 %v3590, %v3591
        %v3593 = vrot.slane %v3592, 2
        %v3594 = vmax.f32 %v3592, %v3593
        %v3595 = vrot.slane %v3594, 1
        %v3596 = vmax.f32 %v3594, %v3595
        %v3597 = vsel %vm2938, %v2671, -inf
        %v3598 = vrot.slane %v3597, 4
        %v3599 = vmax.f32 %v3597, %v3598
        %v3600 = vrot.slane %v3599, 2
        %v3601 = vmax.f32 %v3599, %v3600
        %v3602 = vrot.slane %v3601, 1
        %v3603 = vmax.f32 %v3601, %v3602
        %v3604 = vsel %vm2938, %v2673, -inf
        %v3605 = vrot.slane %v3604, 4
        %v3606 = vmax.f32 %v3604, %v3605
        %v3607 = vrot.slane %v3606, 2
        %v3608 = vmax.f32 %v3606, %v3607
        %v3609 = vrot.slane %v3608, 1
        %v3610 = vmax.f32 %v3608, %v3609
        %v3611 = vsel %vm2938, %v2681, -inf
        %v3612 = vrot.slane %v3611, 4
        %v3613 = vmax.f32 %v3611, %v3612
        %v3614 = vrot.slane %v3613, 2
        %v3615 = vmax.f32 %v3613, %v3614
        %v3616 = vrot.slane %v3615, 1
        %v3617 = vmax.f32 %v3615, %v3616
        %v3618 = vsel %vm2938, %v2689, -inf
        %v3619 = vrot.slane %v3618, 4
        %v3620 = vmax.f32 %v3618, %v3619
        %v3621 = vrot.slane %v3620, 2
        %v3622 = vmax.f32 %v3620, %v3621
        %v3623 = vrot.slane %v3622, 1
        %v3624 = vmax.f32 %v3622, %v3623
        %v3625 = vsel %vm2938, %v2688, -inf
        %v3626 = vrot.slane %v3625, 4
        %v3627 = vmax.f32 %v3625, %v3626
        %v3628 = vrot.slane %v3627, 2
        %v3629 = vmax.f32 %v3627, %v3628
        %v3630 = vrot.slane %v3629, 1
        %v3631 = vmax.f32 %v3629, %v3630
        %v3632 = vsel %vm2938, %v2690, -inf
        %v3633 = vrot.slane %v3632, 4
        %v3634 = vmax.f32 %v3632, %v3633
        %v3635 = vrot.slane %v3634, 2
        %v3636 = vmax.f32 %v3634, %v3635
        %v3637 = vrot.slane %v3636, 1
        %v3638 = vmax.f32 %v3636, %v3637
        %v3639 = vsel %vm2938, %v2698, -inf
        %v3640 = vrot.slane %v3639, 4
        %v3641 = vmax.f32 %v3639, %v3640
        %v3642 = vrot.slane %v3641, 2
        %v3643 = vmax.f32 %v3641, %v3642
        %v3644 = vrot.slane %v3643, 1
        %v3645 = vmax.f32 %v3643, %v3644
        %v3646 = vsel %vm2938, %v2706, -inf
        %v3647 = vrot.slane %v3646, 4
        %v3648 = vmax.f32 %v3646, %v3647
        %v3649 = vrot.slane %v3648, 2
        %v3650 = vmax.f32 %v3648, %v3649
        %v3651 = vrot.slane %v3650, 1
        %v3652 = vmax.f32 %v3650, %v3651
        %v3653 = vsel %vm2938, %v2705, -inf
        %v3654 = vrot.slane %v3653, 4
        %v3655 = vmax.f32 %v3653, %v3654
        %v3656 = vrot.slane %v3655, 2
        %v3657 = vmax.f32 %v3655, %v3656
        %v3658 = vrot.slane %v3657, 1
        %v3659 = vmax.f32 %v3657, %v3658
        %v3660 = vsel %vm2938, %v2707, -inf
        %v3661 = vrot.slane %v3660, 4
        %v3662 = vmax.f32 %v3660, %v3661
        %v3663 = vrot.slane %v3662, 2
        %v3664 = vmax.f32 %v3662, %v3663
        %v3665 = vrot.slane %v3664, 1
        %v3666 = vmax.f32 %v3664, %v3665
        %v3667 = vsel %vm2938, %v2715, -inf
        %v3668 = vrot.slane %v3667, 4
        %v3669 = vmax.f32 %v3667, %v3668
        %v3670 = vrot.slane %v3669, 2
        %v3671 = vmax.f32 %v3669, %v3670
        %v3672 = vrot.slane %v3671, 1
        %v3673 = vmax.f32 %v3671, %v3672
        %v3674 = vsel %vm2938, %v2723, -inf
        %v3675 = vrot.slane %v3674, 4
        %v3676 = vmax.f32 %v3674, %v3675
        %v3677 = vrot.slane %v3676, 2
        %v3678 = vmax.f32 %v3676, %v3677
        %v3679 = vrot.slane %v3678, 1
        %v3680 = vmax.f32 %v3678, %v3679
        %v3681 = vsel %vm2938, %v2722, -inf
        %v3682 = vrot.slane %v3681, 4
        %v3683 = vmax.f32 %v3681, %v3682
        %v3684 = vrot.slane %v3683, 2
        %v3685 = vmax.f32 %v3683, %v3684
        %v3686 = vrot.slane %v3685, 1
        %v3687 = vmax.f32 %v3685, %v3686
        %v3688 = vsel %vm2938, %v2724, -inf
        %v3689 = vrot.slane %v3688, 4
        %v3690 = vmax.f32 %v3688, %v3689
        %v3691 = vrot.slane %v3690, 2
        %v3692 = vmax.f32 %v3690, %v3691
        %v3693 = vrot.slane %v3692, 1
        %v3694 = vmax.f32 %v3692, %v3693
        %v3695 = vsel %vm2938, %v2732, -inf
        %v3696 = vrot.slane %v3695, 4
        %v3697 = vmax.f32 %v3695, %v3696
        %v3698 = vrot.slane %v3697, 2
        %v3699 = vmax.f32 %v3697, %v3698
        %v3700 = vrot.slane %v3699, 1
        %v3701 = vmax.f32 %v3699, %v3700
        %v3702 = vsel %vm2938, %v2740, -inf
        %v3703 = vrot.slane %v3702, 4
        %v3704 = vmax.f32 %v3702, %v3703
        %v3705 = vrot.slane %v3704, 2
        %v3706 = vmax.f32 %v3704, %v3705
        %v3707 = vrot.slane %v3706, 1
        %v3708 = vmax.f32 %v3706, %v3707
        %v3709 = vsel %vm2938, %v2739, -inf
        %v3710 = vrot.slane %v3709, 4
        %v3711 = vmax.f32 %v3709, %v3710
        %v3712 = vrot.slane %v3711, 2
        %v3713 = vmax.f32 %v3711, %v3712
        %v3714 = vrot.slane %v3713, 1
        %v3715 = vmax.f32 %v3713, %v3714
        %v3716 = vsel %vm2938, %v2741, -inf
        %v3717 = vrot.slane %v3716, 4
        %v3718 = vmax.f32 %v3716, %v3717
        %v3719 = vrot.slane %v3718, 2
        %v3720 = vmax.f32 %v3718, %v3719
        %v3721 = vrot.slane %v3720, 1
        %v3722 = vmax.f32 %v3720, %v3721
        %v3723 = vsel %vm2938, %v2749, -inf
        %v3724 = vrot.slane %v3723, 4
        %v3725 = vmax.f32 %v3723, %v3724
        %v3726 = vrot.slane %v3725, 2
        %v3727 = vmax.f32 %v3725, %v3726
        %v3728 = vrot.slane %v3727, 1
        %v3729 = vmax.f32 %v3727, %v3728
        %v3730 = vsel %vm2938, %v2757, -inf
        %v3731 = vrot.slane %v3730, 4
        %v3732 = vmax.f32 %v3730, %v3731
        %v3733 = vrot.slane %v3732, 2
        %v3734 = vmax.f32 %v3732, %v3733
        %v3735 = vrot.slane %v3734, 1
        %v3736 = vmax.f32 %v3734, %v3735
        %v3737 = vsel %vm2938, %v2756, -inf
        %v3738 = vrot.slane %v3737, 4
        %v3739 = vmax.f32 %v3737, %v3738
        %v3740 = vrot.slane %v3739, 2
        %v3741 = vmax.f32 %v3739, %v3740
        %v3742 = vrot.slane %v3741, 1
        %v3743 = vmax.f32 %v3741, %v3742
        %v3744 = vsel %vm2938, %v2758, -inf
        %v3745 = vrot.slane %v3744, 4
        %v3746 = vmax.f32 %v3744, %v3745
        %v3747 = vrot.slane %v3746, 2
        %v3748 = vmax.f32 %v3746, %v3747
        %v3749 = vrot.slane %v3748, 1
        %v3750 = vmax.f32 %v3748, %v3749
        %v3751 = vsel %vm2938, %v2766, -inf
        %v3752 = vrot.slane %v3751, 4
        %v3753 = vmax.f32 %v3751, %v3752
        %v3754 = vrot.slane %v3753, 2
        %v3755 = vmax.f32 %v3753, %v3754
        %v3756 = vrot.slane %v3755, 1
        %v3757 = vmax.f32 %v3755, %v3756
        %v3758 = vsel %vm2938, %v2774, -inf
        %v3759 = vrot.slane %v3758, 4
        %v3760 = vmax.f32 %v3758, %v3759
        %v3761 = vrot.slane %v3760, 2
        %v3762 = vmax.f32 %v3760, %v3761
        %v3763 = vrot.slane %v3762, 1
        %v3764 = vmax.f32 %v3762, %v3763
        %v3765 = vsel %vm2938, %v2773, -inf
        %v3766 = vrot.slane %v3765, 4
        %v3767 = vmax.f32 %v3765, %v3766
        %v3768 = vrot.slane %v3767, 2
        %v3769 = vmax.f32 %v3767, %v3768
        %v3770 = vrot.slane %v3769, 1
        %v3771 = vmax.f32 %v3769, %v3770
        %v3772 = vsel %vm2938, %v2775, -inf
        %v3773 = vrot.slane %v3772, 4
        %v3774 = vmax.f32 %v3772, %v3773
        %v3775 = vrot.slane %v3774, 2
        %v3776 = vmax.f32 %v3774, %v3775
        %v3777 = vrot.slane %v3776, 1
        %v3778 = vmax.f32 %v3776, %v3777
        %v3779 = vsel %vm2938, %v2783, -inf
        %v3780 = vrot.slane %v3779, 4
        %v3781 = vmax.f32 %v3779, %v3780
        %v3782 = vrot.slane %v3781, 2
        %v3783 = vmax.f32 %v3781, %v3782
        %v3784 = vrot.slane %v3783, 1
        %v3785 = vmax.f32 %v3783, %v3784
        %v3786 = vsel %vm2938, %v2791, -inf
        %v3787 = vrot.slane %v3786, 4
        %v3788 = vmax.f32 %v3786, %v3787
        %v3789 = vrot.slane %v3788, 2
        %v3790 = vmax.f32 %v3788, %v3789
        %v3791 = vrot.slane %v3790, 1
        %v3792 = vmax.f32 %v3790, %v3791
        %v3793 = vsel %vm2938, %v2790, -inf
        %v3794 = vrot.slane %v3793, 4
        %v3795 = vmax.f32 %v3793, %v3794
        %v3796 = vrot.slane %v3795, 2
        %v3797 = vmax.f32 %v3795, %v3796
        %v3798 = vrot.slane %v3797, 1
        %v3799 = vmax.f32 %v3797, %v3798
        %v3800 = vsel %vm2938, %v2792, -inf
        %v3801 = vrot.slane %v3800, 4
        %v3802 = vmax.f32 %v3800, %v3801
        %v3803 = vrot.slane %v3802, 2
        %v3804 = vmax.f32 %v3802, %v3803
        %v3805 = vrot.slane %v3804, 1
        %v3806 = vmax.f32 %v3804, %v3805
        %v3807 = vsel %vm2938, %v2800, -inf
        %v3808 = vrot.slane %v3807, 4
        %v3809 = vmax.f32 %v3807, %v3808
        %v3810 = vrot.slane %v3809, 2
        %v3811 = vmax.f32 %v3809, %v3810
        %v3812 = vrot.slane %v3811, 1
        %v3813 = vmax.f32 %v3811, %v3812
        %v3814 = vsel %vm2938, %v2808, -inf
        %v3815 = vrot.slane %v3814, 4
        %v3816 = vmax.f32 %v3814, %v3815
        %v3817 = vrot.slane %v3816, 2
        %v3818 = vmax.f32 %v3816, %v3817
        %v3819 = vrot.slane %v3818, 1
        %v3820 = vmax.f32 %v3818, %v3819
        %v3821 = vsel %vm2938, %v2807, -inf
        %v3822 = vrot.slane %v3821, 4
        %v3823 = vmax.f32 %v3821, %v3822
        %v3824 = vrot.slane %v3823, 2
        %v3825 = vmax.f32 %v3823, %v3824
        %v3826 = vrot.slane %v3825, 1
        %v3827 = vmax.f32 %v3825, %v3826
        %v3828 = vsel %vm2938, %v2809, -inf
        %v3829 = vrot.slane %v3828, 4
        %v3830 = vmax.f32 %v3828, %v3829
        %v3831 = vrot.slane %v3830, 2
        %v3832 = vmax.f32 %v3830, %v3831
        %v3833 = vrot.slane %v3832, 1
        %v3834 = vmax.f32 %v3832, %v3833
        %vm3835 = vcmask 97280
        %v3836 = vsel %vm3835, %v2945, -inf
        %v3837 = vsel %vm3835, %v3001, -inf
        %v3838 = vmax.f32 %v3836, %v3837
        %v3839 = vsel %vm3835, %v2952, -inf
        %v3840 = vsel %vm3835, %v3008, -inf
        %v3841 = vmax.f32 %v3839, %v3840
        %v3842 = vsel %vm3835, %v2959, -inf
        %v3843 = vsel %vm3835, %v3015, -inf
        %v3844 = vmax.f32 %v3842, %v3843
        %v3845 = vsel %vm3835, %v2966, -inf
        %v3846 = vsel %vm3835, %v3022, -inf
        %v3847 = vmax.f32 %v3845, %v3846
        %v3848 = vsel %vm3835, %v2973, -inf
        %v3849 = vsel %vm3835, %v3029, -inf
        %v3850 = vmax.f32 %v3848, %v3849
        %v3851 = vsel %vm3835, %v2980, -inf
        %v3852 = vsel %vm3835, %v3036, -inf
        %v3853 = vmax.f32 %v3851, %v3852
        %v3854 = vsel %vm3835, %v2987, -inf
        %v3855 = vsel %vm3835, %v3043, -inf
        %v3856 = vmax.f32 %v3854, %v3855
        %v3857 = vsel %vm3835, %v2994, -inf
        %v3858 = vsel %vm3835, %v3050, -inf
        %v3859 = vmax.f32 %v3857, %v3858
        %v3860 = vsel %vm3835, %v3057, -inf
        %v3861 = vsel %vm3835, %v3113, -inf
        %v3862 = vmax.f32 %v3860, %v3861
        %v3863 = vsel %vm3835, %v3064, -inf
        %v3864 = vsel %vm3835, %v3120, -inf
        %v3865 = vmax.f32 %v3863, %v3864
        %v3866 = vsel %vm3835, %v3071, -inf
        %v3867 = vsel %vm3835, %v3127, -inf
        %v3868 = vmax.f32 %v3866, %v3867
        %v3869 = vsel %vm3835, %v3078, -inf
        %v3870 = vsel %vm3835, %v3134, -inf
        %v3871 = vmax.f32 %v3869, %v3870
        %v3872 = vsel %vm3835, %v3085, -inf
        %v3873 = vsel %vm3835, %v3141, -inf
        %v3874 = vmax.f32 %v3872, %v3873
        %v3875 = vsel %vm3835, %v3092, -inf
        %v3876 = vsel %vm3835, %v3148, -inf
        %v3877 = vmax.f32 %v3875, %v3876
        %v3878 = vsel %vm3835, %v3099, -inf
        %v3879 = vsel %vm3835, %v3155, -inf
        %v3880 = vmax.f32 %v3878, %v3879
        %v3881 = vsel %vm3835, %v3106, -inf
        %v3882 = vsel %vm3835, %v3162, -inf
        %v3883 = vmax.f32 %v3881, %v3882
        %v3884 = vsel %vm3835, %v3169, -inf
        %v3885 = vsel %vm3835, %v3225, -inf
        %v3886 = vmax.f32 %v3884, %v3885
        %v3887 = vsel %vm3835, %v3176, -inf
        %v3888 = vsel %vm3835, %v3232, -inf
        %v3889 = vmax.f32 %v3887, %v3888
        %v3890 = vsel %vm3835, %v3183, -inf
        %v3891 = vsel %vm3835, %v3239, -inf
        %v3892 = vmax.f32 %v3890, %v3891
        %v3893 = vsel %vm3835, %v3190, -inf
        %v3894 = vsel %vm3835, %v3246, -inf
        %v3895 = vmax.f32 %v3893, %v3894
        %v3896 = vsel %vm3835, %v3197, -inf
        %v3897 = vsel %vm3835, %v3253, -inf
        %v3898 = vmax.f32 %v3896, %v3897
        %v3899 = vsel %vm3835, %v3204, -inf
        %v3900 = vsel %vm3835, %v3260, -inf
        %v3901 = vmax.f32 %v3899, %v3900
        %v3902 = vsel %vm3835, %v3211, -inf
        %v3903 = vsel %vm3835, %v3267, -inf
        %v3904 = vmax.f32 %v3902, %v3903
        %v3905 = vsel %vm3835, %v3218, -inf
        %v3906 = vsel %vm3835, %v3274, -inf
        %v3907 = vmax.f32 %v3905, %v3906
        %v3908 = vsel %vm3835, %v3281, -inf
        %v3909 = vsel %vm3835, %v3337, -inf
        %v3910 = vmax.f32 %v3908, %v3909
        %v3911 = vsel %vm3835, %v3288, -inf
        %v3912 = vsel %vm3835, %v3344, -inf
        %v3913 = vmax.f32 %v3911, %v3912
        %v3914 = vsel %vm3835, %v3295, -inf
        %v3915 = vsel %vm3835, %v3351, -inf
        %v3916 = vmax.f32 %v3914, %v3915
        %v3917 = vsel %vm3835, %v3302, -inf
        %v3918 = vsel %vm3835, %v3358, -inf
        %v3919 = vmax.f32 %v3917, %v3918
        %v3920 = vsel %vm3835, %v3309, -inf
        %v3921 = vsel %vm3835, %v3365, -inf
        %v3922 = vmax.f32 %v3920, %v3921
        %v3923 = vsel %vm3835, %v3316, -inf
        %v3924 = vsel %vm3835, %v3372, -inf
        %v3925 = vmax.f32 %v3923, %v3924
        %v3926 = vsel %vm3835, %v3323, -inf
        %v3927 = vsel %vm3835, %v3379, -inf
        %v3928 = vmax.f32 %v3926, %v3927
        %v3929 = vsel %vm3835, %v3330, -inf
        %v3930 = vsel %vm3835, %v3386, -inf
        %v3931 = vmax.f32 %v3929, %v3930
        %v3932 = vsel %vm3835, %v3393, -inf
        %v3933 = vsel %vm3835, %v3449, -inf
        %v3934 = vmax.f32 %v3932, %v3933
        %v3935 = vsel %vm3835, %v3400, -inf
        %v3936 = vsel %vm3835, %v3456, -inf
        %v3937 = vmax.f32 %v3935, %v3936
        %v3938 = vsel %vm3835, %v3407, -inf
        %v3939 = vsel %vm3835, %v3463, -inf
        %v3940 = vmax.f32 %v3938, %v3939
        %v3941 = vsel %vm3835, %v3414, -inf
        %v3942 = vsel %vm3835, %v3470, -inf
        %v3943 = vmax.f32 %v3941, %v3942
        %v3944 = vsel %vm3835, %v3421, -inf
        %v3945 = vsel %vm3835, %v3477, -inf
        %v3946 = vmax.f32 %v3944, %v3945
        %v3947 = vsel %vm3835, %v3428, -inf
        %v3948 = vsel %vm3835, %v3484, -inf
        %v3949 = vmax.f32 %v3947, %v3948
        %v3950 = vsel %vm3835, %v3435, -inf
        %v3951 = vsel %vm3835, %v3491, -inf
        %v3952 = vmax.f32 %v3950, %v3951
        %v3953 = vsel %vm3835, %v3442, -inf
        %v3954 = vsel %vm3835, %v3498, -inf
        %v3955 = vmax.f32 %v3953, %v3954
        %v3956 = vsel %vm3835, %v3505, -inf
        %v3957 = vsel %vm3835, %v3561, -inf
        %v3958 = vmax.f32 %v3956, %v3957
        %v3959 = vsel %vm3835, %v3512, -inf
        %v3960 = vsel %vm3835, %v3568, -inf
        %v3961 = vmax.f32 %v3959, %v3960
        %v3962 = vsel %vm3835, %v3519, -inf
        %v3963 = vsel %vm3835, %v3575, -inf
        %v3964 = vmax.f32 %v3962, %v3963
        %v3965 = vsel %vm3835, %v3526, -inf
        %v3966 = vsel %vm3835, %v3582, -inf
        %v3967 = vmax.f32 %v3965, %v3966
        %v3968 = vsel %vm3835, %v3533, -inf
        %v3969 = vsel %vm3835, %v3589, -inf
        %v3970 = vmax.f32 %v3968, %v3969
        %v3971 = vsel %vm3835, %v3540, -inf
        %v3972 = vsel %vm3835, %v3596, -inf
        %v3973 = vmax.f32 %v3971, %v3972
        %v3974 = vsel %vm3835, %v3547, -inf
        %v3975 = vsel %vm3835, %v3603, -inf
        %v3976 = vmax.f32 %v3974, %v3975
        %v3977 = vsel %vm3835, %v3554, -inf
        %v3978 = vsel %vm3835, %v3610, -inf
        %v3979 = vmax.f32 %v3977, %v3978
        %v3980 = vsel %vm3835, %v3617, -inf
        %v3981 = vsel %vm3835, %v3673, -inf
        %v3982 = vmax.f32 %v3980, %v3981
        %v3983 = vsel %vm3835, %v3624, -inf
        %v3984 = vsel %vm3835, %v3680, -inf
        %v3985 = vmax.f32 %v3983, %v3984
        %v3986 = vsel %vm3835, %v3631, -inf
        %v3987 = vsel %vm3835, %v3687, -inf
        %v3988 = vmax.f32 %v3986, %v3987
        %v3989 = vsel %vm3835, %v3638, -inf
        %v3990 = vsel %vm3835, %v3694, -inf
        %v3991 = vmax.f32 %v3989, %v3990
        %v3992 = vsel %vm3835, %v3645, -inf
        %v3993 = vsel %vm3835, %v3701, -inf
        %v3994 = vmax.f32 %v3992, %v3993
        %v3995 = vsel %vm3835, %v3652, -inf
        %v3996 = vsel %vm3835, %v3708, -inf
        %v3997 = vmax.f32 %v3995, %v3996
        %v3998 = vsel %vm3835, %v3659, -inf
        %v3999 = vsel %vm3835, %v3715, -inf
        %v4000 = vmax.f32 %v3998, %v3999
        %v4001 = vsel %vm3835, %v3666, -inf
        %v4002 = vsel %vm3835, %v3722, -inf
        %v4003 = vmax.f32 %v4001, %v4002
        %v4004 = vsel %vm3835, %v3729, -inf
        %v4005 = vsel %vm3835, %v3785, -inf
        %v4006 = vmax.f32 %v4004, %v4005
        %v4007 = vsel %vm3835, %v3736, -inf
        %v4008 = vsel %vm3835, %v3792, -inf
        %v4009 = vmax.f32 %v4007, %v4008
        %v4010 = vsel %vm3835, %v3743, -inf
        %v4011 = vsel %vm3835, %v3799, -inf
        %v4012 = vmax.f32 %v4010, %v4011
        %v4013 = vsel %vm3835, %v3750, -inf
        %v4014 = vsel %vm3835, %v3806, -inf
        %v4015 = vmax.f32 %v4013, %v4014
        %v4016 = vsel %vm3835, %v3757, -inf
        %v4017 = vsel %vm3835, %v3813, -inf
        %v4018 = vmax.f32 %v4016, %v4017
        %v4019 = vsel %vm3835, %v3764, -inf
        %v4020 = vsel %vm3835, %v3820, -inf
        %v4021 = vmax.f32 %v4019, %v4020
        %v4022 = vsel %vm3835, %v3771, -inf
        %v4023 = vsel %vm3835, %v3827, -inf
        %v4024 = vmax.f32 %v4022, %v4023
        %v4025 = vsel %vm3835, %v3778, -inf
        %v4026 = vsel %vm3835, %v3834, -inf
        %v4027 = vmax.f32 %v4025, %v4026
        %vm4092 = vcmask 1041409
        %v4093 = vsel %vm4092, %v3841, %v3838
        %vm4094 = vcmask 1042434
        %v4095 = vsel %vm4094, %v3844, %v4093
        %vm4096 = vcmask 1043459
        %v4097 = vsel %vm4096, %v3847, %v4095
        %vm4098 = vcmask 1044484
        %v4099 = vsel %vm4098, %v3850, %v4097
        %vm4100 = vcmask 1045509
        %v4101 = vsel %vm4100, %v3853, %v4099
        %vm4102 = vcmask 1046534
        %v4103 = vsel %vm4102, %v3856, %v4101
        %vm4104 = vcmask 1047559
        %v4105 = vsel %vm4104, %v3859, %v4103
        %v4106 = vsel %vm4092, %v3865, %v3862
        %v4107 = vsel %vm4094, %v3868, %v4106
        %v4108 = vsel %vm4096, %v3871, %v4107
        %v4109 = vsel %vm4098, %v3874, %v4108
        %v4110 = vsel %vm4100, %v3877, %v4109
        %v4111 = vsel %vm4102, %v3880, %v4110
        %v4112 = vsel %vm4104, %v3883, %v4111
        %v4113 = vsel %vm4092, %v3889, %v3886
        %v4114 = vsel %vm4094, %v3892, %v4113
        %v4115 = vsel %vm4096, %v3895, %v4114
        %v4116 = vsel %vm4098, %v3898, %v4115
        %v4117 = vsel %vm4100, %v3901, %v4116
        %v4118 = vsel %vm4102, %v3904, %v4117
        %v4119 = vsel %vm4104, %v3907, %v4118
        %v4120 = vsel %vm4092, %v3913, %v3910
        %v4121 = vsel %vm4094, %v3916, %v4120
        %v4122 = vsel %vm4096, %v3919, %v4121
        %v4123 = vsel %vm4098, %v3922, %v4122
        %v4124 = vsel %vm4100, %v3925, %v4123
        %v4125 = vsel %vm4102, %v3928, %v4124
        %v4126 = vsel %vm4104, %v3931, %v4125
        %v4127 = vsel %vm4092, %v3937, %v3934
        %v4128 = vsel %vm4094, %v3940, %v4127
        %v4129 = vsel %vm4096, %v3943, %v4128
        %v4130 = vsel %vm4098, %v3946, %v4129
        %v4131 = vsel %vm4100, %v3949, %v4130
        %v4132 = vsel %vm4102, %v3952, %v4131
        %v4133 = vsel %vm4104, %v3955, %v4132
        %v4134 = vsel %vm4092, %v3961, %v3958
        %v4135 = vsel %vm4094, %v3964, %v4134
        %v4136 = vsel %vm4096, %v3967, %v4135
        %v4137 = vsel %vm4098, %v3970, %v4136
        %v4138 = vsel %vm4100, %v3973, %v4137
        %v4139 = vsel %vm4102, %v3976, %v4138
        %v4140 = vsel %vm4104, %v3979, %v4139
        %v4141 = vsel %vm4092, %v3985, %v3982
        %v4142 = vsel %vm4094, %v3988, %v4141
        %v4143 = vsel %vm4096, %v3991, %v4142
        %v4144 = vsel %vm4098, %v3994, %v4143
        %v4145 = vsel %vm4100, %v3997, %v4144
        %v4146 = vsel %vm4102, %v4000, %v4145
        %v4147 = vsel %vm4104, %v4003, %v4146
        %v4148 = vsel %vm4092, %v4009, %v4006
        %v4149 = vsel %vm4094, %v4012, %v4148
        %v4150 = vsel %vm4096, %v4015, %v4149
        %v4151 = vsel %vm4098, %v4018, %v4150
        %v4152 = vsel %vm4100, %v4021, %v4151
        %v4153 = vsel %vm4102, %v4024, %v4152
        %v4154 = vsel %vm4104, %v4027, %v4153
        %4163 = vst.msk [vmem:[%s269] sm:$0xff] %vm3835, %v4105
        %4164 = vst.msk [vmem:[%s269 + $0x8] sm:$0xff] %vm3835, %v4112
        %4165 = vst.msk [vmem:[%s269 + $0x10] sm:$0xff] %vm3835, %v4119
        %4166 = vst.msk [vmem:[%s269 + $0x18] sm:$0xff] %vm3835, %v4126
        %4167 = vst.msk [vmem:[%s269 + $0x20] sm:$0xff] %vm3835, %v4133
        %4168 = vst.msk [vmem:[%s269 + $0x28] sm:$0xff] %vm3835, %v4140
        %4169 = vst.msk [vmem:[%s269 + $0x30] sm:$0xff] %vm3835, %v4147
        %4170 = vst.msk [vmem:[%s269 + $0x38] sm:$0xff] %vm3835, %v4154
        %s4171 = sand.u32 %s134, 1
        %s4172 = scalar_lea.sflag [#allocation5], %s4171
        %s4173 = sand.u32 %s134, 1
        %s4174 = smul.addr %s4173, 64
        %s4175 = scalar_lea.vmem [#allocation11], %s4174
        // Predicated region
        $region53: #{tpu_custom_call.1} parent=35 // pred_check
          %p4176 = pneg %p144
        $region54: #{tpu_custom_call.1} parent=35 // pred_check_branch
          %4178 = sbr.rel (%p4176) target = $region56
        $region55: #{tpu_custom_call.1} parent=35 // pred_region
          %s4179 = smul.u32 8, %s28
          %s4181 = ssub.s32 1024, 1024
          %4182 = vsyncadd %s4172, %s4181
          %s4183 = smul.addr %s27, 8
          %s4184 = sadd.s32 %s4179, %s4183
          %s4185 = smul.addr %s4184, 128
          %s4186 = scalar_lea.hbm %s4, %s4185
          %s4187 = sshll.u32 %s4175, 4
          %s4188 = int_to_ptr.vmem [resolvable:$true] %s4187
          %4193 = dma.vmem_to_hbm [thread:$0]  %s4188, 1024, %s4186, %s4172, 128, 128, 8
        $region56: #{tpu_custom_call.1} parent=35 // pred_fallthru
          _
      $region36: #{tpu_custom_call.1} parent=5 // pred_fallthru
        _
      %p4194 = scmp.le.s32.totalorder 2, %s18
      // Predicated region
      $region57: #{tpu_custom_call.1} parent=5 // pred_check
        %p4195 = pneg %p4194
      $region58: #{tpu_custom_call.1} parent=5 // pred_check_branch
        %4197 = sbr.rel (%p4195) target = $region60
      $region59: #{tpu_custom_call.1} parent=5 // pred_region
        %s4198 = ssub.s32 %s18, 2
        // Predicated region
        $region61: #{tpu_custom_call.1} parent=59 // pred_check
          %p4199 = pneg %p150
        $region62: #{tpu_custom_call.1} parent=59 // pred_check_branch
          %4201 = sbr.rel (%p4199) target = $region64
        $region63: #{tpu_custom_call.1} parent=59 // pred_region
          %s4202 = sand.u32 %s135, 1
          %s4203 = scalar_lea.sflag [#allocation5], %s4202
          %s4204 = sand.u32 %s135, 1
          %s4205 = smul.addr %s4204, 64
          %s4206 = scalar_lea.vmem [#allocation11], %s4205
          %4207 = dma.done %s4203, 1024
        $region64: #{tpu_custom_call.1} parent=59 // pred_fallthru
          _
      $region60: #{tpu_custom_call.1} parent=5 // pred_fallthru
        _
    $region6: #{tpu_custom_call.1} parent=1 // loop_footer
      %s22 = sadd.s32 1, %s18
    $region7: #{tpu_custom_call.1} parent=1 // loop_footer_branch
      %17 = sbr.rel target = $region3
    $region8: #{tpu_custom_call.1} parent=1 // loop_exit
      _
    %4208 = vsyncpa [#allocation4], 1
    %s4209 = scalar_lea.sflag [#allocation4], 1
    %4210 = vsyncpa %s4209, 1
    %4211 = vsyncpa [#allocation7], 1
    %4212 = vsyncpa [#allocation10], 1
    %4213 = vsyncpa [#allocation5], 1
    %s4214 = scalar_lea.sflag [#allocation5], 1
    %4215 = vsyncpa %s4214, 1

</llo_original>
